<compile_context>
chip_gen: v5e
topology: v5e:2x2
jax: 0.10.0
libtpu: 0.0.40
codegen_flags: <defaults>
</compile_context>

<pallas_src>
import functools

import numpy as np
import jax
import jax.numpy as jnp
from jax.experimental import pallas as pl
from jax.experimental.pallas import tpu as pltpu


# ----------------------------------------------------------------------------
# Host-side constant linear maps (exact, computed once with numpy).
# ----------------------------------------------------------------------------
def _round_up(x, m):
    return (x + m - 1) // m * m


def _up1d(n):
    """(2n, n) matrix of the 1-D bilinear x2 upsample, align_corners=False."""
    m = np.zeros((2 * n, n), np.float32)
    for j in range(2 * n):
        k = j // 2
        if j % 2 == 0:
            m[j, max(k - 1, 0)] += 0.25
            m[j, k] += 0.75
        else:
            m[j, k] += 0.75
            m[j, min(k + 1, n - 1)] += 0.25
    return m


def _pad_rows(m, before=1, after=1):
    z = lambda k: np.zeros((k, m.shape[1]), np.float32)
    return np.concatenate([z(before), m, z(after)], axis=0)


def _upsample_maps(h, w):
    """Transposed (source -> destination) bilinear-x2 maps for channels-major use.

    ut_slab: (h*w, L_S)  — x2 upsample + 1-px zero halo, flat padded-slab coords
                           (row stride Wp = 2w+2), zero-padded to L_S lanes so the
                           conv2 tap shifts never run off the end.
    ut_id:   (h*w, nout) — x2 upsample in padded-row *output* coords (stride Wp).
    All weights (0.75/0.25 products) are exact in bf16.
    """
    ho, wo = 2 * h, 2 * w
    Hp, Wp = ho + 2, wo + 2
    L_S = _round_up(Hp * Wp + 2, 128)
    nout = ho * Wp
    u_slab = np.kron(_pad_rows(_up1d(h)), _pad_rows(_up1d(w)))          # (Hp*Wp, h*w)
    ut_slab = np.zeros((h * w, L_S), np.float32)
    ut_slab[:, :Hp * Wp] = u_slab.T
    u_id = np.kron(_up1d(h), _pad_rows(_up1d(w), before=0, after=2))    # (nout, h*w)
    return (jnp.asarray(ut_slab, jnp.bfloat16),
            jnp.asarray(u_id.T, jnp.bfloat16), L_S, nout)


# ----------------------------------------------------------------------------
# Kernels (one fused pallas_call per block; everything VMEM-resident).
# ----------------------------------------------------------------------------
def _conv2_add_relu(slab, idn, w2_ref, b2_ref, o_ref, *, ni, Wp, nout):
    """conv2(3x3)+bn2 on a flat padded slab, residual add, ReLU, lane-dense store.

    The 9 taps are static lane shifts of the flat slab; they are stacked once and
    fed to a single (nf, 9*ni) x (9*ni, nout) MXU matmul with lane dim = ho*Wp.
    """
    taps = [slab[:, dy * Wp + dx: dy * Wp + dx + nout]
            for dy in range(3) for dx in range(3)]
    patch2 = jnp.concatenate(taps, axis=0).astype(jnp.bfloat16)          # (9*ni, nout)
    out2 = jnp.dot(w2_ref[...], patch2, preferred_element_type=jnp.float32)
    o_ref[0] = jnp.maximum(out2 + b2_ref[...] + idn, 0.0)


def _td_kernel_up(patch_ref, w1_ref, b1_ref, wu_ref, bu_ref, ut_slab_ref,
                  ut_id_ref, w2_ref, b2_ref, o_ref, *, ni, Wp, nout):
    patch = patch_ref[0]                                                 # (9*ni, h*w) bf16
    # conv1 + bn1 (scale folded into w1) + relu -> (ni, h*w), lane = h*w
    out1 = jnp.dot(w1_ref[...], patch, preferred_element_type=jnp.float32)
    out1 = jnp.maximum(out1 + b1_ref[...], 0.0)
    # bilinear x2 + zero halo for conv2 as ONE matmul -> (ni, L_S) flat padded slab
    slab = jnp.dot(out1.astype(jnp.bfloat16), ut_slab_ref[...],
                   preferred_element_type=jnp.float32)
    # identity = bn_u(conv1x1(bilinear_x2(x)));  1x1 conv / BN commute with the resize,
    # so apply the cheap channel map first.  x is the centre tap of the im2col patch.
    xflat = patch[4 * ni:5 * ni, :]                                      # (ni, h*w)
    idn = jnp.dot(wu_ref[...], xflat, preferred_element_type=jnp.float32)
    idn = jnp.dot(idn.astype(jnp.bfloat16), ut_id_ref[...],
                  preferred_element_type=jnp.float32) + bu_ref[...]      # (nf, nout)
    _conv2_add_relu(slab, idn, w2_ref, b2_ref, o_ref, ni=ni, Wp=Wp, nout=nout)


def _td_kernel_noup(patch_ref, id_ref, mask_ref, w1_ref, b1_ref, w2_ref, b2_ref,
                    o_ref, *, ni, Wp, nout):
    patch = patch_ref[0]                                                 # (9*ni, L_S) bf16
    # conv1 + bn1 + relu computed directly in flat padded-slab coordinates; the {0,1}
    # mask zeroes the 1-px halo (replaces the old pad-by-matmul and any scatter).
    out1 = jnp.dot(w1_ref[...], patch, preferred_element_type=jnp.float32)
    slab = jnp.maximum(out1 + b1_ref[...], 0.0) * mask_ref[...]          # (ni, L_S)
    _conv2_add_relu(slab, id_ref[0], w2_ref, b2_ref, o_ref, ni=ni, Wp=Wp, nout=nout)


# ----------------------------------------------------------------------------
# Public wrapper (NCHW in / NCHW out, like the PyTorch module).
# ----------------------------------------------------------------------------
def td_basic_block_pallas(kp, x_nchw, *, has_upsample):
    n, cin, h, w = x_nchw.shape
    ni = kp["w1"].shape[0]
    nf = kp["w2"].shape[0]
    assert cin == ni
    if not has_upsample:
        assert ni == nf, "residual add requires nf == ni without an upsample"

    x = x_nchw.astype(jnp.float32)                     # NCHW is already channels-major

    if has_upsample:
        ho, wo = 2 * h, 2 * w
        Wp = wo + 2
        ut_slab, ut_id, L_S, nout = _upsample_maps(h, w)
        # conv1 im2col patch, built lane-dense in the XLA wrapper (no in-kernel shuffle).
        xp = jnp.pad(x, ((0, 0), (0, 0), (1, 1), (1, 1)))
        cols = [xp[:, :, dy:dy + h, dx:dx + w].reshape(n, ni, h * w)
                for dy in range(3) for dx in range(3)]
        patch = jnp.concatenate(cols, axis=1).astype(jnp.bfloat16)       # (n, 9ni, h*w)
        args = [patch, kp["w1"], kp["b1"], kp["wu"], kp["bu"], ut_slab, ut_id,
                kp["w2"], kp["b2"]]
        per_image = [True] + [False] * 8
        kern = functools.partial(_td_kernel_up, ni=ni, Wp=Wp, nout=nout)
        flops_img = (2 * ni * 9 * ni * h * w + 2 * ni * h * w * L_S
                     + 2 * nf * ni * h * w + 2 * nf * h * w * nout
                     + 2 * nf * 9 * ni * nout)
    else:
        ho, wo = h, w
        Hp, Wp = h + 2, w + 2
        L_S = _round_up(Hp * Wp + 2, 128)
        nout = ho * Wp
        # conv1 im2col patch directly in flat padded-slab coordinates, so conv1's output
        # lands in the zero-haloed slab conv2 reads (no pad-by-matmul, no scatter).
        xp2 = jnp.pad(x, ((0, 0), (0, 0), (2, 2), (2, 2)))
        cols = [jnp.pad(xp2[:, :, dy:dy + Hp, dx:dx + Wp].reshape(n, ni, Hp * Wp),
                        ((0, 0), (0, 0), (0, L_S - Hp * Wp)))
                for dy in range(3) for dx in range(3)]
        patch = jnp.concatenate(cols, axis=1).astype(jnp.bfloat16)       # (n, 9ni, L_S)
        m2 = np.zeros((Hp, Wp), np.float32)
        m2[1:h + 1, 1:w + 1] = 1.0
        mask_np = np.zeros((1, L_S), np.float32)
        mask_np[0, :Hp * Wp] = m2.reshape(-1)
        mask = jnp.asarray(mask_np)
        # identity (= x) in the same padded-row output coords, f32 (exact residual).
        id_pr = jnp.pad(x, ((0, 0), (0, 0), (0, 0), (0, Wp - w))).reshape(n, ni, nout)
        args = [patch, id_pr, mask, kp["w1"], kp["b1"], kp["w2"], kp["b2"]]
        per_image = [True, True] + [False] * 5
        kern = functools.partial(_td_kernel_noup, ni=ni, Wp=Wp, nout=nout)
        flops_img = 2 * ni * 9 * ni * L_S + 2 * nf * 9 * ni * nout

    def full_spec(a):
        nd = a.ndim
        return pl.BlockSpec(tuple(a.shape), lambda i, _nd=nd: (0,) * _nd)

    def image_spec(a):
        nd = a.ndim
        return pl.BlockSpec((1,) + tuple(a.shape[1:]),
                            lambda i, _nd=nd: (i,) + (0,) * (_nd - 1))

    in_specs = [image_spec(a) if pi else full_spec(a) for a, pi in zip(args, per_image)]
    bytes_acc = (sum(int(np.prod(a.shape)) * int(jnp.dtype(a.dtype).itemsize) for a in args)
                 + n * nf * nout * 4)

    out = pl.pallas_call(
        kern,
        grid=(n,),
        in_specs=in_specs,
        out_specs=pl.BlockSpec((1, nf, nout), lambda i: (i, 0, 0)),
        out_shape=jax.ShapeDtypeStruct((n, nf, nout), jnp.float32),
        compiler_params=pltpu.CompilerParams(dimension_semantics=("parallel",)),
        cost_estimate=pl.CostEstimate(flops=int(n * flops_img), transcendentals=0,
                                      bytes_accessed=int(bytes_acc)),
    )(*args)
    # lane-dense (nf, ho*Wp) kernel output -> NCHW with a cheap reshape + slice.
    return out.reshape(n, nf, ho, Wp)[:, :, :, :wo]


# ----------------------------------------------------------------------------
# Parameters: raw (for the reference) and pre-folded channels-major (for the kernel).
# ----------------------------------------------------------------------------
def bn_fold(gamma, beta, mean, var, eps=1e-5):
    scale = gamma * jax.lax.rsqrt(var + eps)
    return scale, beta - mean * scale


def init_raw_params(key, *, ni, nf, has_upsample):
    ks = iter(jax.random.split(key, 16))

    def conv_w(k, cin, cout):
        return 0.1 * jax.random.normal(next(ks), (k, k, cin, cout), jnp.float32)

    def bn(c):
        gamma = 1.0 + 0.1 * jax.random.normal(next(ks), (c,), jnp.float32)
        beta = 0.1 * jax.random.normal(next(ks), (c,), jnp.float32)
        mean = 0.1 * jax.random.normal(next(ks), (c,), jnp.float32)
        var = 1.0 + 0.1 * jnp.abs(jax.random.normal(next(ks), (c,), jnp.float32))
        return (gamma, beta, mean, var)

    p = {"w1": conv_w(3, ni, ni), "bn1": bn(ni),
         "w2": conv_w(3, ni, nf), "bn2": bn(nf)}
    if has_upsample:
        p["wu"] = conv_w(1, ni, nf)
        p["bnu"] = bn(nf)
    return p


def fold_params(raw, *, has_upsample):
    """One-time fold: HWIO -> channels-major (Cout, 9*Cin) bf16 with BN scale baked in."""
    def fold3x3(w_hwio, bn_stats):
        s, b = bn_fold(*bn_stats)
        cout = w_hwio.shape[-1]
        wm = jnp.transpose(w_hwio * s[None, None, None, :], (3, 0, 1, 2))
        wm = wm.reshape(cout, -1)                       # column = tap*Cin + cin
        return wm.astype(jnp.bfloat16), b.reshape(cout, 1).astype(jnp.float32)

    kp = {}
    kp["w1"], kp["b1"] = fold3x3(raw["w1"], raw["bn1"])
    kp["w2"], kp["b2"] = fold3x3(raw["w2"], raw["bn2"])
    if has_upsample:
        su, bu = bn_fold(*raw["bnu"])
        wu = raw["wu"][0, 0] * su[None, :]              # (ni, nf), BN scale folded
        kp["wu"] = jnp.transpose(wu).astype(jnp.bfloat16)   # (nf, ni)
        kp["bu"] = bu.reshape(-1, 1).astype(jnp.float32)
    return kp


# ----------------------------------------------------------------------------
# Pure-JAX reference (mirrors the PyTorch forward op-by-op, f32 HIGHEST).
# ----------------------------------------------------------------------------
def td_basic_block_ref(raw, x_nchw, *, has_upsample):
    x = jnp.transpose(x_nchw, (0, 2, 3, 1)).astype(jnp.float32)
    hi = jax.lax.Precision.HIGHEST

    def conv(v, w_hwio):
        return jax.lax.conv_general_dilated(
            v, w_hwio, (1, 1), "SAME",
            dimension_numbers=("NHWC", "HWIO", "NHWC"), precision=hi)

    s1, b1 = bn_fold(*raw["bn1"])
    s2, b2 = bn_fold(*raw["bn2"])

    out = jax.nn.relu(conv(x, raw["w1"]) * s1 + b1)
    identity = x
    if has_upsample:
        su, bu = bn_fold(*raw["bnu"])
        n, h, w, c = x.shape
        identity = jax.image.resize(identity, (n, 2 * h, 2 * w, c), "bilinear")
        identity = conv(identity, raw["wu"]) * su + bu
        out = jax.image.resize(out, (n, 2 * h, 2 * w, c), "bilinear")
    out = conv(out, raw["w2"]) * s2 + b2
    out = jax.nn.relu(out + identity)
    return jnp.transpose(out, (0, 3, 1, 2))


# ----------------------------------------------------------------------------
if __name__ == "__main__":
    key = jax.random.PRNGKey(0)
    kp1, kx1, kp2, kx2 = jax.random.split(key, 4)

    # ---- TDBasicBlock(ni=16, nf=8) with upsample (bilinear x2 -> conv1x1 -> BN)
    raw_a = init_raw_params(kp1, ni=16, nf=8, has_upsample=True)
    kern_a = fold_params(raw_a, has_upsample=True)
    x_a = jax.random.normal(kx1, (2, 16, 16, 16), jnp.float32)        # NCHW
    fwd_a = jax.jit(lambda p, v: td_basic_block_pallas(p, v, has_upsample=True))
    y_a = jax.block_until_ready(fwd_a(kern_a, x_a))
    ref_a = td_basic_block_ref(raw_a, x_a, has_upsample=True)
    assert y_a.shape == (2, 8, 32, 32), y_a.shape
    assert bool(jnp.all(jnp.isfinite(y_a)))
    err_a = float(jnp.max(jnp.abs(y_a - ref_a)))
    # bf16 MXU operands (per perf guidance); reference is f32 HIGHEST precision.
    assert err_a < 1e-1, err_a

    # ---- TDBasicBlock(ni=8, nf=8), no upsample
    raw_b = init_raw_params(kp2, ni=8, nf=8, has_upsample=False)
    kern_b = fold_params(raw_b, has_upsample=False)
    x_b = jax.random.normal(kx2, (2, 8, 16, 16), jnp.float32)         # NCHW
    fwd_b = jax.jit(lambda p, v: td_basic_block_pallas(p, v, has_upsample=False))
    y_b = jax.block_until_ready(fwd_b(kern_b, x_b))
    ref_b = td_basic_block_ref(raw_b, x_b, has_upsample=False)
    assert y_b.shape == (2, 8, 16, 16), y_b.shape
    assert bool(jnp.all(jnp.isfinite(y_b)))
    err_b = float(jnp.max(jnp.abs(y_b - ref_b)))
    assert err_b < 1e-1, err_b

    print("KERNEL_OK")
</pallas_src>

<mosaic_0001>
module attributes {stable_mosaic.version = 11 : i64} {
  func.func @_td_kernel_up(%arg0: i32, %arg1: memref<1x144x256xbf16, #tpu.memory_space<vmem>>, %arg2: memref<16x144xbf16, #tpu.memory_space<vmem>>, %arg3: memref<16x1xf32, #tpu.memory_space<vmem>>, %arg4: memref<8x16xbf16, #tpu.memory_space<vmem>>, %arg5: memref<8x1xf32, #tpu.memory_space<vmem>>, %arg6: memref<256x1280xbf16, #tpu.memory_space<vmem>>, %arg7: memref<256x1088xbf16, #tpu.memory_space<vmem>>, %arg8: memref<8x144xbf16, #tpu.memory_space<vmem>>, %arg9: memref<8x1xf32, #tpu.memory_space<vmem>>, %arg10: memref<1x8x1088xf32, #tpu.memory_space<vmem>>) attributes {dimension_semantics = [#tpu.dimension_semantics<parallel>], iteration_bounds = array<i64: 2>, scalar_prefetch = 0 : i64, scratch_operands = 0 : i64, tpu.core_type = #tpu.core_type<tc>, window_params = [{transform_indices = @transform_0, window_bounds = array<i64: 1, 144, 256>}, {pipeline_mode = #tpu.pipeline_mode<synchronous>, transform_indices = @transform_1, window_bounds = array<i64: 16, 144>}, {pipeline_mode = #tpu.pipeline_mode<synchronous>, transform_indices = @transform_2, window_bounds = array<i64: 16, 1>}, {pipeline_mode = #tpu.pipeline_mode<synchronous>, transform_indices = @transform_3, window_bounds = array<i64: 8, 16>}, {pipeline_mode = #tpu.pipeline_mode<synchronous>, transform_indices = @transform_4, window_bounds = array<i64: 8, 1>}, {pipeline_mode = #tpu.pipeline_mode<synchronous>, transform_indices = @transform_5, window_bounds = array<i64: 256, 1280>}, {pipeline_mode = #tpu.pipeline_mode<synchronous>, transform_indices = @transform_6, window_bounds = array<i64: 256, 1088>}, {pipeline_mode = #tpu.pipeline_mode<synchronous>, transform_indices = @transform_7, window_bounds = array<i64: 8, 144>}, {pipeline_mode = #tpu.pipeline_mode<synchronous>, transform_indices = @transform_8, window_bounds = array<i64: 8, 1>}, {transform_indices = @transform_9, window_bounds = array<i64: 1, 8, 1088>}]} {
    %c0 = arith.constant 0 : index
    %c0_0 = arith.constant 0 : index
    %c0_1 = arith.constant 0 : index
    %0 = vector.load %arg1[%c0, %c0_0, %c0_1] : memref<1x144x256xbf16, #tpu.memory_space<vmem>>, vector<1x144x256xbf16>
    %1 = vector.shape_cast %0 : vector<1x144x256xbf16> to vector<144x256xbf16>
    %c0_2 = arith.constant 0 : index
    %c0_3 = arith.constant 0 : index
    %2 = vector.load %arg2[%c0_2, %c0_3] : memref<16x144xbf16, #tpu.memory_space<vmem>>, vector<16x144xbf16>
    %cst = arith.constant dense<0.000000e+00> : vector<16x256xf32>
    %3 = tpu.matmul %2, %1, %cst {dimension_numbers = #tpu.dot_dimension_numbers<[1], [0], [0], [1], [0, 0, 1, 1], [], []>} : vector<16x144xbf16>, vector<144x256xbf16>, vector<16x256xf32> -> vector<16x256xf32>
    %c0_4 = arith.constant 0 : index
    %c0_5 = arith.constant 0 : index
    %4 = vector.load %arg3[%c0_4, %c0_5] : memref<16x1xf32, #tpu.memory_space<vmem>>, vector<16x1xf32>
    %5 = vector.broadcast %4 : vector<16x1xf32> to vector<16x256xf32>
    %6 = arith.addf %3, %5 : vector<16x256xf32>
    %cst_6 = arith.constant 0.000000e+00 : f32
    %7 = vector.broadcast %cst_6 : f32 to vector<16x256xf32>
    %8 = arith.maximumf %6, %7 : vector<16x256xf32>
    %9 = arith.truncf %8 : vector<16x256xf32> to vector<16x256xbf16>
    %c0_7 = arith.constant 0 : index
    %c0_8 = arith.constant 0 : index
    %10 = vector.load %arg6[%c0_7, %c0_8] : memref<256x1280xbf16, #tpu.memory_space<vmem>>, vector<256x1280xbf16>
    %cst_9 = arith.constant dense<0.000000e+00> : vector<16x1280xf32>
    %11 = tpu.matmul %9, %10, %cst_9 {dimension_numbers = #tpu.dot_dimension_numbers<[1], [0], [0], [1], [0, 0, 1, 1], [], []>} : vector<16x256xbf16>, vector<256x1280xbf16>, vector<16x1280xf32> -> vector<16x1280xf32>
    %12 = vector.extract_strided_slice %1 {offsets = [64, 0], sizes = [16, 256], strides = [1, 1]} : vector<144x256xbf16> to vector<16x256xbf16>
    %c0_10 = arith.constant 0 : index
    %c0_11 = arith.constant 0 : index
    %13 = vector.load %arg4[%c0_10, %c0_11] : memref<8x16xbf16, #tpu.memory_space<vmem>>, vector<8x16xbf16>
    %cst_12 = arith.constant dense<0.000000e+00> : vector<8x256xf32>
    %14 = tpu.matmul %13, %12, %cst_12 {dimension_numbers = #tpu.dot_dimension_numbers<[1], [0], [0], [1], [0, 0, 1, 1], [], []>} : vector<8x16xbf16>, vector<16x256xbf16>, vector<8x256xf32> -> vector<8x256xf32>
    %15 = arith.truncf %14 : vector<8x256xf32> to vector<8x256xbf16>
    %c0_13 = arith.constant 0 : index
    %c0_14 = arith.constant 0 : index
    %16 = vector.load %arg7[%c0_13, %c0_14] : memref<256x1088xbf16, #tpu.memory_space<vmem>>, vector<256x1088xbf16>
    %cst_15 = arith.constant dense<0.000000e+00> : vector<8x1088xf32>
    %17 = tpu.matmul %15, %16, %cst_15 {dimension_numbers = #tpu.dot_dimension_numbers<[1], [0], [0], [1], [0, 0, 1, 1], [], []>} : vector<8x256xbf16>, vector<256x1088xbf16>, vector<8x1088xf32> -> vector<8x1088xf32>
    %c0_16 = arith.constant 0 : index
    %c0_17 = arith.constant 0 : index
    %18 = vector.load %arg5[%c0_16, %c0_17] : memref<8x1xf32, #tpu.memory_space<vmem>>, vector<8x1xf32>
    %19 = vector.broadcast %18 : vector<8x1xf32> to vector<8x1088xf32>
    %20 = arith.addf %17, %19 : vector<8x1088xf32>
    %21 = vector.extract_strided_slice %11 {offsets = [0, 0], sizes = [16, 1088], strides = [1, 1]} : vector<16x1280xf32> to vector<16x1088xf32>
    %22 = vector.extract_strided_slice %11 {offsets = [0, 1], sizes = [16, 1088], strides = [1, 1]} : vector<16x1280xf32> to vector<16x1088xf32>
    %23 = vector.extract_strided_slice %11 {offsets = [0, 2], sizes = [16, 1088], strides = [1, 1]} : vector<16x1280xf32> to vector<16x1088xf32>
    %24 = vector.extract_strided_slice %11 {offsets = [0, 34], sizes = [16, 1088], strides = [1, 1]} : vector<16x1280xf32> to vector<16x1088xf32>
    %25 = vector.extract_strided_slice %11 {offsets = [0, 35], sizes = [16, 1088], strides = [1, 1]} : vector<16x1280xf32> to vector<16x1088xf32>
    %26 = vector.extract_strided_slice %11 {offsets = [0, 36], sizes = [16, 1088], strides = [1, 1]} : vector<16x1280xf32> to vector<16x1088xf32>
    %27 = vector.extract_strided_slice %11 {offsets = [0, 68], sizes = [16, 1088], strides = [1, 1]} : vector<16x1280xf32> to vector<16x1088xf32>
    %28 = vector.extract_strided_slice %11 {offsets = [0, 69], sizes = [16, 1088], strides = [1, 1]} : vector<16x1280xf32> to vector<16x1088xf32>
    %29 = vector.extract_strided_slice %11 {offsets = [0, 70], sizes = [16, 1088], strides = [1, 1]} : vector<16x1280xf32> to vector<16x1088xf32>
    %30 = tpu.concatenate %21, %22, %23, %24, %25, %26, %27, %28, %29 in 0 : vector<16x1088xf32>, vector<16x1088xf32>, vector<16x1088xf32>, vector<16x1088xf32>, vector<16x1088xf32>, vector<16x1088xf32>, vector<16x1088xf32>, vector<16x1088xf32>, vector<16x1088xf32> -> vector<144x1088xf32>
    %31 = arith.truncf %30 : vector<144x1088xf32> to vector<144x1088xbf16>
    %c0_18 = arith.constant 0 : index
    %c0_19 = arith.constant 0 : index
    %32 = vector.load %arg8[%c0_18, %c0_19] : memref<8x144xbf16, #tpu.memory_space<vmem>>, vector<8x144xbf16>
    %cst_20 = arith.constant dense<0.000000e+00> : vector<8x1088xf32>
    %33 = tpu.matmul %32, %31, %cst_20 {dimension_numbers = #tpu.dot_dimension_numbers<[1], [0], [0], [1], [0, 0, 1, 1], [], []>} : vector<8x144xbf16>, vector<144x1088xbf16>, vector<8x1088xf32> -> vector<8x1088xf32>
    %c0_21 = arith.constant 0 : index
    %c0_22 = arith.constant 0 : index
    %34 = vector.load %arg9[%c0_21, %c0_22] : memref<8x1xf32, #tpu.memory_space<vmem>>, vector<8x1xf32>
    %35 = vector.broadcast %34 : vector<8x1xf32> to vector<8x1088xf32>
    %36 = arith.addf %33, %35 : vector<8x1088xf32>
    %37 = arith.addf %36, %20 : vector<8x1088xf32>
    %cst_23 = arith.constant 0.000000e+00 : f32
    %38 = vector.broadcast %cst_23 : f32 to vector<8x1088xf32>
    %39 = arith.maximumf %37, %38 : vector<8x1088xf32>
    %c0_24 = arith.constant 0 : index
    %c0_25 = arith.constant 0 : index
    %c0_26 = arith.constant 0 : index
    %40 = vector.load %arg10[%c0_24, %c0_25, %c0_26] : memref<1x8x1088xf32, #tpu.memory_space<vmem>>, vector<1x8x1088xf32>
    %41 = vector.shape_cast %40 : vector<1x8x1088xf32> to vector<8x1088xf32>
    %42 = vector.shape_cast %39 : vector<8x1088xf32> to vector<1x8x1088xf32>
    tpu.vector_store %arg10[%c0_24, %c0_25, %c0_26], %42 {strides = array<i32>} : memref<1x8x1088xf32, #tpu.memory_space<vmem>>, vector<1x8x1088xf32>,
    return
  }
  func.func @transform_0(%arg0: i32) -> (i32, i32, i32) {
    %c0_i32 = arith.constant 0 : i32
    %c0_i32_0 = arith.constant 0 : i32
    %c0_i32_1 = arith.constant 0 : i32
    return %arg0, %c0_i32, %c0_i32_0 : i32, i32, i32
  }
  func.func @transform_1(%arg0: i32) -> (i32, i32) {
    %c0_i32 = arith.constant 0 : i32
    %c0_i32_0 = arith.constant 0 : i32
    %c0_i32_1 = arith.constant 0 : i32
    return %c0_i32, %c0_i32_0 : i32, i32
  }
  func.func @transform_2(%arg0: i32) -> (i32, i32) {
    %c0_i32 = arith.constant 0 : i32
    %c0_i32_0 = arith.constant 0 : i32
    %c0_i32_1 = arith.constant 0 : i32
    return %c0_i32, %c0_i32_0 : i32, i32
  }
  func.func @transform_3(%arg0: i32) -> (i32, i32) {
    %c0_i32 = arith.constant 0 : i32
    %c0_i32_0 = arith.constant 0 : i32
    %c0_i32_1 = arith.constant 0 : i32
    return %c0_i32, %c0_i32_0 : i32, i32
  }
  func.func @transform_4(%arg0: i32) -> (i32, i32) {
    %c0_i32 = arith.constant 0 : i32
    %c0_i32_0 = arith.constant 0 : i32
    %c0_i32_1 = arith.constant 0 : i32
    return %c0_i32, %c0_i32_0 : i32, i32
  }
  func.func @transform_5(%arg0: i32) -> (i32, i32) {
    %c0_i32 = arith.constant 0 : i32
    %c0_i32_0 = arith.constant 0 : i32
    %c0_i32_1 = arith.constant 0 : i32
    return %c0_i32, %c0_i32_0 : i32, i32
  }
  func.func @transform_6(%arg0: i32) -> (i32, i32) {
    %c0_i32 = arith.constant 0 : i32
    %c0_i32_0 = arith.constant 0 : i32
    %c0_i32_1 = arith.constant 0 : i32
    return %c0_i32, %c0_i32_0 : i32, i32
  }
  func.func @transform_7(%arg0: i32) -> (i32, i32) {
    %c0_i32 = arith.constant 0 : i32
    %c0_i32_0 = arith.constant 0 : i32
    %c0_i32_1 = arith.constant 0 : i32
    return %c0_i32, %c0_i32_0 : i32, i32
  }
  func.func @transform_8(%arg0: i32) -> (i32, i32) {
    %c0_i32 = arith.constant 0 : i32
    %c0_i32_0 = arith.constant 0 : i32
    %c0_i32_1 = arith.constant 0 : i32
    return %c0_i32, %c0_i32_0 : i32, i32
  }
  func.func @transform_9(%arg0: i32) -> (i32, i32, i32) {
    %c0_i32 = arith.constant 0 : i32
    %c0_i32_0 = arith.constant 0 : i32
    %c0_i32_1 = arith.constant 0 : i32
    return %arg0, %c0_i32, %c0_i32_0 : i32, i32, i32
  }
}

</mosaic_0001>

<llo_original>
// kernel: _lambda_.1
$region0: #{_lambda_.1}
  #allocation0 [shape = 'u32[]', space=smem, size = 0x4, offset = 0x4, fixed_abs, tag = 'smem constant byte address 0x4 - core index']
  #allocation1 [shape = 'u32[72,128]{1,0:T(1,128)}', space=vmem, size = 0x9000, scoped, tag = 'internal scratch']
  %s0 = inlined_call_operand.vmem [shape: bf16[2,144,256], index: 0, kind: input, shape index: {}]
  %s1 = inlined_call_operand.vmem [shape: bf16[16,144], index: 1, kind: input, shape index: {}]
  %s2 = inlined_call_operand.vmem [shape: f32[16,1], index: 2, kind: input, shape index: {}]
  %s3 = inlined_call_operand.vmem [shape: bf16[8,16], index: 3, kind: input, shape index: {}]
  %s4 = inlined_call_operand.vmem [shape: f32[8,1], index: 4, kind: input, shape index: {}]
  %s5 = inlined_call_operand.vmem [shape: bf16[256,1280], index: 5, kind: input, shape index: {}]
  %s6 = inlined_call_operand.vmem [shape: bf16[256,1088], index: 6, kind: input, shape index: {}]
  %s7 = inlined_call_operand.vmem [shape: bf16[8,144], index: 7, kind: input, shape index: {}]
  %s8 = inlined_call_operand.vmem [shape: f32[8,1], index: 8, kind: input, shape index: {}]
  %s9 = inlined_call_operand.vmem [shape: f32[2,8,1088], index: 9, kind: output, shape index: {}]
  %s10 = sld [smem:[#allocation0]]
  $region69: #{_lambda_.1} parent=0
    _
  %s12 = ssub.s32 1, %s10
  %s13 = scalar_select 0, %s12, %s10
  loop: start=0, step=1, limit=4
  $region2: #{_lambda_.1} parent=0 // loop_pre_header
    _
  $region3: #{_lambda_.1} parent=0 // loop_header
    %s15 = sphi 0, %s19
    %p16 = scmp.ge.s32.totalorder %s15, 4
    %s25 = sphi 0, %s27
    %s28 = sphi 0, %s25
    %s29 = sphi 0, %s28
    %s45 = sphi 0, %s29
    %s49 = sphi 0, %s49
    %s51 = sphi 0, %s49
    %s52 = sphi 0, %s51
    %s66 = sphi 0, %s52
    %s70 = sphi 0, %s70
    %s72 = sphi 0, %s70
    %s73 = sphi 0, %s72
    %s87 = sphi 0, %s73
    %s91 = sphi 0, %s91
    %s93 = sphi 0, %s91
    %s94 = sphi 0, %s93
    %s108 = sphi 0, %s94
    %s112 = sphi 0, %s112
    %s114 = sphi 0, %s112
    %s115 = sphi 0, %s114
    %s129 = sphi 0, %s115
    %s133 = sphi 0, %s133
    %s135 = sphi 0, %s133
    %s136 = sphi 0, %s135
    %s150 = sphi 0, %s136
    %s154 = sphi 0, %s154
    %s156 = sphi 0, %s154
    %s157 = sphi 0, %s156
    %s171 = sphi 0, %s157
    %s175 = sphi 0, %s175
    %s177 = sphi 0, %s175
    %s178 = sphi 0, %s177
    %s192 = sphi 0, %s178
    %s196 = sphi 0, %s196
    %s198 = sphi 0, %s196
    %s199 = sphi 0, %s198
    %s213 = sphi 0, %s199
    %s219 = sphi 0, %s221
    %s222 = sphi 0, %s219
    %s223 = sphi 0, %s222
    %s239 = sphi 0, %s223
  $region4: #{_lambda_.1} parent=0 // loop_header_branch
    %18 = sbr.rel (%p16) target = $region8
  $region5: #{_lambda_.1} parent=0 // loop_body
    %s20 = ssub.s32 %s15, 1
    %s21 = ssub.s32 %s15, 2
    %s22 = sadd.s32 %s15, 1
    %s23 = ssub.s32 %s15, %s22
    %p24 = scmp.eq.s32.totalorder %s23, 0
    %s26 = sadd.s32 %s25, 1
    %s27 = scalar_select %p24, %s25, %s26
    %p30 = pneg %p24
    %p31 = scmp.eq.s32.totalorder %s15, 1
    %p32 = por %p30, %p31
    %p33 = scmp.ne.s32.totalorder %s25, %s28
    %p34 = scmp.eq.s32.totalorder %s15, 0
    %p35 = por %p33, %p34
    %p36 = scmp.ne.s32.totalorder %s25, %s28
    %p37 = scmp.eq.s32.totalorder %s20, 1
    %p38 = por %p36, %p37
    %p39 = scmp.ne.s32.totalorder %s28, %s29
    %p40 = scmp.eq.s32.totalorder %s20, 0
    %p41 = por %p39, %p40
    %p42 = scmp.ne.s32.totalorder %s28, %s29
    %p43 = scmp.eq.s32.totalorder %s21, 1
    %p44 = por %p42, %p43
    %p46 = scmp.ne.s32.totalorder %s29, %s45
    %p47 = scmp.eq.s32.totalorder %s21, 0
    %p48 = por %p46, %p47
    %s50 = sadd.s32 %s49, 1
    %p53 = scmp.eq.s32.totalorder %s15, 1
    %p54 = scmp.ne.s32.totalorder %s49, %s51
    %p55 = scmp.eq.s32.totalorder %s15, 0
    %p56 = por %p54, %p55
    %p57 = scmp.ne.s32.totalorder %s49, %s51
    %p58 = scmp.eq.s32.totalorder %s20, 1
    %p59 = por %p57, %p58
    %p60 = scmp.ne.s32.totalorder %s51, %s52
    %p61 = scmp.eq.s32.totalorder %s20, 0
    %p62 = por %p60, %p61
    %p63 = scmp.ne.s32.totalorder %s51, %s52
    %p64 = scmp.eq.s32.totalorder %s21, 1
    %p65 = por %p63, %p64
    %p67 = scmp.ne.s32.totalorder %s52, %s66
    %p68 = scmp.eq.s32.totalorder %s21, 0
    %p69 = por %p67, %p68
    %s71 = sadd.s32 %s70, 1
    %p74 = scmp.eq.s32.totalorder %s15, 1
    %p75 = scmp.ne.s32.totalorder %s70, %s72
    %p76 = scmp.eq.s32.totalorder %s15, 0
    %p77 = por %p75, %p76
    %p78 = scmp.ne.s32.totalorder %s70, %s72
    %p79 = scmp.eq.s32.totalorder %s20, 1
    %p80 = por %p78, %p79
    %p81 = scmp.ne.s32.totalorder %s72, %s73
    %p82 = scmp.eq.s32.totalorder %s20, 0
    %p83 = por %p81, %p82
    %p84 = scmp.ne.s32.totalorder %s72, %s73
    %p85 = scmp.eq.s32.totalorder %s21, 1
    %p86 = por %p84, %p85
    %p88 = scmp.ne.s32.totalorder %s73, %s87
    %p89 = scmp.eq.s32.totalorder %s21, 0
    %p90 = por %p88, %p89
    %s92 = sadd.s32 %s91, 1
    %p95 = scmp.eq.s32.totalorder %s15, 1
    %p96 = scmp.ne.s32.totalorder %s91, %s93
    %p97 = scmp.eq.s32.totalorder %s15, 0
    %p98 = por %p96, %p97
    %p99 = scmp.ne.s32.totalorder %s91, %s93
    %p100 = scmp.eq.s32.totalorder %s20, 1
    %p101 = por %p99, %p100
    %p102 = scmp.ne.s32.totalorder %s93, %s94
    %p103 = scmp.eq.s32.totalorder %s20, 0
    %p104 = por %p102, %p103
    %p105 = scmp.ne.s32.totalorder %s93, %s94
    %p106 = scmp.eq.s32.totalorder %s21, 1
    %p107 = por %p105, %p106
    %p109 = scmp.ne.s32.totalorder %s94, %s108
    %p110 = scmp.eq.s32.totalorder %s21, 0
    %p111 = por %p109, %p110
    %s113 = sadd.s32 %s112, 1
    %p116 = scmp.eq.s32.totalorder %s15, 1
    %p117 = scmp.ne.s32.totalorder %s112, %s114
    %p118 = scmp.eq.s32.totalorder %s15, 0
    %p119 = por %p117, %p118
    %p120 = scmp.ne.s32.totalorder %s112, %s114
    %p121 = scmp.eq.s32.totalorder %s20, 1
    %p122 = por %p120, %p121
    %p123 = scmp.ne.s32.totalorder %s114, %s115
    %p124 = scmp.eq.s32.totalorder %s20, 0
    %p125 = por %p123, %p124
    %p126 = scmp.ne.s32.totalorder %s114, %s115
    %p127 = scmp.eq.s32.totalorder %s21, 1
    %p128 = por %p126, %p127
    %p130 = scmp.ne.s32.totalorder %s115, %s129
    %p131 = scmp.eq.s32.totalorder %s21, 0
    %p132 = por %p130, %p131
    %s134 = sadd.s32 %s133, 1
    %p137 = scmp.eq.s32.totalorder %s15, 1
    %p138 = scmp.ne.s32.totalorder %s133, %s135
    %p139 = scmp.eq.s32.totalorder %s15, 0
    %p140 = por %p138, %p139
    %p141 = scmp.ne.s32.totalorder %s133, %s135
    %p142 = scmp.eq.s32.totalorder %s20, 1
    %p143 = por %p141, %p142
    %p144 = scmp.ne.s32.totalorder %s135, %s136
    %p145 = scmp.eq.s32.totalorder %s20, 0
    %p146 = por %p144, %p145
    %p147 = scmp.ne.s32.totalorder %s135, %s136
    %p148 = scmp.eq.s32.totalorder %s21, 1
    %p149 = por %p147, %p148
    %p151 = scmp.ne.s32.totalorder %s136, %s150
    %p152 = scmp.eq.s32.totalorder %s21, 0
    %p153 = por %p151, %p152
    %s155 = sadd.s32 %s154, 1
    %p158 = scmp.eq.s32.totalorder %s15, 1
    %p159 = scmp.ne.s32.totalorder %s154, %s156
    %p160 = scmp.eq.s32.totalorder %s15, 0
    %p161 = por %p159, %p160
    %p162 = scmp.ne.s32.totalorder %s154, %s156
    %p163 = scmp.eq.s32.totalorder %s20, 1
    %p164 = por %p162, %p163
    %p165 = scmp.ne.s32.totalorder %s156, %s157
    %p166 = scmp.eq.s32.totalorder %s20, 0
    %p167 = por %p165, %p166
    %p168 = scmp.ne.s32.totalorder %s156, %s157
    %p169 = scmp.eq.s32.totalorder %s21, 1
    %p170 = por %p168, %p169
    %p172 = scmp.ne.s32.totalorder %s157, %s171
    %p173 = scmp.eq.s32.totalorder %s21, 0
    %p174 = por %p172, %p173
    %s176 = sadd.s32 %s175, 1
    %p179 = scmp.eq.s32.totalorder %s15, 1
    %p180 = scmp.ne.s32.totalorder %s175, %s177
    %p181 = scmp.eq.s32.totalorder %s15, 0
    %p182 = por %p180, %p181
    %p183 = scmp.ne.s32.totalorder %s175, %s177
    %p184 = scmp.eq.s32.totalorder %s20, 1
    %p185 = por %p183, %p184
    %p186 = scmp.ne.s32.totalorder %s177, %s178
    %p187 = scmp.eq.s32.totalorder %s20, 0
    %p188 = por %p186, %p187
    %p189 = scmp.ne.s32.totalorder %s177, %s178
    %p190 = scmp.eq.s32.totalorder %s21, 1
    %p191 = por %p189, %p190
    %p193 = scmp.ne.s32.totalorder %s178, %s192
    %p194 = scmp.eq.s32.totalorder %s21, 0
    %p195 = por %p193, %p194
    %s197 = sadd.s32 %s196, 1
    %p200 = scmp.eq.s32.totalorder %s15, 1
    %p201 = scmp.ne.s32.totalorder %s196, %s198
    %p202 = scmp.eq.s32.totalorder %s15, 0
    %p203 = por %p201, %p202
    %p204 = scmp.ne.s32.totalorder %s196, %s198
    %p205 = scmp.eq.s32.totalorder %s20, 1
    %p206 = por %p204, %p205
    %p207 = scmp.ne.s32.totalorder %s198, %s199
    %p208 = scmp.eq.s32.totalorder %s20, 0
    %p209 = por %p207, %p208
    %p210 = scmp.ne.s32.totalorder %s198, %s199
    %p211 = scmp.eq.s32.totalorder %s21, 1
    %p212 = por %p210, %p211
    %p214 = scmp.ne.s32.totalorder %s199, %s213
    %p215 = scmp.eq.s32.totalorder %s21, 0
    %p216 = por %p214, %p215
    %s217 = ssub.s32 %s15, %s22
    %p218 = scmp.eq.s32.totalorder %s217, 0
    %s220 = sadd.s32 %s219, 1
    %s221 = scalar_select %p218, %s219, %s220
    %p224 = pneg %p218
    %p225 = scmp.eq.s32.totalorder %s15, 1
    %p226 = por %p224, %p225
    %p227 = scmp.ne.s32.totalorder %s219, %s222
    %p228 = scmp.eq.s32.totalorder %s15, 0
    %p229 = por %p227, %p228
    %p230 = scmp.ne.s32.totalorder %s219, %s222
    %p231 = scmp.eq.s32.totalorder %s20, 1
    %p232 = por %p230, %p231
    %p233 = scmp.ne.s32.totalorder %s222, %s223
    %p234 = scmp.eq.s32.totalorder %s20, 0
    %p235 = por %p233, %p234
    %p236 = scmp.ne.s32.totalorder %s222, %s223
    %p237 = scmp.eq.s32.totalorder %s21, 1
    %p238 = por %p236, %p237
    %p240 = scmp.ne.s32.totalorder %s223, %s239
    %p241 = scmp.eq.s32.totalorder %s21, 0
    %p242 = por %p240, %p241
    %p243 = scmp.le.s32.totalorder 1, %s15
    %p244 = scmp.lt.s32.totalorder %s15, 3
    %p245 = pnand %p243, %p244
    %p246 = pneg %p245
    // Predicated region
    $region9: #{_lambda_.1} parent=5 // pred_check
      _
    $region10: #{_lambda_.1} parent=5 // pred_check_branch
      %248 = sbr.rel (%p245) target = $region12
    $region11: #{_lambda_.1} parent=5 // pred_region
      %s249 = ssub.s32 %s15, 1
      // Predicated region
      $region13: #{_lambda_.1} parent=11 // pred_check
        %p250 = pneg %p62
      $region14: #{_lambda_.1} parent=11 // pred_check_branch
        %252 = sbr.rel (%p250) target = $region16
      $region15: #{_lambda_.1} parent=11 // pred_region
        _
      $region16: #{_lambda_.1} parent=11 // pred_fallthru
        _
      // Predicated region
      $region17: #{_lambda_.1} parent=11 // pred_check
        %p253 = pneg %p83
      $region18: #{_lambda_.1} parent=11 // pred_check_branch
        %255 = sbr.rel (%p253) target = $region20
      $region19: #{_lambda_.1} parent=11 // pred_region
        _
      $region20: #{_lambda_.1} parent=11 // pred_fallthru
        _
      // Predicated region
      $region21: #{_lambda_.1} parent=11 // pred_check
        %p256 = pneg %p104
      $region22: #{_lambda_.1} parent=11 // pred_check_branch
        %258 = sbr.rel (%p256) target = $region24
      $region23: #{_lambda_.1} parent=11 // pred_region
        _
      $region24: #{_lambda_.1} parent=11 // pred_fallthru
        _
      // Predicated region
      $region25: #{_lambda_.1} parent=11 // pred_check
        %p259 = pneg %p125
      $region26: #{_lambda_.1} parent=11 // pred_check_branch
        %261 = sbr.rel (%p259) target = $region28
      $region27: #{_lambda_.1} parent=11 // pred_region
        _
      $region28: #{_lambda_.1} parent=11 // pred_fallthru
        _
      // Predicated region
      $region29: #{_lambda_.1} parent=11 // pred_check
        %p262 = pneg %p146
      $region30: #{_lambda_.1} parent=11 // pred_check_branch
        %264 = sbr.rel (%p262) target = $region32
      $region31: #{_lambda_.1} parent=11 // pred_region
        _
      $region32: #{_lambda_.1} parent=11 // pred_fallthru
        _
      // Predicated region
      $region33: #{_lambda_.1} parent=11 // pred_check
        %p265 = pneg %p167
      $region34: #{_lambda_.1} parent=11 // pred_check_branch
        %267 = sbr.rel (%p265) target = $region36
      $region35: #{_lambda_.1} parent=11 // pred_region
        _
      $region36: #{_lambda_.1} parent=11 // pred_fallthru
        _
      // Predicated region
      $region37: #{_lambda_.1} parent=11 // pred_check
        %p268 = pneg %p188
      $region38: #{_lambda_.1} parent=11 // pred_check_branch
        %270 = sbr.rel (%p268) target = $region40
      $region39: #{_lambda_.1} parent=11 // pred_region
        _
      $region40: #{_lambda_.1} parent=11 // pred_fallthru
        _
      // Predicated region
      $region41: #{_lambda_.1} parent=11 // pred_check
        %p271 = pneg %p209
      $region42: #{_lambda_.1} parent=11 // pred_check_branch
        %273 = sbr.rel (%p271) target = $region44
      $region43: #{_lambda_.1} parent=11 // pred_region
        _
      $region44: #{_lambda_.1} parent=11 // pred_fallthru
        _
    $region12: #{_lambda_.1} parent=5 // pred_fallthru
      _
    %p274 = scmp.lt.s32.totalorder %s15, 2
    // Predicated region
    $region45: #{_lambda_.1} parent=5 // pred_check
      %p275 = pneg %p274
    $region46: #{_lambda_.1} parent=5 // pred_check_branch
      %277 = sbr.rel (%p275) target = $region48
    $region47: #{_lambda_.1} parent=5 // pred_region
      // Predicated region
      $region49: #{_lambda_.1} parent=47 // pred_check
        %p278 = pneg %p35
      $region50: #{_lambda_.1} parent=47 // pred_check_branch
        %280 = sbr.rel (%p278) target = $region52
      $region51: #{_lambda_.1} parent=47 // pred_region
        %p281 = scmp.lt.s32.totalorder %s15, 1
        %s282 = scalar_select %p281, %s15, 1
        %s283 = smul.addr %s282, 36
        %s284 = smul.addr %s283, 4
        %s285 = scalar_lea.vmem %s0, %s284
      $region52: #{_lambda_.1} parent=47 // pred_fallthru
        _
    $region48: #{_lambda_.1} parent=5 // pred_fallthru
      _
    %p286 = scmp.le.s32.totalorder 1, %s15
    %p287 = scmp.lt.s32.totalorder %s15, 3
    %p288 = pnand %p286, %p287
    %p289 = pneg %p288
    // Predicated region
    $region53: #{_lambda_.1} parent=5 // pred_check
      _
    $region54: #{_lambda_.1} parent=5 // pred_check_branch
      %291 = sbr.rel (%p288) target = $region56
    $region55: #{_lambda_.1} parent=5 // pred_region
      %s292 = ssub.s32 %s15, 1
      %p293 = scmp.lt.s32.totalorder %s20, 1
      %s294 = scalar_select %p293, %s20, 1
      %s295 = smul.addr %s294, 36
      %s296 = smul.addr %s295, 4
      %s297 = scalar_lea.vmem %s0, %s296
      %p298 = pneg %p41
      %p299 = pneg %p38
      %p300 = pneg %p62
      %p301 = pneg %p59
      %p302 = pneg %p83
      %p303 = pneg %p80
      %p304 = pneg %p104
      %p305 = pneg %p101
      %p306 = pneg %p125
      %p307 = pneg %p122
      %p308 = pneg %p146
      %p309 = pneg %p143
      %p310 = pneg %p167
      %p311 = pneg %p164
      %p312 = pneg %p188
      %p313 = pneg %p185
      %p314 = pneg %p209
      %p315 = pneg %p206
      %p316 = pneg %p235
      %p317 = pneg %p232
      %p318 = scmp.lt.s32.totalorder %s20, 1
      %s319 = scalar_select %p318, %s20, 1
      %s320 = smul.addr %s319, 9
      %s321 = smul.addr %s320, 8
      %s322 = scalar_lea.vmem %s9, %s321
      %p323 = scmp.lt.s32.totalorder %s20, 1
      %s324 = scalar_select %p323, %s20, 1
      %s325 = smul.addr %s324, 36
      %s326 = smul.addr %s325, 4
      %s327 = scalar_lea.vmem %s0, %s326
      %p328 = scmp.lt.s32.totalorder %s20, 1
      %s329 = scalar_select %p328, %s20, 1
      %s330 = smul.addr %s329, 9
      %s331 = smul.addr %s330, 8
      %s332 = scalar_lea.vmem %s9, %s331
      %v334 = vld [vmem:[%s327] sm:$0xff]
      %v335 = vld [vmem:[%s327 + $0x8] sm:$0xff]
      %v336 = vld [vmem:[%s327 + $0x10] sm:$0xff]
      %v337 = vld [vmem:[%s327 + $0x18] sm:$0xff]
      %v338 = vld [vmem:[%s327 + $0x20] sm:$0xff]
      %v339 = vld [vmem:[%s327 + $0x28] sm:$0xff]
      %v340 = vld [vmem:[%s327 + $0x30] sm:$0xff]
      %v341 = vld [vmem:[%s327 + $0x38] sm:$0xff]
      %v342 = vld [vmem:[%s327 + $0x40] sm:$0xff]
      %v343 = vld [vmem:[%s327 + $0x48] sm:$0xff]
      %v344 = vld [vmem:[%s327 + $0x50] sm:$0xff]
      %v345 = vld [vmem:[%s327 + $0x58] sm:$0xff]
      %v346 = vld [vmem:[%s327 + $0x60] sm:$0xff]
      %v347 = vld [vmem:[%s327 + $0x68] sm:$0xff]
      %v348 = vld [vmem:[%s327 + $0x70] sm:$0xff]
      %v349 = vld [vmem:[%s327 + $0x78] sm:$0xff]
      %v350 = vld [vmem:[%s327 + $0x80] sm:$0xff]
      %v351 = vld [vmem:[%s327 + $0x88] sm:$0xff]
      %v352 = vld [vmem:[%s1] sm:$0xff]
      %v353 = vld [vmem:[%s1 + $0x8] sm:$0xff]
      %v354 = vld [vmem:[%s2] sm:$0xff]
      %v355 = vld [vmem:[%s2 + $0x8] sm:$0xff]
      %357 = vset.pattern.permute.xlu0 0
      %358 = vperm.xlu0 %357, %v354
      %v359 = vpop.permute.xlu0 %358
      %362 = vset.pattern.permute.xlu0 0
      %363 = vperm.xlu0 %362, %v355
      %v364 = vpop.permute.xlu0 %363
      %v368 = vunpack.c.l.b16 %v352
      %v369 = vunpack.c.h.b16 %v352
      %v370 = vunpack.c.l.b16 %v353
      %v371 = vunpack.c.h.b16 %v353
      %v372 = vpack.c.b16 %v370, %v368
      %v373 = vpack.c.b16 %v371, %v369
      %v393 = vunpack.c.l.b16 %v334
      %v394 = vunpack.c.h.b16 %v334
      %v395 = vunpack.c.l.b16 %v335
      %v396 = vunpack.c.h.b16 %v335
      %v397 = vunpack.c.l.b16 %v336
      %v398 = vunpack.c.h.b16 %v336
      %v399 = vunpack.c.l.b16 %v337
      %v400 = vunpack.c.h.b16 %v337
      %v401 = vunpack.c.l.b16 %v338
      %v402 = vunpack.c.h.b16 %v338
      %v403 = vunpack.c.l.b16 %v339
      %v404 = vunpack.c.h.b16 %v339
      %v405 = vunpack.c.l.b16 %v340
      %v406 = vunpack.c.h.b16 %v340
      %v407 = vunpack.c.l.b16 %v341
      %v408 = vunpack.c.h.b16 %v341
      %v409 = vunpack.c.l.b16 %v342
      %v410 = vunpack.c.h.b16 %v342
      %v411 = vunpack.c.l.b16 %v343
      %v412 = vunpack.c.h.b16 %v343
      %v413 = vunpack.c.l.b16 %v344
      %v414 = vunpack.c.h.b16 %v344
      %v415 = vunpack.c.l.b16 %v345
      %v416 = vunpack.c.h.b16 %v345
      %v417 = vunpack.c.l.b16 %v346
      %v418 = vunpack.c.h.b16 %v346
      %v419 = vunpack.c.l.b16 %v347
      %v420 = vunpack.c.h.b16 %v347
      %v421 = vunpack.c.l.b16 %v348
      %v422 = vunpack.c.h.b16 %v348
      %v423 = vunpack.c.l.b16 %v349
      %v424 = vunpack.c.h.b16 %v349
      %v425 = vunpack.c.l.b16 %v350
      %v426 = vunpack.c.h.b16 %v350
      %v427 = vunpack.c.l.b16 %v351
      %v428 = vunpack.c.h.b16 %v351
      %v429 = vpack.c.b16 %v395, %v393
      %v430 = vpack.c.b16 %v396, %v394
      %v431 = vpack.c.b16 %v399, %v397
      %v432 = vpack.c.b16 %v400, %v398
      %v433 = vpack.c.b16 %v403, %v401
      %v434 = vpack.c.b16 %v404, %v402
      %v435 = vpack.c.b16 %v407, %v405
      %v436 = vpack.c.b16 %v408, %v406
      %v437 = vpack.c.b16 %v411, %v409
      %v438 = vpack.c.b16 %v412, %v410
      %v439 = vpack.c.b16 %v415, %v413
      %v440 = vpack.c.b16 %v416, %v414
      %v441 = vpack.c.b16 %v419, %v417
      %v442 = vpack.c.b16 %v420, %v418
      %v443 = vpack.c.b16 %v423, %v421
      %v444 = vpack.c.b16 %v424, %v422
      %v445 = vpack.c.b16 %v427, %v425
      %v446 = vpack.c.b16 %v428, %v426
      %vm465 = vcmask 130048
      %v467 = vsel %vm465, %v373, 0
      %469 = vmatpush.bf16.msra.mxu0 %v443
      %470 = vmatpush.bf16.msra.mxu0 %v441
      %471 = vmatpush.bf16.msra.mxu0 %v439
      %472 = vmatpush.bf16.msra.mxu0 %v437
      %473 = vmatpush.bf16.msra.mxu0 %v435
      %474 = vmatpush.bf16.msra.mxu0 %v433
      %475 = vmatpush.bf16.msra.mxu0 %v431
      %476 = vmatpush.bf16.msra.mxu0 %v429
      %477 = vmatmul.bf16.gmra.mxu0 %v372
      %v478 = vpop.f32.mrf.mxu0
      %v479 = vadd.f32 %v359, %v478
      %v480 = vpop.f32.mrf.mxu0
      %v481 = vadd.f32 %v364, %v480
      %482 = vdwg.mxu0
      %483 = vmatpush.bf16.msra.mxu0 0
      %484 = vmatpush.bf16.msra.mxu0 0
      %485 = vmatpush.bf16.msra.mxu0 0
      %486 = vmatpush.bf16.msra.mxu0 0
      %487 = vmatpush.bf16.msra.mxu0 0
      %488 = vmatpush.bf16.msra.mxu0 0
      %489 = vmatpush.bf16.msra.mxu0 0
      %490 = vmatpush.bf16.msra.mxu0 %v445
      %491 = vmatmul.bf16.gmra.mxu0 %v467
      %v492 = vpop.f32.mrf.mxu0
      %v493 = vadd.f32 %v479, %v492
      %v494 = vpop.f32.mrf.mxu0
      %v495 = vadd.f32 %v481, %v494
      %496 = vdwg.mxu0
      %497 = vmatpush.bf16.msra.mxu0 %v444
      %498 = vmatpush.bf16.msra.mxu0 %v442
      %499 = vmatpush.bf16.msra.mxu0 %v440
      %500 = vmatpush.bf16.msra.mxu0 %v438
      %501 = vmatpush.bf16.msra.mxu0 %v436
      %502 = vmatpush.bf16.msra.mxu0 %v434
      %503 = vmatpush.bf16.msra.mxu0 %v432
      %504 = vmatpush.bf16.msra.mxu0 %v430
      %505 = vmatmul.bf16.gmra.mxu0 %v372
      %v506 = vpop.f32.mrf.mxu0
      %v507 = vadd.f32 %v359, %v506
      %v508 = vpop.f32.mrf.mxu0
      %v509 = vadd.f32 %v364, %v508
      %510 = vdwg.mxu0
      %511 = vmatpush.bf16.msra.mxu0 0
      %512 = vmatpush.bf16.msra.mxu0 0
      %513 = vmatpush.bf16.msra.mxu0 0
      %514 = vmatpush.bf16.msra.mxu0 0
      %515 = vmatpush.bf16.msra.mxu0 0
      %516 = vmatpush.bf16.msra.mxu0 0
      %517 = vmatpush.bf16.msra.mxu0 0
      %518 = vmatpush.bf16.msra.mxu0 %v446
      %519 = vmatmul.bf16.gmra.mxu0 %v467
      %v520 = vpop.f32.mrf.mxu0
      %v521 = vadd.f32 %v507, %v520
      %v522 = vpop.f32.mrf.mxu0
      %v523 = vadd.f32 %v509, %v522
      %524 = vdwg.mxu0
      %v525 = vmax.f32 %v493, 0.0
      %v526 = vmax.f32 %v521, 0.0
      %v527 = vmax.f32 %v495, 0.0
      %v528 = vmax.f32 %v523, 0.0
      %v529 = vpack.c.bf16 %v527, %v525
      %v530 = vpack.c.bf16 %v528, %v526
      %v531 = vld [vmem:[%s5] sm:$0xff]
      %v532 = vld [vmem:[%s5 + $0x8] sm:$0xff]
      %v533 = vld [vmem:[%s5 + $0x10] sm:$0xff]
      %v534 = vld [vmem:[%s5 + $0x18] sm:$0xff]
      %v535 = vld [vmem:[%s5 + $0x20] sm:$0xff]
      %v536 = vld [vmem:[%s5 + $0x28] sm:$0xff]
      %v537 = vld [vmem:[%s5 + $0x30] sm:$0xff]
      %v538 = vld [vmem:[%s5 + $0x38] sm:$0xff]
      %v539 = vld [vmem:[%s5 + $0x40] sm:$0xff]
      %v540 = vld [vmem:[%s5 + $0x48] sm:$0xff]
      %v541 = vld [vmem:[%s5 + $0x50] sm:$0xff]
      %v542 = vld [vmem:[%s5 + $0x58] sm:$0xff]
      %v543 = vld [vmem:[%s5 + $0x60] sm:$0xff]
      %v544 = vld [vmem:[%s5 + $0x68] sm:$0xff]
      %v545 = vld [vmem:[%s5 + $0x70] sm:$0xff]
      %v546 = vld [vmem:[%s5 + $0x78] sm:$0xff]
      %v547 = vld [vmem:[%s5 + $0x80] sm:$0xff]
      %v548 = vld [vmem:[%s5 + $0x88] sm:$0xff]
      %v549 = vld [vmem:[%s5 + $0x90] sm:$0xff]
      %v550 = vld [vmem:[%s5 + $0x98] sm:$0xff]
      %v551 = vld [vmem:[%s5 + $0xa0] sm:$0xff]
      %v552 = vld [vmem:[%s5 + $0xa8] sm:$0xff]
      %v553 = vld [vmem:[%s5 + $0xb0] sm:$0xff]
      %v554 = vld [vmem:[%s5 + $0xb8] sm:$0xff]
      %v555 = vld [vmem:[%s5 + $0xc0] sm:$0xff]
      %v556 = vld [vmem:[%s5 + $0xc8] sm:$0xff]
      %v557 = vld [vmem:[%s5 + $0xd0] sm:$0xff]
      %v558 = vld [vmem:[%s5 + $0xd8] sm:$0xff]
      %v559 = vld [vmem:[%s5 + $0xe0] sm:$0xff]
      %v560 = vld [vmem:[%s5 + $0xe8] sm:$0xff]
      %v561 = vld [vmem:[%s5 + $0xf0] sm:$0xff]
      %v562 = vld [vmem:[%s5 + $0xf8] sm:$0xff]
      %v563 = vld [vmem:[%s5 + $0x100] sm:$0xff]
      %v564 = vld [vmem:[%s5 + $0x108] sm:$0xff]
      %v565 = vld [vmem:[%s5 + $0x110] sm:$0xff]
      %v566 = vld [vmem:[%s5 + $0x118] sm:$0xff]
      %v567 = vld [vmem:[%s5 + $0x120] sm:$0xff]
      %v568 = vld [vmem:[%s5 + $0x128] sm:$0xff]
      %v569 = vld [vmem:[%s5 + $0x130] sm:$0xff]
      %v570 = vld [vmem:[%s5 + $0x138] sm:$0xff]
      %v571 = vld [vmem:[%s5 + $0x140] sm:$0xff]
      %v572 = vld [vmem:[%s5 + $0x148] sm:$0xff]
      %v573 = vld [vmem:[%s5 + $0x150] sm:$0xff]
      %v574 = vld [vmem:[%s5 + $0x158] sm:$0xff]
      %v575 = vld [vmem:[%s5 + $0x160] sm:$0xff]
      %v576 = vld [vmem:[%s5 + $0x168] sm:$0xff]
      %v577 = vld [vmem:[%s5 + $0x170] sm:$0xff]
      %v578 = vld [vmem:[%s5 + $0x178] sm:$0xff]
      %v579 = vld [vmem:[%s5 + $0x180] sm:$0xff]
      %v580 = vld [vmem:[%s5 + $0x188] sm:$0xff]
      %v581 = vld [vmem:[%s5 + $0x190] sm:$0xff]
      %v582 = vld [vmem:[%s5 + $0x198] sm:$0xff]
      %v583 = vld [vmem:[%s5 + $0x1a0] sm:$0xff]
      %v584 = vld [vmem:[%s5 + $0x1a8] sm:$0xff]
      %v585 = vld [vmem:[%s5 + $0x1b0] sm:$0xff]
      %v586 = vld [vmem:[%s5 + $0x1b8] sm:$0xff]
      %v587 = vld [vmem:[%s5 + $0x1c0] sm:$0xff]
      %v588 = vld [vmem:[%s5 + $0x1c8] sm:$0xff]
      %v589 = vld [vmem:[%s5 + $0x1d0] sm:$0xff]
      %v590 = vld [vmem:[%s5 + $0x1d8] sm:$0xff]
      %v591 = vld [vmem:[%s5 + $0x1e0] sm:$0xff]
      %v592 = vld [vmem:[%s5 + $0x1e8] sm:$0xff]
      %v593 = vld [vmem:[%s5 + $0x1f0] sm:$0xff]
      %v594 = vld [vmem:[%s5 + $0x1f8] sm:$0xff]
      %v595 = vld [vmem:[%s5 + $0x200] sm:$0xff]
      %v596 = vld [vmem:[%s5 + $0x208] sm:$0xff]
      %v597 = vld [vmem:[%s5 + $0x210] sm:$0xff]
      %v598 = vld [vmem:[%s5 + $0x218] sm:$0xff]
      %v599 = vld [vmem:[%s5 + $0x220] sm:$0xff]
      %v600 = vld [vmem:[%s5 + $0x228] sm:$0xff]
      %v601 = vld [vmem:[%s5 + $0x230] sm:$0xff]
      %v602 = vld [vmem:[%s5 + $0x238] sm:$0xff]
      %v603 = vld [vmem:[%s5 + $0x240] sm:$0xff]
      %v604 = vld [vmem:[%s5 + $0x248] sm:$0xff]
      %v605 = vld [vmem:[%s5 + $0x250] sm:$0xff]
      %v606 = vld [vmem:[%s5 + $0x258] sm:$0xff]
      %v607 = vld [vmem:[%s5 + $0x260] sm:$0xff]
      %v608 = vld [vmem:[%s5 + $0x268] sm:$0xff]
      %v609 = vld [vmem:[%s5 + $0x270] sm:$0xff]
      %v610 = vld [vmem:[%s5 + $0x278] sm:$0xff]
      %v611 = vld [vmem:[%s5 + $0x280] sm:$0xff]
      %v612 = vld [vmem:[%s5 + $0x288] sm:$0xff]
      %v613 = vld [vmem:[%s5 + $0x290] sm:$0xff]
      %v614 = vld [vmem:[%s5 + $0x298] sm:$0xff]
      %v615 = vld [vmem:[%s5 + $0x2a0] sm:$0xff]
      %v616 = vld [vmem:[%s5 + $0x2a8] sm:$0xff]
      %v617 = vld [vmem:[%s5 + $0x2b0] sm:$0xff]
      %v618 = vld [vmem:[%s5 + $0x2b8] sm:$0xff]
      %v619 = vld [vmem:[%s5 + $0x2c0] sm:$0xff]
      %v620 = vld [vmem:[%s5 + $0x2c8] sm:$0xff]
      %v621 = vld [vmem:[%s5 + $0x2d0] sm:$0xff]
      %v622 = vld [vmem:[%s5 + $0x2d8] sm:$0xff]
      %v623 = vld [vmem:[%s5 + $0x2e0] sm:$0xff]
      %v624 = vld [vmem:[%s5 + $0x2e8] sm:$0xff]
      %v625 = vld [vmem:[%s5 + $0x2f0] sm:$0xff]
      %v626 = vld [vmem:[%s5 + $0x2f8] sm:$0xff]
      %v627 = vld [vmem:[%s5 + $0x300] sm:$0xff]
      %v628 = vld [vmem:[%s5 + $0x308] sm:$0xff]
      %v629 = vld [vmem:[%s5 + $0x310] sm:$0xff]
      %v630 = vld [vmem:[%s5 + $0x318] sm:$0xff]
      %v631 = vld [vmem:[%s5 + $0x320] sm:$0xff]
      %v632 = vld [vmem:[%s5 + $0x328] sm:$0xff]
      %v633 = vld [vmem:[%s5 + $0x330] sm:$0xff]
      %v634 = vld [vmem:[%s5 + $0x338] sm:$0xff]
      %v635 = vld [vmem:[%s5 + $0x340] sm:$0xff]
      %v636 = vld [vmem:[%s5 + $0x348] sm:$0xff]
      %v637 = vld [vmem:[%s5 + $0x350] sm:$0xff]
      %v638 = vld [vmem:[%s5 + $0x358] sm:$0xff]
      %v639 = vld [vmem:[%s5 + $0x360] sm:$0xff]
      %v640 = vld [vmem:[%s5 + $0x368] sm:$0xff]
      %v641 = vld [vmem:[%s5 + $0x370] sm:$0xff]
      %v642 = vld [vmem:[%s5 + $0x378] sm:$0xff]
      %v643 = vld [vmem:[%s5 + $0x380] sm:$0xff]
      %v644 = vld [vmem:[%s5 + $0x388] sm:$0xff]
      %v645 = vld [vmem:[%s5 + $0x390] sm:$0xff]
      %v646 = vld [vmem:[%s5 + $0x398] sm:$0xff]
      %v647 = vld [vmem:[%s5 + $0x3a0] sm:$0xff]
      %v648 = vld [vmem:[%s5 + $0x3a8] sm:$0xff]
      %v649 = vld [vmem:[%s5 + $0x3b0] sm:$0xff]
      %v650 = vld [vmem:[%s5 + $0x3b8] sm:$0xff]
      %v651 = vld [vmem:[%s5 + $0x3c0] sm:$0xff]
      %v652 = vld [vmem:[%s5 + $0x3c8] sm:$0xff]
      %v653 = vld [vmem:[%s5 + $0x3d0] sm:$0xff]
      %v654 = vld [vmem:[%s5 + $0x3d8] sm:$0xff]
      %v655 = vld [vmem:[%s5 + $0x3e0] sm:$0xff]
      %v656 = vld [vmem:[%s5 + $0x3e8] sm:$0xff]
      %v657 = vld [vmem:[%s5 + $0x3f0] sm:$0xff]
      %v658 = vld [vmem:[%s5 + $0x3f8] sm:$0xff]
      %v659 = vld [vmem:[%s5 + $0x400] sm:$0xff]
      %v660 = vld [vmem:[%s5 + $0x408] sm:$0xff]
      %v661 = vld [vmem:[%s5 + $0x410] sm:$0xff]
      %v662 = vld [vmem:[%s5 + $0x418] sm:$0xff]
      %v663 = vld [vmem:[%s5 + $0x420] sm:$0xff]
      %v664 = vld [vmem:[%s5 + $0x428] sm:$0xff]
      %v665 = vld [vmem:[%s5 + $0x430] sm:$0xff]
      %v666 = vld [vmem:[%s5 + $0x438] sm:$0xff]
      %v667 = vld [vmem:[%s5 + $0x440] sm:$0xff]
      %v668 = vld [vmem:[%s5 + $0x448] sm:$0xff]
      %v669 = vld [vmem:[%s5 + $0x450] sm:$0xff]
      %v670 = vld [vmem:[%s5 + $0x458] sm:$0xff]
      %v671 = vld [vmem:[%s5 + $0x460] sm:$0xff]
      %v672 = vld [vmem:[%s5 + $0x468] sm:$0xff]
      %v673 = vld [vmem:[%s5 + $0x470] sm:$0xff]
      %v674 = vld [vmem:[%s5 + $0x478] sm:$0xff]
      %v675 = vld [vmem:[%s5 + $0x480] sm:$0xff]
      %v676 = vld [vmem:[%s5 + $0x488] sm:$0xff]
      %v677 = vld [vmem:[%s5 + $0x490] sm:$0xff]
      %v678 = vld [vmem:[%s5 + $0x498] sm:$0xff]
      %v679 = vld [vmem:[%s5 + $0x4a0] sm:$0xff]
      %v680 = vld [vmem:[%s5 + $0x4a8] sm:$0xff]
      %v681 = vld [vmem:[%s5 + $0x4b0] sm:$0xff]
      %v682 = vld [vmem:[%s5 + $0x4b8] sm:$0xff]
      %v683 = vld [vmem:[%s5 + $0x4c0] sm:$0xff]
      %v684 = vld [vmem:[%s5 + $0x4c8] sm:$0xff]
      %v685 = vld [vmem:[%s5 + $0x4d0] sm:$0xff]
      %v686 = vld [vmem:[%s5 + $0x4d8] sm:$0xff]
      %v687 = vld [vmem:[%s5 + $0x4e0] sm:$0xff]
      %v688 = vld [vmem:[%s5 + $0x4e8] sm:$0xff]
      %v689 = vld [vmem:[%s5 + $0x4f0] sm:$0xff]
      %v690 = vld [vmem:[%s5 + $0x4f8] sm:$0xff]
      %v851 = vunpack.c.l.b16 %v531
      %v852 = vunpack.c.h.b16 %v531
      %v853 = vunpack.c.l.b16 %v532
      %v854 = vunpack.c.h.b16 %v532
      %v855 = vunpack.c.l.b16 %v533
      %v856 = vunpack.c.h.b16 %v533
      %v857 = vunpack.c.l.b16 %v534
      %v858 = vunpack.c.h.b16 %v534
      %v859 = vunpack.c.l.b16 %v535
      %v860 = vunpack.c.h.b16 %v535
      %v861 = vunpack.c.l.b16 %v536
      %v862 = vunpack.c.h.b16 %v536
      %v863 = vunpack.c.l.b16 %v537
      %v864 = vunpack.c.h.b16 %v537
      %v865 = vunpack.c.l.b16 %v538
      %v866 = vunpack.c.h.b16 %v538
      %v867 = vunpack.c.l.b16 %v539
      %v868 = vunpack.c.h.b16 %v539
      %v869 = vunpack.c.l.b16 %v540
      %v870 = vunpack.c.h.b16 %v540
      %v871 = vunpack.c.l.b16 %v541
      %v872 = vunpack.c.h.b16 %v541
      %v873 = vunpack.c.l.b16 %v542
      %v874 = vunpack.c.h.b16 %v542
      %v875 = vunpack.c.l.b16 %v543
      %v876 = vunpack.c.h.b16 %v543
      %v877 = vunpack.c.l.b16 %v544
      %v878 = vunpack.c.h.b16 %v544
      %v879 = vunpack.c.l.b16 %v545
      %v880 = vunpack.c.h.b16 %v545
      %v881 = vunpack.c.l.b16 %v546
      %v882 = vunpack.c.h.b16 %v546
      %v883 = vunpack.c.l.b16 %v547
      %v884 = vunpack.c.h.b16 %v547
      %v885 = vunpack.c.l.b16 %v548
      %v886 = vunpack.c.h.b16 %v548
      %v887 = vunpack.c.l.b16 %v549
      %v888 = vunpack.c.h.b16 %v549
      %v889 = vunpack.c.l.b16 %v550
      %v890 = vunpack.c.h.b16 %v550
      %v891 = vunpack.c.l.b16 %v551
      %v892 = vunpack.c.h.b16 %v551
      %v893 = vunpack.c.l.b16 %v552
      %v894 = vunpack.c.h.b16 %v552
      %v895 = vunpack.c.l.b16 %v553
      %v896 = vunpack.c.h.b16 %v553
      %v897 = vunpack.c.l.b16 %v554
      %v898 = vunpack.c.h.b16 %v554
      %v899 = vunpack.c.l.b16 %v555
      %v900 = vunpack.c.h.b16 %v555
      %v901 = vunpack.c.l.b16 %v556
      %v902 = vunpack.c.h.b16 %v556
      %v903 = vunpack.c.l.b16 %v557
      %v904 = vunpack.c.h.b16 %v557
      %v905 = vunpack.c.l.b16 %v558
      %v906 = vunpack.c.h.b16 %v558
      %v907 = vunpack.c.l.b16 %v559
      %v908 = vunpack.c.h.b16 %v559
      %v909 = vunpack.c.l.b16 %v560
      %v910 = vunpack.c.h.b16 %v560
      %v911 = vunpack.c.l.b16 %v561
      %v912 = vunpack.c.h.b16 %v561
      %v913 = vunpack.c.l.b16 %v562
      %v914 = vunpack.c.h.b16 %v562
      %v915 = vunpack.c.l.b16 %v563
      %v916 = vunpack.c.h.b16 %v563
      %v917 = vunpack.c.l.b16 %v564
      %v918 = vunpack.c.h.b16 %v564
      %v919 = vunpack.c.l.b16 %v565
      %v920 = vunpack.c.h.b16 %v565
      %v921 = vunpack.c.l.b16 %v566
      %v922 = vunpack.c.h.b16 %v566
      %v923 = vunpack.c.l.b16 %v567
      %v924 = vunpack.c.h.b16 %v567
      %v925 = vunpack.c.l.b16 %v568
      %v926 = vunpack.c.h.b16 %v568
      %v927 = vunpack.c.l.b16 %v569
      %v928 = vunpack.c.h.b16 %v569
      %v929 = vunpack.c.l.b16 %v570
      %v930 = vunpack.c.h.b16 %v570
      %v931 = vunpack.c.l.b16 %v571
      %v932 = vunpack.c.h.b16 %v571
      %v933 = vunpack.c.l.b16 %v572
      %v934 = vunpack.c.h.b16 %v572
      %v935 = vunpack.c.l.b16 %v573
      %v936 = vunpack.c.h.b16 %v573
      %v937 = vunpack.c.l.b16 %v574
      %v938 = vunpack.c.h.b16 %v574
      %v939 = vunpack.c.l.b16 %v575
      %v940 = vunpack.c.h.b16 %v575
      %v941 = vunpack.c.l.b16 %v576
      %v942 = vunpack.c.h.b16 %v576
      %v943 = vunpack.c.l.b16 %v577
      %v944 = vunpack.c.h.b16 %v577
      %v945 = vunpack.c.l.b16 %v578
      %v946 = vunpack.c.h.b16 %v578
      %v947 = vunpack.c.l.b16 %v579
      %v948 = vunpack.c.h.b16 %v579
      %v949 = vunpack.c.l.b16 %v580
      %v950 = vunpack.c.h.b16 %v580
      %v951 = vunpack.c.l.b16 %v581
      %v952 = vunpack.c.h.b16 %v581
      %v953 = vunpack.c.l.b16 %v582
      %v954 = vunpack.c.h.b16 %v582
      %v955 = vunpack.c.l.b16 %v583
      %v956 = vunpack.c.h.b16 %v583
      %v957 = vunpack.c.l.b16 %v584
      %v958 = vunpack.c.h.b16 %v584
      %v959 = vunpack.c.l.b16 %v585
      %v960 = vunpack.c.h.b16 %v585
      %v961 = vunpack.c.l.b16 %v586
      %v962 = vunpack.c.h.b16 %v586
      %v963 = vunpack.c.l.b16 %v587
      %v964 = vunpack.c.h.b16 %v587
      %v965 = vunpack.c.l.b16 %v588
      %v966 = vunpack.c.h.b16 %v588
      %v967 = vunpack.c.l.b16 %v589
      %v968 = vunpack.c.h.b16 %v589
      %v969 = vunpack.c.l.b16 %v590
      %v970 = vunpack.c.h.b16 %v590
      %v971 = vunpack.c.l.b16 %v591
      %v972 = vunpack.c.h.b16 %v591
      %v973 = vunpack.c.l.b16 %v592
      %v974 = vunpack.c.h.b16 %v592
      %v975 = vunpack.c.l.b16 %v593
      %v976 = vunpack.c.h.b16 %v593
      %v977 = vunpack.c.l.b16 %v594
      %v978 = vunpack.c.h.b16 %v594
      %v979 = vunpack.c.l.b16 %v595
      %v980 = vunpack.c.h.b16 %v595
      %v981 = vunpack.c.l.b16 %v596
      %v982 = vunpack.c.h.b16 %v596
      %v983 = vunpack.c.l.b16 %v597
      %v984 = vunpack.c.h.b16 %v597
      %v985 = vunpack.c.l.b16 %v598
      %v986 = vunpack.c.h.b16 %v598
      %v987 = vunpack.c.l.b16 %v599
      %v988 = vunpack.c.h.b16 %v599
      %v989 = vunpack.c.l.b16 %v600
      %v990 = vunpack.c.h.b16 %v600
      %v991 = vunpack.c.l.b16 %v601
      %v992 = vunpack.c.h.b16 %v601
      %v993 = vunpack.c.l.b16 %v602
      %v994 = vunpack.c.h.b16 %v602
      %v995 = vunpack.c.l.b16 %v603
      %v996 = vunpack.c.h.b16 %v603
      %v997 = vunpack.c.l.b16 %v604
      %v998 = vunpack.c.h.b16 %v604
      %v999 = vunpack.c.l.b16 %v605
      %v1000 = vunpack.c.h.b16 %v605
      %v1001 = vunpack.c.l.b16 %v606
      %v1002 = vunpack.c.h.b16 %v606
      %v1003 = vunpack.c.l.b16 %v607
      %v1004 = vunpack.c.h.b16 %v607
      %v1005 = vunpack.c.l.b16 %v608
      %v1006 = vunpack.c.h.b16 %v608
      %v1007 = vunpack.c.l.b16 %v609
      %v1008 = vunpack.c.h.b16 %v609
      %v1009 = vunpack.c.l.b16 %v610
      %v1010 = vunpack.c.h.b16 %v610
      %v1011 = vunpack.c.l.b16 %v611
      %v1012 = vunpack.c.h.b16 %v611
      %v1013 = vunpack.c.l.b16 %v612
      %v1014 = vunpack.c.h.b16 %v612
      %v1015 = vunpack.c.l.b16 %v613
      %v1016 = vunpack.c.h.b16 %v613
      %v1017 = vunpack.c.l.b16 %v614
      %v1018 = vunpack.c.h.b16 %v614
      %v1019 = vunpack.c.l.b16 %v615
      %v1020 = vunpack.c.h.b16 %v615
      %v1021 = vunpack.c.l.b16 %v616
      %v1022 = vunpack.c.h.b16 %v616
      %v1023 = vunpack.c.l.b16 %v617
      %v1024 = vunpack.c.h.b16 %v617
      %v1025 = vunpack.c.l.b16 %v618
      %v1026 = vunpack.c.h.b16 %v618
      %v1027 = vunpack.c.l.b16 %v619
      %v1028 = vunpack.c.h.b16 %v619
      %v1029 = vunpack.c.l.b16 %v620
      %v1030 = vunpack.c.h.b16 %v620
      %v1031 = vunpack.c.l.b16 %v621
      %v1032 = vunpack.c.h.b16 %v621
      %v1033 = vunpack.c.l.b16 %v622
      %v1034 = vunpack.c.h.b16 %v622
      %v1035 = vunpack.c.l.b16 %v623
      %v1036 = vunpack.c.h.b16 %v623
      %v1037 = vunpack.c.l.b16 %v624
      %v1038 = vunpack.c.h.b16 %v624
      %v1039 = vunpack.c.l.b16 %v625
      %v1040 = vunpack.c.h.b16 %v625
      %v1041 = vunpack.c.l.b16 %v626
      %v1042 = vunpack.c.h.b16 %v626
      %v1043 = vunpack.c.l.b16 %v627
      %v1044 = vunpack.c.h.b16 %v627
      %v1045 = vunpack.c.l.b16 %v628
      %v1046 = vunpack.c.h.b16 %v628
      %v1047 = vunpack.c.l.b16 %v629
      %v1048 = vunpack.c.h.b16 %v629
      %v1049 = vunpack.c.l.b16 %v630
      %v1050 = vunpack.c.h.b16 %v630
      %v1051 = vunpack.c.l.b16 %v631
      %v1052 = vunpack.c.h.b16 %v631
      %v1053 = vunpack.c.l.b16 %v632
      %v1054 = vunpack.c.h.b16 %v632
      %v1055 = vunpack.c.l.b16 %v633
      %v1056 = vunpack.c.h.b16 %v633
      %v1057 = vunpack.c.l.b16 %v634
      %v1058 = vunpack.c.h.b16 %v634
      %v1059 = vunpack.c.l.b16 %v635
      %v1060 = vunpack.c.h.b16 %v635
      %v1061 = vunpack.c.l.b16 %v636
      %v1062 = vunpack.c.h.b16 %v636
      %v1063 = vunpack.c.l.b16 %v637
      %v1064 = vunpack.c.h.b16 %v637
      %v1065 = vunpack.c.l.b16 %v638
      %v1066 = vunpack.c.h.b16 %v638
      %v1067 = vunpack.c.l.b16 %v639
      %v1068 = vunpack.c.h.b16 %v639
      %v1069 = vunpack.c.l.b16 %v640
      %v1070 = vunpack.c.h.b16 %v640
      %v1071 = vunpack.c.l.b16 %v641
      %v1072 = vunpack.c.h.b16 %v641
      %v1073 = vunpack.c.l.b16 %v642
      %v1074 = vunpack.c.h.b16 %v642
      %v1075 = vunpack.c.l.b16 %v643
      %v1076 = vunpack.c.h.b16 %v643
      %v1077 = vunpack.c.l.b16 %v644
      %v1078 = vunpack.c.h.b16 %v644
      %v1079 = vunpack.c.l.b16 %v645
      %v1080 = vunpack.c.h.b16 %v645
      %v1081 = vunpack.c.l.b16 %v646
      %v1082 = vunpack.c.h.b16 %v646
      %v1083 = vunpack.c.l.b16 %v647
      %v1084 = vunpack.c.h.b16 %v647
      %v1085 = vunpack.c.l.b16 %v648
      %v1086 = vunpack.c.h.b16 %v648
      %v1087 = vunpack.c.l.b16 %v649
      %v1088 = vunpack.c.h.b16 %v649
      %v1089 = vunpack.c.l.b16 %v650
      %v1090 = vunpack.c.h.b16 %v650
      %v1091 = vunpack.c.l.b16 %v651
      %v1092 = vunpack.c.h.b16 %v651
      %v1093 = vunpack.c.l.b16 %v652
      %v1094 = vunpack.c.h.b16 %v652
      %v1095 = vunpack.c.l.b16 %v653
      %v1096 = vunpack.c.h.b16 %v653
      %v1097 = vunpack.c.l.b16 %v654
      %v1098 = vunpack.c.h.b16 %v654
      %v1099 = vunpack.c.l.b16 %v655
      %v1100 = vunpack.c.h.b16 %v655
      %v1101 = vunpack.c.l.b16 %v656
      %v1102 = vunpack.c.h.b16 %v656
      %v1103 = vunpack.c.l.b16 %v657
      %v1104 = vunpack.c.h.b16 %v657
      %v1105 = vunpack.c.l.b16 %v658
      %v1106 = vunpack.c.h.b16 %v658
      %v1107 = vunpack.c.l.b16 %v659
      %v1108 = vunpack.c.h.b16 %v659
      %v1109 = vunpack.c.l.b16 %v660
      %v1110 = vunpack.c.h.b16 %v660
      %v1111 = vunpack.c.l.b16 %v661
      %v1112 = vunpack.c.h.b16 %v661
      %v1113 = vunpack.c.l.b16 %v662
      %v1114 = vunpack.c.h.b16 %v662
      %v1115 = vunpack.c.l.b16 %v663
      %v1116 = vunpack.c.h.b16 %v663
      %v1117 = vunpack.c.l.b16 %v664
      %v1118 = vunpack.c.h.b16 %v664
      %v1119 = vunpack.c.l.b16 %v665
      %v1120 = vunpack.c.h.b16 %v665
      %v1121 = vunpack.c.l.b16 %v666
      %v1122 = vunpack.c.h.b16 %v666
      %v1123 = vunpack.c.l.b16 %v667
      %v1124 = vunpack.c.h.b16 %v667
      %v1125 = vunpack.c.l.b16 %v668
      %v1126 = vunpack.c.h.b16 %v668
      %v1127 = vunpack.c.l.b16 %v669
      %v1128 = vunpack.c.h.b16 %v669
      %v1129 = vunpack.c.l.b16 %v670
      %v1130 = vunpack.c.h.b16 %v670
      %v1131 = vunpack.c.l.b16 %v671
      %v1132 = vunpack.c.h.b16 %v671
      %v1133 = vunpack.c.l.b16 %v672
      %v1134 = vunpack.c.h.b16 %v672
      %v1135 = vunpack.c.l.b16 %v673
      %v1136 = vunpack.c.h.b16 %v673
      %v1137 = vunpack.c.l.b16 %v674
      %v1138 = vunpack.c.h.b16 %v674
      %v1139 = vunpack.c.l.b16 %v675
      %v1140 = vunpack.c.h.b16 %v675
      %v1141 = vunpack.c.l.b16 %v676
      %v1142 = vunpack.c.h.b16 %v676
      %v1143 = vunpack.c.l.b16 %v677
      %v1144 = vunpack.c.h.b16 %v677
      %v1145 = vunpack.c.l.b16 %v678
      %v1146 = vunpack.c.h.b16 %v678
      %v1147 = vunpack.c.l.b16 %v679
      %v1148 = vunpack.c.h.b16 %v679
      %v1149 = vunpack.c.l.b16 %v680
      %v1150 = vunpack.c.h.b16 %v680
      %v1151 = vunpack.c.l.b16 %v681
      %v1152 = vunpack.c.h.b16 %v681
      %v1153 = vunpack.c.l.b16 %v682
      %v1154 = vunpack.c.h.b16 %v682
      %v1155 = vunpack.c.l.b16 %v683
      %v1156 = vunpack.c.h.b16 %v683
      %v1157 = vunpack.c.l.b16 %v684
      %v1158 = vunpack.c.h.b16 %v684
      %v1159 = vunpack.c.l.b16 %v685
      %v1160 = vunpack.c.h.b16 %v685
      %v1161 = vunpack.c.l.b16 %v686
      %v1162 = vunpack.c.h.b16 %v686
      %v1163 = vunpack.c.l.b16 %v687
      %v1164 = vunpack.c.h.b16 %v687
      %v1165 = vunpack.c.l.b16 %v688
      %v1166 = vunpack.c.h.b16 %v688
      %v1167 = vunpack.c.l.b16 %v689
      %v1168 = vunpack.c.h.b16 %v689
      %v1169 = vunpack.c.l.b16 %v690
      %v1170 = vunpack.c.h.b16 %v690
      %v1171 = vpack.c.b16 %v861, %v851
      %v1172 = vpack.c.b16 %v862, %v852
      %v1173 = vpack.c.b16 %v863, %v853
      %v1174 = vpack.c.b16 %v864, %v854
      %v1175 = vpack.c.b16 %v865, %v855
      %v1176 = vpack.c.b16 %v866, %v856
      %v1177 = vpack.c.b16 %v867, %v857
      %v1178 = vpack.c.b16 %v868, %v858
      %v1179 = vpack.c.b16 %v869, %v859
      %v1180 = vpack.c.b16 %v870, %v860
      %v1181 = vpack.c.b16 %v881, %v871
      %v1182 = vpack.c.b16 %v882, %v872
      %v1183 = vpack.c.b16 %v883, %v873
      %v1184 = vpack.c.b16 %v884, %v874
      %v1185 = vpack.c.b16 %v885, %v875
      %v1186 = vpack.c.b16 %v886, %v876
      %v1187 = vpack.c.b16 %v887, %v877
      %v1188 = vpack.c.b16 %v888, %v878
      %v1189 = vpack.c.b16 %v889, %v879
      %v1190 = vpack.c.b16 %v890, %v880
      %v1191 = vpack.c.b16 %v901, %v891
      %v1192 = vpack.c.b16 %v902, %v892
      %v1193 = vpack.c.b16 %v903, %v893
      %v1194 = vpack.c.b16 %v904, %v894
      %v1195 = vpack.c.b16 %v905, %v895
      %v1196 = vpack.c.b16 %v906, %v896
      %v1197 = vpack.c.b16 %v907, %v897
      %v1198 = vpack.c.b16 %v908, %v898
      %v1199 = vpack.c.b16 %v909, %v899
      %v1200 = vpack.c.b16 %v910, %v900
      %v1201 = vpack.c.b16 %v921, %v911
      %v1202 = vpack.c.b16 %v922, %v912
      %v1203 = vpack.c.b16 %v923, %v913
      %v1204 = vpack.c.b16 %v924, %v914
      %v1205 = vpack.c.b16 %v925, %v915
      %v1206 = vpack.c.b16 %v926, %v916
      %v1207 = vpack.c.b16 %v927, %v917
      %v1208 = vpack.c.b16 %v928, %v918
      %v1209 = vpack.c.b16 %v929, %v919
      %v1210 = vpack.c.b16 %v930, %v920
      %v1211 = vpack.c.b16 %v941, %v931
      %v1212 = vpack.c.b16 %v942, %v932
      %v1213 = vpack.c.b16 %v943, %v933
      %v1214 = vpack.c.b16 %v944, %v934
      %v1215 = vpack.c.b16 %v945, %v935
      %v1216 = vpack.c.b16 %v946, %v936
      %v1217 = vpack.c.b16 %v947, %v937
      %v1218 = vpack.c.b16 %v948, %v938
      %v1219 = vpack.c.b16 %v949, %v939
      %v1220 = vpack.c.b16 %v950, %v940
      %v1221 = vpack.c.b16 %v961, %v951
      %v1222 = vpack.c.b16 %v962, %v952
      %v1223 = vpack.c.b16 %v963, %v953
      %v1224 = vpack.c.b16 %v964, %v954
      %v1225 = vpack.c.b16 %v965, %v955
      %v1226 = vpack.c.b16 %v966, %v956
      %v1227 = vpack.c.b16 %v967, %v957
      %v1228 = vpack.c.b16 %v968, %v958
      %v1229 = vpack.c.b16 %v969, %v959
      %v1230 = vpack.c.b16 %v970, %v960
      %v1231 = vpack.c.b16 %v981, %v971
      %v1232 = vpack.c.b16 %v982, %v972
      %v1233 = vpack.c.b16 %v983, %v973
      %v1234 = vpack.c.b16 %v984, %v974
      %v1235 = vpack.c.b16 %v985, %v975
      %v1236 = vpack.c.b16 %v986, %v976
      %v1237 = vpack.c.b16 %v987, %v977
      %v1238 = vpack.c.b16 %v988, %v978
      %v1239 = vpack.c.b16 %v989, %v979
      %v1240 = vpack.c.b16 %v990, %v980
      %v1241 = vpack.c.b16 %v1001, %v991
      %v1242 = vpack.c.b16 %v1002, %v992
      %v1243 = vpack.c.b16 %v1003, %v993
      %v1244 = vpack.c.b16 %v1004, %v994
      %v1245 = vpack.c.b16 %v1005, %v995
      %v1246 = vpack.c.b16 %v1006, %v996
      %v1247 = vpack.c.b16 %v1007, %v997
      %v1248 = vpack.c.b16 %v1008, %v998
      %v1249 = vpack.c.b16 %v1009, %v999
      %v1250 = vpack.c.b16 %v1010, %v1000
      %v1251 = vpack.c.b16 %v1021, %v1011
      %v1252 = vpack.c.b16 %v1022, %v1012
      %v1253 = vpack.c.b16 %v1023, %v1013
      %v1254 = vpack.c.b16 %v1024, %v1014
      %v1255 = vpack.c.b16 %v1025, %v1015
      %v1256 = vpack.c.b16 %v1026, %v1016
      %v1257 = vpack.c.b16 %v1027, %v1017
      %v1258 = vpack.c.b16 %v1028, %v1018
      %v1259 = vpack.c.b16 %v1029, %v1019
      %v1260 = vpack.c.b16 %v1030, %v1020
      %v1261 = vpack.c.b16 %v1041, %v1031
      %v1262 = vpack.c.b16 %v1042, %v1032
      %v1263 = vpack.c.b16 %v1043, %v1033
      %v1264 = vpack.c.b16 %v1044, %v1034
      %v1265 = vpack.c.b16 %v1045, %v1035
      %v1266 = vpack.c.b16 %v1046, %v1036
      %v1267 = vpack.c.b16 %v1047, %v1037
      %v1268 = vpack.c.b16 %v1048, %v1038
      %v1269 = vpack.c.b16 %v1049, %v1039
      %v1270 = vpack.c.b16 %v1050, %v1040
      %v1271 = vpack.c.b16 %v1061, %v1051
      %v1272 = vpack.c.b16 %v1062, %v1052
      %v1273 = vpack.c.b16 %v1063, %v1053
      %v1274 = vpack.c.b16 %v1064, %v1054
      %v1275 = vpack.c.b16 %v1065, %v1055
      %v1276 = vpack.c.b16 %v1066, %v1056
      %v1277 = vpack.c.b16 %v1067, %v1057
      %v1278 = vpack.c.b16 %v1068, %v1058
      %v1279 = vpack.c.b16 %v1069, %v1059
      %v1280 = vpack.c.b16 %v1070, %v1060
      %v1281 = vpack.c.b16 %v1081, %v1071
      %v1282 = vpack.c.b16 %v1082, %v1072
      %v1283 = vpack.c.b16 %v1083, %v1073
      %v1284 = vpack.c.b16 %v1084, %v1074
      %v1285 = vpack.c.b16 %v1085, %v1075
      %v1286 = vpack.c.b16 %v1086, %v1076
      %v1287 = vpack.c.b16 %v1087, %v1077
      %v1288 = vpack.c.b16 %v1088, %v1078
      %v1289 = vpack.c.b16 %v1089, %v1079
      %v1290 = vpack.c.b16 %v1090, %v1080
      %v1291 = vpack.c.b16 %v1101, %v1091
      %v1292 = vpack.c.b16 %v1102, %v1092
      %v1293 = vpack.c.b16 %v1103, %v1093
      %v1294 = vpack.c.b16 %v1104, %v1094
      %v1295 = vpack.c.b16 %v1105, %v1095
      %v1296 = vpack.c.b16 %v1106, %v1096
      %v1297 = vpack.c.b16 %v1107, %v1097
      %v1298 = vpack.c.b16 %v1108, %v1098
      %v1299 = vpack.c.b16 %v1109, %v1099
      %v1300 = vpack.c.b16 %v1110, %v1100
      %v1301 = vpack.c.b16 %v1121, %v1111
      %v1302 = vpack.c.b16 %v1122, %v1112
      %v1303 = vpack.c.b16 %v1123, %v1113
      %v1304 = vpack.c.b16 %v1124, %v1114
      %v1305 = vpack.c.b16 %v1125, %v1115
      %v1306 = vpack.c.b16 %v1126, %v1116
      %v1307 = vpack.c.b16 %v1127, %v1117
      %v1308 = vpack.c.b16 %v1128, %v1118
      %v1309 = vpack.c.b16 %v1129, %v1119
      %v1310 = vpack.c.b16 %v1130, %v1120
      %v1311 = vpack.c.b16 %v1141, %v1131
      %v1312 = vpack.c.b16 %v1142, %v1132
      %v1313 = vpack.c.b16 %v1143, %v1133
      %v1314 = vpack.c.b16 %v1144, %v1134
      %v1315 = vpack.c.b16 %v1145, %v1135
      %v1316 = vpack.c.b16 %v1146, %v1136
      %v1317 = vpack.c.b16 %v1147, %v1137
      %v1318 = vpack.c.b16 %v1148, %v1138
      %v1319 = vpack.c.b16 %v1149, %v1139
      %v1320 = vpack.c.b16 %v1150, %v1140
      %v1321 = vpack.c.b16 %v1161, %v1151
      %v1322 = vpack.c.b16 %v1162, %v1152
      %v1323 = vpack.c.b16 %v1163, %v1153
      %v1324 = vpack.c.b16 %v1164, %v1154
      %v1325 = vpack.c.b16 %v1165, %v1155
      %v1326 = vpack.c.b16 %v1166, %v1156
      %v1327 = vpack.c.b16 %v1167, %v1157
      %v1328 = vpack.c.b16 %v1168, %v1158
      %v1329 = vpack.c.b16 %v1169, %v1159
      %v1330 = vpack.c.b16 %v1170, %v1160
      %1491 = vmatpush.bf16.msra.mxu0 %v1241
      %1492 = vmatpush.bf16.msra.mxu0 %v1231
      %1493 = vmatpush.bf16.msra.mxu0 %v1221
      %1494 = vmatpush.bf16.msra.mxu0 %v1211
      %1495 = vmatpush.bf16.msra.mxu0 %v1201
      %1496 = vmatpush.bf16.msra.mxu0 %v1191
      %1497 = vmatpush.bf16.msra.mxu0 %v1181
      %1498 = vmatpush.bf16.msra.mxu0 %v1171
      %1499 = vmatmul.bf16.gmra.mxu0 %v529
      %v1500 = vpop.f32.mrf.mxu0
      %v1501 = vadd.f32 0.0, %v1500
      %v1502 = vpop.f32.mrf.mxu0
      %v1503 = vadd.f32 0.0, %v1502
      %1504 = vdwg.mxu0
      %1505 = vmatpush.bf16.msra.mxu0 %v1321
      %1506 = vmatpush.bf16.msra.mxu0 %v1311
      %1507 = vmatpush.bf16.msra.mxu0 %v1301
      %1508 = vmatpush.bf16.msra.mxu0 %v1291
      %1509 = vmatpush.bf16.msra.mxu0 %v1281
      %1510 = vmatpush.bf16.msra.mxu0 %v1271
      %1511 = vmatpush.bf16.msra.mxu0 %v1261
      %1512 = vmatpush.bf16.msra.mxu0 %v1251
      %1513 = vmatmul.bf16.gmra.mxu0 %v530
      %v1514 = vpop.f32.mrf.mxu0
      %v1515 = vadd.f32 %v1501, %v1514
      %v1516 = vpop.f32.mrf.mxu0
      %v1517 = vadd.f32 %v1503, %v1516
      %1518 = vdwg.mxu0
      %1519 = vmatpush.bf16.msra.mxu0 %v1242
      %1520 = vmatpush.bf16.msra.mxu0 %v1232
      %1521 = vmatpush.bf16.msra.mxu0 %v1222
      %1522 = vmatpush.bf16.msra.mxu0 %v1212
      %1523 = vmatpush.bf16.msra.mxu0 %v1202
      %1524 = vmatpush.bf16.msra.mxu0 %v1192
      %1525 = vmatpush.bf16.msra.mxu0 %v1182
      %1526 = vmatpush.bf16.msra.mxu0 %v1172
      %1527 = vmatmul.bf16.gmra.mxu0 %v529
      %v1528 = vpop.f32.mrf.mxu0
      %v1529 = vadd.f32 0.0, %v1528
      %v1530 = vpop.f32.mrf.mxu0
      %v1531 = vadd.f32 0.0, %v1530
      %1532 = vdwg.mxu0
      %1533 = vmatpush.bf16.msra.mxu0 %v1322
      %1534 = vmatpush.bf16.msra.mxu0 %v1312
      %1535 = vmatpush.bf16.msra.mxu0 %v1302
      %1536 = vmatpush.bf16.msra.mxu0 %v1292
      %1537 = vmatpush.bf16.msra.mxu0 %v1282
      %1538 = vmatpush.bf16.msra.mxu0 %v1272
      %1539 = vmatpush.bf16.msra.mxu0 %v1262
      %1540 = vmatpush.bf16.msra.mxu0 %v1252
      %1541 = vmatmul.bf16.gmra.mxu0 %v530
      %v1542 = vpop.f32.mrf.mxu0
      %v1543 = vadd.f32 %v1529, %v1542
      %v1544 = vpop.f32.mrf.mxu0
      %v1545 = vadd.f32 %v1531, %v1544
      %1546 = vdwg.mxu0
      %1547 = vmatpush.bf16.msra.mxu0 %v1243
      %1548 = vmatpush.bf16.msra.mxu0 %v1233
      %1549 = vmatpush.bf16.msra.mxu0 %v1223
      %1550 = vmatpush.bf16.msra.mxu0 %v1213
      %1551 = vmatpush.bf16.msra.mxu0 %v1203
      %1552 = vmatpush.bf16.msra.mxu0 %v1193
      %1553 = vmatpush.bf16.msra.mxu0 %v1183
      %1554 = vmatpush.bf16.msra.mxu0 %v1173
      %1555 = vmatmul.bf16.gmra.mxu0 %v529
      %v1556 = vpop.f32.mrf.mxu0
      %v1557 = vadd.f32 0.0, %v1556
      %v1558 = vpop.f32.mrf.mxu0
      %v1559 = vadd.f32 0.0, %v1558
      %1560 = vdwg.mxu0
      %1561 = vmatpush.bf16.msra.mxu0 %v1323
      %1562 = vmatpush.bf16.msra.mxu0 %v1313
      %1563 = vmatpush.bf16.msra.mxu0 %v1303
      %1564 = vmatpush.bf16.msra.mxu0 %v1293
      %1565 = vmatpush.bf16.msra.mxu0 %v1283
      %1566 = vmatpush.bf16.msra.mxu0 %v1273
      %1567 = vmatpush.bf16.msra.mxu0 %v1263
      %1568 = vmatpush.bf16.msra.mxu0 %v1253
      %1569 = vmatmul.bf16.gmra.mxu0 %v530
      %v1570 = vpop.f32.mrf.mxu0
      %v1571 = vadd.f32 %v1557, %v1570
      %v1572 = vpop.f32.mrf.mxu0
      %v1573 = vadd.f32 %v1559, %v1572
      %1574 = vdwg.mxu0
      %1575 = vmatpush.bf16.msra.mxu0 %v1244
      %1576 = vmatpush.bf16.msra.mxu0 %v1234
      %1577 = vmatpush.bf16.msra.mxu0 %v1224
      %1578 = vmatpush.bf16.msra.mxu0 %v1214
      %1579 = vmatpush.bf16.msra.mxu0 %v1204
      %1580 = vmatpush.bf16.msra.mxu0 %v1194
      %1581 = vmatpush.bf16.msra.mxu0 %v1184
      %1582 = vmatpush.bf16.msra.mxu0 %v1174
      %1583 = vmatmul.bf16.gmra.mxu0 %v529
      %v1584 = vpop.f32.mrf.mxu0
      %v1585 = vadd.f32 0.0, %v1584
      %v1586 = vpop.f32.mrf.mxu0
      %v1587 = vadd.f32 0.0, %v1586
      %1588 = vdwg.mxu0
      %1589 = vmatpush.bf16.msra.mxu0 %v1324
      %1590 = vmatpush.bf16.msra.mxu0 %v1314
      %1591 = vmatpush.bf16.msra.mxu0 %v1304
      %1592 = vmatpush.bf16.msra.mxu0 %v1294
      %1593 = vmatpush.bf16.msra.mxu0 %v1284
      %1594 = vmatpush.bf16.msra.mxu0 %v1274
      %1595 = vmatpush.bf16.msra.mxu0 %v1264
      %1596 = vmatpush.bf16.msra.mxu0 %v1254
      %1597 = vmatmul.bf16.gmra.mxu0 %v530
      %v1598 = vpop.f32.mrf.mxu0
      %v1599 = vadd.f32 %v1585, %v1598
      %v1600 = vpop.f32.mrf.mxu0
      %v1601 = vadd.f32 %v1587, %v1600
      %1602 = vdwg.mxu0
      %1603 = vmatpush.bf16.msra.mxu0 %v1245
      %1604 = vmatpush.bf16.msra.mxu0 %v1235
      %1605 = vmatpush.bf16.msra.mxu0 %v1225
      %1606 = vmatpush.bf16.msra.mxu0 %v1215
      %1607 = vmatpush.bf16.msra.mxu0 %v1205
      %1608 = vmatpush.bf16.msra.mxu0 %v1195
      %1609 = vmatpush.bf16.msra.mxu0 %v1185
      %1610 = vmatpush.bf16.msra.mxu0 %v1175
      %1611 = vmatmul.bf16.gmra.mxu0 %v529
      %v1612 = vpop.f32.mrf.mxu0
      %v1613 = vadd.f32 0.0, %v1612
      %v1614 = vpop.f32.mrf.mxu0
      %v1615 = vadd.f32 0.0, %v1614
      %1616 = vdwg.mxu0
      %1617 = vmatpush.bf16.msra.mxu0 %v1325
      %1618 = vmatpush.bf16.msra.mxu0 %v1315
      %1619 = vmatpush.bf16.msra.mxu0 %v1305
      %1620 = vmatpush.bf16.msra.mxu0 %v1295
      %1621 = vmatpush.bf16.msra.mxu0 %v1285
      %1622 = vmatpush.bf16.msra.mxu0 %v1275
      %1623 = vmatpush.bf16.msra.mxu0 %v1265
      %1624 = vmatpush.bf16.msra.mxu0 %v1255
      %1625 = vmatmul.bf16.gmra.mxu0 %v530
      %v1626 = vpop.f32.mrf.mxu0
      %v1627 = vadd.f32 %v1613, %v1626
      %v1628 = vpop.f32.mrf.mxu0
      %v1629 = vadd.f32 %v1615, %v1628
      %1630 = vdwg.mxu0
      %1631 = vmatpush.bf16.msra.mxu0 %v1246
      %1632 = vmatpush.bf16.msra.mxu0 %v1236
      %1633 = vmatpush.bf16.msra.mxu0 %v1226
      %1634 = vmatpush.bf16.msra.mxu0 %v1216
      %1635 = vmatpush.bf16.msra.mxu0 %v1206
      %1636 = vmatpush.bf16.msra.mxu0 %v1196
      %1637 = vmatpush.bf16.msra.mxu0 %v1186
      %1638 = vmatpush.bf16.msra.mxu0 %v1176
      %1639 = vmatmul.bf16.gmra.mxu0 %v529
      %v1640 = vpop.f32.mrf.mxu0
      %v1641 = vadd.f32 0.0, %v1640
      %v1642 = vpop.f32.mrf.mxu0
      %v1643 = vadd.f32 0.0, %v1642
      %1644 = vdwg.mxu0
      %1645 = vmatpush.bf16.msra.mxu0 %v1326
      %1646 = vmatpush.bf16.msra.mxu0 %v1316
      %1647 = vmatpush.bf16.msra.mxu0 %v1306
      %1648 = vmatpush.bf16.msra.mxu0 %v1296
      %1649 = vmatpush.bf16.msra.mxu0 %v1286
      %1650 = vmatpush.bf16.msra.mxu0 %v1276
      %1651 = vmatpush.bf16.msra.mxu0 %v1266
      %1652 = vmatpush.bf16.msra.mxu0 %v1256
      %1653 = vmatmul.bf16.gmra.mxu0 %v530
      %v1654 = vpop.f32.mrf.mxu0
      %v1655 = vadd.f32 %v1641, %v1654
      %v1656 = vpop.f32.mrf.mxu0
      %v1657 = vadd.f32 %v1643, %v1656
      %1658 = vdwg.mxu0
      %1659 = vmatpush.bf16.msra.mxu0 %v1247
      %1660 = vmatpush.bf16.msra.mxu0 %v1237
      %1661 = vmatpush.bf16.msra.mxu0 %v1227
      %1662 = vmatpush.bf16.msra.mxu0 %v1217
      %1663 = vmatpush.bf16.msra.mxu0 %v1207
      %1664 = vmatpush.bf16.msra.mxu0 %v1197
      %1665 = vmatpush.bf16.msra.mxu0 %v1187
      %1666 = vmatpush.bf16.msra.mxu0 %v1177
      %1667 = vmatmul.bf16.gmra.mxu0 %v529
      %v1668 = vpop.f32.mrf.mxu0
      %v1669 = vadd.f32 0.0, %v1668
      %v1670 = vpop.f32.mrf.mxu0
      %v1671 = vadd.f32 0.0, %v1670
      %1672 = vdwg.mxu0
      %1673 = vmatpush.bf16.msra.mxu0 %v1327
      %1674 = vmatpush.bf16.msra.mxu0 %v1317
      %1675 = vmatpush.bf16.msra.mxu0 %v1307
      %1676 = vmatpush.bf16.msra.mxu0 %v1297
      %1677 = vmatpush.bf16.msra.mxu0 %v1287
      %1678 = vmatpush.bf16.msra.mxu0 %v1277
      %1679 = vmatpush.bf16.msra.mxu0 %v1267
      %1680 = vmatpush.bf16.msra.mxu0 %v1257
      %1681 = vmatmul.bf16.gmra.mxu0 %v530
      %v1682 = vpop.f32.mrf.mxu0
      %v1683 = vadd.f32 %v1669, %v1682
      %v1684 = vpop.f32.mrf.mxu0
      %v1685 = vadd.f32 %v1671, %v1684
      %1686 = vdwg.mxu0
      %1687 = vmatpush.bf16.msra.mxu0 %v1248
      %1688 = vmatpush.bf16.msra.mxu0 %v1238
      %1689 = vmatpush.bf16.msra.mxu0 %v1228
      %1690 = vmatpush.bf16.msra.mxu0 %v1218
      %1691 = vmatpush.bf16.msra.mxu0 %v1208
      %1692 = vmatpush.bf16.msra.mxu0 %v1198
      %1693 = vmatpush.bf16.msra.mxu0 %v1188
      %1694 = vmatpush.bf16.msra.mxu0 %v1178
      %1695 = vmatmul.bf16.gmra.mxu0 %v529
      %v1696 = vpop.f32.mrf.mxu0
      %v1697 = vadd.f32 0.0, %v1696
      %v1698 = vpop.f32.mrf.mxu0
      %v1699 = vadd.f32 0.0, %v1698
      %1700 = vdwg.mxu0
      %1701 = vmatpush.bf16.msra.mxu0 %v1328
      %1702 = vmatpush.bf16.msra.mxu0 %v1318
      %1703 = vmatpush.bf16.msra.mxu0 %v1308
      %1704 = vmatpush.bf16.msra.mxu0 %v1298
      %1705 = vmatpush.bf16.msra.mxu0 %v1288
      %1706 = vmatpush.bf16.msra.mxu0 %v1278
      %1707 = vmatpush.bf16.msra.mxu0 %v1268
      %1708 = vmatpush.bf16.msra.mxu0 %v1258
      %1709 = vmatmul.bf16.gmra.mxu0 %v530
      %v1710 = vpop.f32.mrf.mxu0
      %v1711 = vadd.f32 %v1697, %v1710
      %v1712 = vpop.f32.mrf.mxu0
      %v1713 = vadd.f32 %v1699, %v1712
      %1714 = vdwg.mxu0
      %1715 = vmatpush.bf16.msra.mxu0 %v1249
      %1716 = vmatpush.bf16.msra.mxu0 %v1239
      %1717 = vmatpush.bf16.msra.mxu0 %v1229
      %1718 = vmatpush.bf16.msra.mxu0 %v1219
      %1719 = vmatpush.bf16.msra.mxu0 %v1209
      %1720 = vmatpush.bf16.msra.mxu0 %v1199
      %1721 = vmatpush.bf16.msra.mxu0 %v1189
      %1722 = vmatpush.bf16.msra.mxu0 %v1179
      %1723 = vmatmul.bf16.gmra.mxu0 %v529
      %v1724 = vpop.f32.mrf.mxu0
      %v1725 = vadd.f32 0.0, %v1724
      %v1726 = vpop.f32.mrf.mxu0
      %v1727 = vadd.f32 0.0, %v1726
      %1728 = vdwg.mxu0
      %1729 = vmatpush.bf16.msra.mxu0 %v1329
      %1730 = vmatpush.bf16.msra.mxu0 %v1319
      %1731 = vmatpush.bf16.msra.mxu0 %v1309
      %1732 = vmatpush.bf16.msra.mxu0 %v1299
      %1733 = vmatpush.bf16.msra.mxu0 %v1289
      %1734 = vmatpush.bf16.msra.mxu0 %v1279
      %1735 = vmatpush.bf16.msra.mxu0 %v1269
      %1736 = vmatpush.bf16.msra.mxu0 %v1259
      %1737 = vmatmul.bf16.gmra.mxu0 %v530
      %v1738 = vpop.f32.mrf.mxu0
      %v1739 = vadd.f32 %v1725, %v1738
      %v1740 = vpop.f32.mrf.mxu0
      %v1741 = vadd.f32 %v1727, %v1740
      %1742 = vdwg.mxu0
      %1743 = vmatpush.bf16.msra.mxu0 %v1250
      %1744 = vmatpush.bf16.msra.mxu0 %v1240
      %1745 = vmatpush.bf16.msra.mxu0 %v1230
      %1746 = vmatpush.bf16.msra.mxu0 %v1220
      %1747 = vmatpush.bf16.msra.mxu0 %v1210
      %1748 = vmatpush.bf16.msra.mxu0 %v1200
      %1749 = vmatpush.bf16.msra.mxu0 %v1190
      %1750 = vmatpush.bf16.msra.mxu0 %v1180
      %1751 = vmatmul.bf16.gmra.mxu0 %v529
      %v1752 = vpop.f32.mrf.mxu0
      %v1753 = vadd.f32 0.0, %v1752
      %v1754 = vpop.f32.mrf.mxu0
      %v1755 = vadd.f32 0.0, %v1754
      %1756 = vdwg.mxu0
      %1757 = vmatpush.bf16.msra.mxu0 %v1330
      %1758 = vmatpush.bf16.msra.mxu0 %v1320
      %1759 = vmatpush.bf16.msra.mxu0 %v1310
      %1760 = vmatpush.bf16.msra.mxu0 %v1300
      %1761 = vmatpush.bf16.msra.mxu0 %v1290
      %1762 = vmatpush.bf16.msra.mxu0 %v1280
      %1763 = vmatpush.bf16.msra.mxu0 %v1270
      %1764 = vmatpush.bf16.msra.mxu0 %v1260
      %1765 = vmatmul.bf16.gmra.mxu0 %v530
      %v1766 = vpop.f32.mrf.mxu0
      %v1767 = vadd.f32 %v1753, %v1766
      %v1768 = vpop.f32.mrf.mxu0
      %v1769 = vadd.f32 %v1755, %v1768
      %1770 = vdwg.mxu0
      %v1771 = vld [vmem:[%s3] sm:$0xf]
      %v1773 = vsel %vm465, %v1771, 0
      %1775 = vmatpush.bf16.msra.mxu0 0
      %1776 = vmatpush.bf16.msra.mxu0 0
      %1777 = vmatpush.bf16.msra.mxu0 0
      %1778 = vmatpush.bf16.msra.mxu0 0
      %1779 = vmatpush.bf16.msra.mxu0 0
      %1780 = vmatpush.bf16.msra.mxu0 0
      %1781 = vmatpush.bf16.msra.mxu0 0
      %1782 = vmatpush.bf16.msra.mxu0 %v437
      %1783 = vmatmul.bf16.gmra.mxu0 %v1773
      %v1784 = vpop.f32.mrf.mxu0
      %v1785 = vadd.f32 0.0, %v1784
      %v1786 = vpop.f32.mrf.mxu0
      %1787 = vdwg.mxu0
      %1788 = vmatpush.bf16.msra.mxu0 0
      %1789 = vmatpush.bf16.msra.mxu0 0
      %1790 = vmatpush.bf16.msra.mxu0 0
      %1791 = vmatpush.bf16.msra.mxu0 0
      %1792 = vmatpush.bf16.msra.mxu0 0
      %1793 = vmatpush.bf16.msra.mxu0 0
      %1794 = vmatpush.bf16.msra.mxu0 0
      %1795 = vmatpush.bf16.msra.mxu0 %v438
      %1796 = vmatmul.bf16.gmra.mxu0 %v1773
      %v1797 = vpop.f32.mrf.mxu0
      %v1798 = vadd.f32 0.0, %v1797
      %v1799 = vpop.f32.mrf.mxu0
      %1800 = vdwg.mxu0
      %v1801 = vpack.c.bf16 %v1785, %v1785
      %v1802 = vpack.c.bf16 %v1798, %v1798
      %v1803 = vld [vmem:[%s6] sm:$0xff]
      %v1804 = vld [vmem:[%s6 + $0x8] sm:$0xff]
      %v1805 = vld [vmem:[%s6 + $0x10] sm:$0xff]
      %v1806 = vld [vmem:[%s6 + $0x18] sm:$0xff]
      %v1807 = vld [vmem:[%s6 + $0x20] sm:$0xf]
      %v1808 = vld [vmem:[%s6 + $0x24] sm:$0xff]
      %v1809 = vld [vmem:[%s6 + $0x2c] sm:$0xff]
      %v1810 = vld [vmem:[%s6 + $0x34] sm:$0xff]
      %v1811 = vld [vmem:[%s6 + $0x3c] sm:$0xff]
      %v1812 = vld [vmem:[%s6 + $0x44] sm:$0xf]
      %v1813 = vld [vmem:[%s6 + $0x48] sm:$0xff]
      %v1814 = vld [vmem:[%s6 + $0x50] sm:$0xff]
      %v1815 = vld [vmem:[%s6 + $0x58] sm:$0xff]
      %v1816 = vld [vmem:[%s6 + $0x60] sm:$0xff]
      %v1817 = vld [vmem:[%s6 + $0x68] sm:$0xf]
      %v1818 = vld [vmem:[%s6 + $0x6c] sm:$0xff]
      %v1819 = vld [vmem:[%s6 + $0x74] sm:$0xff]
      %v1820 = vld [vmem:[%s6 + $0x7c] sm:$0xff]
      %v1821 = vld [vmem:[%s6 + $0x84] sm:$0xff]
      %v1822 = vld [vmem:[%s6 + $0x8c] sm:$0xf]
      %v1823 = vld [vmem:[%s6 + $0x90] sm:$0xff]
      %v1824 = vld [vmem:[%s6 + $0x98] sm:$0xff]
      %v1825 = vld [vmem:[%s6 + $0xa0] sm:$0xff]
      %v1826 = vld [vmem:[%s6 + $0xa8] sm:$0xff]
      %v1827 = vld [vmem:[%s6 + $0xb0] sm:$0xf]
      %v1828 = vld [vmem:[%s6 + $0xb4] sm:$0xff]
      %v1829 = vld [vmem:[%s6 + $0xbc] sm:$0xff]
      %v1830 = vld [vmem:[%s6 + $0xc4] sm:$0xff]
      %v1831 = vld [vmem:[%s6 + $0xcc] sm:$0xff]
      %v1832 = vld [vmem:[%s6 + $0xd4] sm:$0xf]
      %v1833 = vld [vmem:[%s6 + $0xd8] sm:$0xff]
      %v1834 = vld [vmem:[%s6 + $0xe0] sm:$0xff]
      %v1835 = vld [vmem:[%s6 + $0xe8] sm:$0xff]
      %v1836 = vld [vmem:[%s6 + $0xf0] sm:$0xff]
      %v1837 = vld [vmem:[%s6 + $0xf8] sm:$0xf]
      %v1838 = vld [vmem:[%s6 + $0xfc] sm:$0xff]
      %v1839 = vld [vmem:[%s6 + $0x104] sm:$0xff]
      %v1840 = vld [vmem:[%s6 + $0x10c] sm:$0xff]
      %v1841 = vld [vmem:[%s6 + $0x114] sm:$0xff]
      %v1842 = vld [vmem:[%s6 + $0x11c] sm:$0xf]
      %v1843 = vld [vmem:[%s6 + $0x120] sm:$0xff]
      %v1844 = vld [vmem:[%s6 + $0x128] sm:$0xff]
      %v1845 = vld [vmem:[%s6 + $0x130] sm:$0xff]
      %v1846 = vld [vmem:[%s6 + $0x138] sm:$0xff]
      %v1847 = vld [vmem:[%s6 + $0x140] sm:$0xf]
      %v1848 = vld [vmem:[%s6 + $0x144] sm:$0xff]
      %v1849 = vld [vmem:[%s6 + $0x14c] sm:$0xff]
      %v1850 = vld [vmem:[%s6 + $0x154] sm:$0xff]
      %v1851 = vld [vmem:[%s6 + $0x15c] sm:$0xff]
      %v1852 = vld [vmem:[%s6 + $0x164] sm:$0xf]
      %v1853 = vld [vmem:[%s6 + $0x168] sm:$0xff]
      %v1854 = vld [vmem:[%s6 + $0x170] sm:$0xff]
      %v1855 = vld [vmem:[%s6 + $0x178] sm:$0xff]
      %v1856 = vld [vmem:[%s6 + $0x180] sm:$0xff]
      %v1857 = vld [vmem:[%s6 + $0x188] sm:$0xf]
      %v1858 = vld [vmem:[%s6 + $0x18c] sm:$0xff]
      %v1859 = vld [vmem:[%s6 + $0x194] sm:$0xff]
      %v1860 = vld [vmem:[%s6 + $0x19c] sm:$0xff]
      %v1861 = vld [vmem:[%s6 + $0x1a4] sm:$0xff]
      %v1862 = vld [vmem:[%s6 + $0x1ac] sm:$0xf]
      %v1863 = vld [vmem:[%s6 + $0x1b0] sm:$0xff]
      %v1864 = vld [vmem:[%s6 + $0x1b8] sm:$0xff]
      %v1865 = vld [vmem:[%s6 + $0x1c0] sm:$0xff]
      %v1866 = vld [vmem:[%s6 + $0x1c8] sm:$0xff]
      %v1867 = vld [vmem:[%s6 + $0x1d0] sm:$0xf]
      %v1868 = vld [vmem:[%s6 + $0x1d4] sm:$0xff]
      %v1869 = vld [vmem:[%s6 + $0x1dc] sm:$0xff]
      %v1870 = vld [vmem:[%s6 + $0x1e4] sm:$0xff]
      %v1871 = vld [vmem:[%s6 + $0x1ec] sm:$0xff]
      %v1872 = vld [vmem:[%s6 + $0x1f4] sm:$0xf]
      %v1873 = vld [vmem:[%s6 + $0x1f8] sm:$0xff]
      %v1874 = vld [vmem:[%s6 + $0x200] sm:$0xff]
      %v1875 = vld [vmem:[%s6 + $0x208] sm:$0xff]
      %v1876 = vld [vmem:[%s6 + $0x210] sm:$0xff]
      %v1877 = vld [vmem:[%s6 + $0x218] sm:$0xf]
      %v1878 = vld [vmem:[%s6 + $0x21c] sm:$0xff]
      %v1879 = vld [vmem:[%s6 + $0x224] sm:$0xff]
      %v1880 = vld [vmem:[%s6 + $0x22c] sm:$0xff]
      %v1881 = vld [vmem:[%s6 + $0x234] sm:$0xff]
      %v1882 = vld [vmem:[%s6 + $0x23c] sm:$0xf]
      %v1883 = vld [vmem:[%s6 + $0x240] sm:$0xff]
      %v1884 = vld [vmem:[%s6 + $0x248] sm:$0xff]
      %v1885 = vld [vmem:[%s6 + $0x250] sm:$0xff]
      %v1886 = vld [vmem:[%s6 + $0x258] sm:$0xff]
      %v1887 = vld [vmem:[%s6 + $0x260] sm:$0xf]
      %v1888 = vld [vmem:[%s6 + $0x264] sm:$0xff]
      %v1889 = vld [vmem:[%s6 + $0x26c] sm:$0xff]
      %v1890 = vld [vmem:[%s6 + $0x274] sm:$0xff]
      %v1891 = vld [vmem:[%s6 + $0x27c] sm:$0xff]
      %v1892 = vld [vmem:[%s6 + $0x284] sm:$0xf]
      %v1893 = vld [vmem:[%s6 + $0x288] sm:$0xff]
      %v1894 = vld [vmem:[%s6 + $0x290] sm:$0xff]
      %v1895 = vld [vmem:[%s6 + $0x298] sm:$0xff]
      %v1896 = vld [vmem:[%s6 + $0x2a0] sm:$0xff]
      %v1897 = vld [vmem:[%s6 + $0x2a8] sm:$0xf]
      %v1898 = vld [vmem:[%s6 + $0x2ac] sm:$0xff]
      %v1899 = vld [vmem:[%s6 + $0x2b4] sm:$0xff]
      %v1900 = vld [vmem:[%s6 + $0x2bc] sm:$0xff]
      %v1901 = vld [vmem:[%s6 + $0x2c4] sm:$0xff]
      %v1902 = vld [vmem:[%s6 + $0x2cc] sm:$0xf]
      %v1903 = vld [vmem:[%s6 + $0x2d0] sm:$0xff]
      %v1904 = vld [vmem:[%s6 + $0x2d8] sm:$0xff]
      %v1905 = vld [vmem:[%s6 + $0x2e0] sm:$0xff]
      %v1906 = vld [vmem:[%s6 + $0x2e8] sm:$0xff]
      %v1907 = vld [vmem:[%s6 + $0x2f0] sm:$0xf]
      %v1908 = vld [vmem:[%s6 + $0x2f4] sm:$0xff]
      %v1909 = vld [vmem:[%s6 + $0x2fc] sm:$0xff]
      %v1910 = vld [vmem:[%s6 + $0x304] sm:$0xff]
      %v1911 = vld [vmem:[%s6 + $0x30c] sm:$0xff]
      %v1912 = vld [vmem:[%s6 + $0x314] sm:$0xf]
      %v1913 = vld [vmem:[%s6 + $0x318] sm:$0xff]
      %v1914 = vld [vmem:[%s6 + $0x320] sm:$0xff]
      %v1915 = vld [vmem:[%s6 + $0x328] sm:$0xff]
      %v1916 = vld [vmem:[%s6 + $0x330] sm:$0xff]
      %v1917 = vld [vmem:[%s6 + $0x338] sm:$0xf]
      %v1918 = vld [vmem:[%s6 + $0x33c] sm:$0xff]
      %v1919 = vld [vmem:[%s6 + $0x344] sm:$0xff]
      %v1920 = vld [vmem:[%s6 + $0x34c] sm:$0xff]
      %v1921 = vld [vmem:[%s6 + $0x354] sm:$0xff]
      %v1922 = vld [vmem:[%s6 + $0x35c] sm:$0xf]
      %v1923 = vld [vmem:[%s6 + $0x360] sm:$0xff]
      %v1924 = vld [vmem:[%s6 + $0x368] sm:$0xff]
      %v1925 = vld [vmem:[%s6 + $0x370] sm:$0xff]
      %v1926 = vld [vmem:[%s6 + $0x378] sm:$0xff]
      %v1927 = vld [vmem:[%s6 + $0x380] sm:$0xf]
      %v1928 = vld [vmem:[%s6 + $0x384] sm:$0xff]
      %v1929 = vld [vmem:[%s6 + $0x38c] sm:$0xff]
      %v1930 = vld [vmem:[%s6 + $0x394] sm:$0xff]
      %v1931 = vld [vmem:[%s6 + $0x39c] sm:$0xff]
      %v1932 = vld [vmem:[%s6 + $0x3a4] sm:$0xf]
      %v1933 = vld [vmem:[%s6 + $0x3a8] sm:$0xff]
      %v1934 = vld [vmem:[%s6 + $0x3b0] sm:$0xff]
      %v1935 = vld [vmem:[%s6 + $0x3b8] sm:$0xff]
      %v1936 = vld [vmem:[%s6 + $0x3c0] sm:$0xff]
      %v1937 = vld [vmem:[%s6 + $0x3c8] sm:$0xf]
      %v1938 = vld [vmem:[%s6 + $0x3cc] sm:$0xff]
      %v1939 = vld [vmem:[%s6 + $0x3d4] sm:$0xff]
      %v1940 = vld [vmem:[%s6 + $0x3dc] sm:$0xff]
      %v1941 = vld [vmem:[%s6 + $0x3e4] sm:$0xff]
      %v1942 = vld [vmem:[%s6 + $0x3ec] sm:$0xf]
      %v1943 = vld [vmem:[%s6 + $0x3f0] sm:$0xff]
      %v1944 = vld [vmem:[%s6 + $0x3f8] sm:$0xff]
      %v1945 = vld [vmem:[%s6 + $0x400] sm:$0xff]
      %v1946 = vld [vmem:[%s6 + $0x408] sm:$0xff]
      %v1947 = vld [vmem:[%s6 + $0x410] sm:$0xf]
      %v1948 = vld [vmem:[%s6 + $0x414] sm:$0xff]
      %v1949 = vld [vmem:[%s6 + $0x41c] sm:$0xff]
      %v1950 = vld [vmem:[%s6 + $0x424] sm:$0xff]
      %v1951 = vld [vmem:[%s6 + $0x42c] sm:$0xff]
      %v1952 = vld [vmem:[%s6 + $0x434] sm:$0xf]
      %v1953 = vld [vmem:[%s6 + $0x438] sm:$0xff]
      %v1954 = vld [vmem:[%s6 + $0x440] sm:$0xff]
      %v1955 = vld [vmem:[%s6 + $0x448] sm:$0xff]
      %v1956 = vld [vmem:[%s6 + $0x450] sm:$0xff]
      %v1957 = vld [vmem:[%s6 + $0x458] sm:$0xf]
      %v1958 = vld [vmem:[%s6 + $0x45c] sm:$0xff]
      %v1959 = vld [vmem:[%s6 + $0x464] sm:$0xff]
      %v1960 = vld [vmem:[%s6 + $0x46c] sm:$0xff]
      %v1961 = vld [vmem:[%s6 + $0x474] sm:$0xff]
      %v1962 = vld [vmem:[%s6 + $0x47c] sm:$0xf]
      %v1963 = vld [vmem:[%s4] sm:$0xff]
      %1965 = vset.pattern.permute.xlu0 0
      %1966 = vperm.xlu0 %1965, %v1963
      %v1967 = vpop.permute.xlu0 %1966
      %v2129 = vunpack.c.l.b16 %v1803
      %v2130 = vunpack.c.h.b16 %v1803
      %v2131 = vunpack.c.l.b16 %v1804
      %v2132 = vunpack.c.h.b16 %v1804
      %v2133 = vunpack.c.l.b16 %v1805
      %v2134 = vunpack.c.h.b16 %v1805
      %v2135 = vunpack.c.l.b16 %v1806
      %v2136 = vunpack.c.h.b16 %v1806
      %v2137 = vunpack.c.l.b16 %v1807
      %v2138 = vunpack.c.l.b16 %v1808
      %v2139 = vunpack.c.h.b16 %v1808
      %v2140 = vunpack.c.l.b16 %v1809
      %v2141 = vunpack.c.h.b16 %v1809
      %v2142 = vunpack.c.l.b16 %v1810
      %v2143 = vunpack.c.h.b16 %v1810
      %v2144 = vunpack.c.l.b16 %v1811
      %v2145 = vunpack.c.h.b16 %v1811
      %v2146 = vunpack.c.l.b16 %v1812
      %v2147 = vunpack.c.l.b16 %v1813
      %v2148 = vunpack.c.h.b16 %v1813
      %v2149 = vunpack.c.l.b16 %v1814
      %v2150 = vunpack.c.h.b16 %v1814
      %v2151 = vunpack.c.l.b16 %v1815
      %v2152 = vunpack.c.h.b16 %v1815
      %v2153 = vunpack.c.l.b16 %v1816
      %v2154 = vunpack.c.h.b16 %v1816
      %v2155 = vunpack.c.l.b16 %v1817
      %v2156 = vunpack.c.l.b16 %v1818
      %v2157 = vunpack.c.h.b16 %v1818
      %v2158 = vunpack.c.l.b16 %v1819
      %v2159 = vunpack.c.h.b16 %v1819
      %v2160 = vunpack.c.l.b16 %v1820
      %v2161 = vunpack.c.h.b16 %v1820
      %v2162 = vunpack.c.l.b16 %v1821
      %v2163 = vunpack.c.h.b16 %v1821
      %v2164 = vunpack.c.l.b16 %v1822
      %v2165 = vunpack.c.l.b16 %v1823
      %v2166 = vunpack.c.h.b16 %v1823
      %v2167 = vunpack.c.l.b16 %v1824
      %v2168 = vunpack.c.h.b16 %v1824
      %v2169 = vunpack.c.l.b16 %v1825
      %v2170 = vunpack.c.h.b16 %v1825
      %v2171 = vunpack.c.l.b16 %v1826
      %v2172 = vunpack.c.h.b16 %v1826
      %v2173 = vunpack.c.l.b16 %v1827
      %v2174 = vunpack.c.l.b16 %v1828
      %v2175 = vunpack.c.h.b16 %v1828
      %v2176 = vunpack.c.l.b16 %v1829
      %v2177 = vunpack.c.h.b16 %v1829
      %v2178 = vunpack.c.l.b16 %v1830
      %v2179 = vunpack.c.h.b16 %v1830
      %v2180 = vunpack.c.l.b16 %v1831
      %v2181 = vunpack.c.h.b16 %v1831
      %v2182 = vunpack.c.l.b16 %v1832
      %v2183 = vunpack.c.l.b16 %v1833
      %v2184 = vunpack.c.h.b16 %v1833
      %v2185 = vunpack.c.l.b16 %v1834
      %v2186 = vunpack.c.h.b16 %v1834
      %v2187 = vunpack.c.l.b16 %v1835
      %v2188 = vunpack.c.h.b16 %v1835
      %v2189 = vunpack.c.l.b16 %v1836
      %v2190 = vunpack.c.h.b16 %v1836
      %v2191 = vunpack.c.l.b16 %v1837
      %v2192 = vunpack.c.l.b16 %v1838
      %v2193 = vunpack.c.h.b16 %v1838
      %v2194 = vunpack.c.l.b16 %v1839
      %v2195 = vunpack.c.h.b16 %v1839
      %v2196 = vunpack.c.l.b16 %v1840
      %v2197 = vunpack.c.h.b16 %v1840
      %v2198 = vunpack.c.l.b16 %v1841
      %v2199 = vunpack.c.h.b16 %v1841
      %v2200 = vunpack.c.l.b16 %v1842
      %v2201 = vunpack.c.l.b16 %v1843
      %v2202 = vunpack.c.h.b16 %v1843
      %v2203 = vunpack.c.l.b16 %v1844
      %v2204 = vunpack.c.h.b16 %v1844
      %v2205 = vunpack.c.l.b16 %v1845
      %v2206 = vunpack.c.h.b16 %v1845
      %v2207 = vunpack.c.l.b16 %v1846
      %v2208 = vunpack.c.h.b16 %v1846
      %v2209 = vunpack.c.l.b16 %v1847
      %v2210 = vunpack.c.l.b16 %v1848
      %v2211 = vunpack.c.h.b16 %v1848
      %v2212 = vunpack.c.l.b16 %v1849
      %v2213 = vunpack.c.h.b16 %v1849
      %v2214 = vunpack.c.l.b16 %v1850
      %v2215 = vunpack.c.h.b16 %v1850
      %v2216 = vunpack.c.l.b16 %v1851
      %v2217 = vunpack.c.h.b16 %v1851
      %v2218 = vunpack.c.l.b16 %v1852
      %v2219 = vunpack.c.l.b16 %v1853
      %v2220 = vunpack.c.h.b16 %v1853
      %v2221 = vunpack.c.l.b16 %v1854
      %v2222 = vunpack.c.h.b16 %v1854
      %v2223 = vunpack.c.l.b16 %v1855
      %v2224 = vunpack.c.h.b16 %v1855
      %v2225 = vunpack.c.l.b16 %v1856
      %v2226 = vunpack.c.h.b16 %v1856
      %v2227 = vunpack.c.l.b16 %v1857
      %v2228 = vunpack.c.l.b16 %v1858
      %v2229 = vunpack.c.h.b16 %v1858
      %v2230 = vunpack.c.l.b16 %v1859
      %v2231 = vunpack.c.h.b16 %v1859
      %v2232 = vunpack.c.l.b16 %v1860
      %v2233 = vunpack.c.h.b16 %v1860
      %v2234 = vunpack.c.l.b16 %v1861
      %v2235 = vunpack.c.h.b16 %v1861
      %v2236 = vunpack.c.l.b16 %v1862
      %v2237 = vunpack.c.l.b16 %v1863
      %v2238 = vunpack.c.h.b16 %v1863
      %v2239 = vunpack.c.l.b16 %v1864
      %v2240 = vunpack.c.h.b16 %v1864
      %v2241 = vunpack.c.l.b16 %v1865
      %v2242 = vunpack.c.h.b16 %v1865
      %v2243 = vunpack.c.l.b16 %v1866
      %v2244 = vunpack.c.h.b16 %v1866
      %v2245 = vunpack.c.l.b16 %v1867
      %v2246 = vunpack.c.l.b16 %v1868
      %v2247 = vunpack.c.h.b16 %v1868
      %v2248 = vunpack.c.l.b16 %v1869
      %v2249 = vunpack.c.h.b16 %v1869
      %v2250 = vunpack.c.l.b16 %v1870
      %v2251 = vunpack.c.h.b16 %v1870
      %v2252 = vunpack.c.l.b16 %v1871
      %v2253 = vunpack.c.h.b16 %v1871
      %v2254 = vunpack.c.l.b16 %v1872
      %v2255 = vunpack.c.l.b16 %v1873
      %v2256 = vunpack.c.h.b16 %v1873
      %v2257 = vunpack.c.l.b16 %v1874
      %v2258 = vunpack.c.h.b16 %v1874
      %v2259 = vunpack.c.l.b16 %v1875
      %v2260 = vunpack.c.h.b16 %v1875
      %v2261 = vunpack.c.l.b16 %v1876
      %v2262 = vunpack.c.h.b16 %v1876
      %v2263 = vunpack.c.l.b16 %v1877
      %v2264 = vunpack.c.l.b16 %v1878
      %v2265 = vunpack.c.h.b16 %v1878
      %v2266 = vunpack.c.l.b16 %v1879
      %v2267 = vunpack.c.h.b16 %v1879
      %v2268 = vunpack.c.l.b16 %v1880
      %v2269 = vunpack.c.h.b16 %v1880
      %v2270 = vunpack.c.l.b16 %v1881
      %v2271 = vunpack.c.h.b16 %v1881
      %v2272 = vunpack.c.l.b16 %v1882
      %v2273 = vunpack.c.l.b16 %v1883
      %v2274 = vunpack.c.h.b16 %v1883
      %v2275 = vunpack.c.l.b16 %v1884
      %v2276 = vunpack.c.h.b16 %v1884
      %v2277 = vunpack.c.l.b16 %v1885
      %v2278 = vunpack.c.h.b16 %v1885
      %v2279 = vunpack.c.l.b16 %v1886
      %v2280 = vunpack.c.h.b16 %v1886
      %v2281 = vunpack.c.l.b16 %v1887
      %v2282 = vunpack.c.l.b16 %v1888
      %v2283 = vunpack.c.h.b16 %v1888
      %v2284 = vunpack.c.l.b16 %v1889
      %v2285 = vunpack.c.h.b16 %v1889
      %v2286 = vunpack.c.l.b16 %v1890
      %v2287 = vunpack.c.h.b16 %v1890
      %v2288 = vunpack.c.l.b16 %v1891
      %v2289 = vunpack.c.h.b16 %v1891
      %v2290 = vunpack.c.l.b16 %v1892
      %v2291 = vunpack.c.l.b16 %v1893
      %v2292 = vunpack.c.h.b16 %v1893
      %v2293 = vunpack.c.l.b16 %v1894
      %v2294 = vunpack.c.h.b16 %v1894
      %v2295 = vunpack.c.l.b16 %v1895
      %v2296 = vunpack.c.h.b16 %v1895
      %v2297 = vunpack.c.l.b16 %v1896
      %v2298 = vunpack.c.h.b16 %v1896
      %v2299 = vunpack.c.l.b16 %v1897
      %v2300 = vunpack.c.l.b16 %v1898
      %v2301 = vunpack.c.h.b16 %v1898
      %v2302 = vunpack.c.l.b16 %v1899
      %v2303 = vunpack.c.h.b16 %v1899
      %v2304 = vunpack.c.l.b16 %v1900
      %v2305 = vunpack.c.h.b16 %v1900
      %v2306 = vunpack.c.l.b16 %v1901
      %v2307 = vunpack.c.h.b16 %v1901
      %v2308 = vunpack.c.l.b16 %v1902
      %v2309 = vunpack.c.l.b16 %v1903
      %v2310 = vunpack.c.h.b16 %v1903
      %v2311 = vunpack.c.l.b16 %v1904
      %v2312 = vunpack.c.h.b16 %v1904
      %v2313 = vunpack.c.l.b16 %v1905
      %v2314 = vunpack.c.h.b16 %v1905
      %v2315 = vunpack.c.l.b16 %v1906
      %v2316 = vunpack.c.h.b16 %v1906
      %v2317 = vunpack.c.l.b16 %v1907
      %v2318 = vunpack.c.l.b16 %v1908
      %v2319 = vunpack.c.h.b16 %v1908
      %v2320 = vunpack.c.l.b16 %v1909
      %v2321 = vunpack.c.h.b16 %v1909
      %v2322 = vunpack.c.l.b16 %v1910
      %v2323 = vunpack.c.h.b16 %v1910
      %v2324 = vunpack.c.l.b16 %v1911
      %v2325 = vunpack.c.h.b16 %v1911
      %v2326 = vunpack.c.l.b16 %v1912
      %v2327 = vunpack.c.l.b16 %v1913
      %v2328 = vunpack.c.h.b16 %v1913
      %v2329 = vunpack.c.l.b16 %v1914
      %v2330 = vunpack.c.h.b16 %v1914
      %v2331 = vunpack.c.l.b16 %v1915
      %v2332 = vunpack.c.h.b16 %v1915
      %v2333 = vunpack.c.l.b16 %v1916
      %v2334 = vunpack.c.h.b16 %v1916
      %v2335 = vunpack.c.l.b16 %v1917
      %v2336 = vunpack.c.l.b16 %v1918
      %v2337 = vunpack.c.h.b16 %v1918
      %v2338 = vunpack.c.l.b16 %v1919
      %v2339 = vunpack.c.h.b16 %v1919
      %v2340 = vunpack.c.l.b16 %v1920
      %v2341 = vunpack.c.h.b16 %v1920
      %v2342 = vunpack.c.l.b16 %v1921
      %v2343 = vunpack.c.h.b16 %v1921
      %v2344 = vunpack.c.l.b16 %v1922
      %v2345 = vunpack.c.l.b16 %v1923
      %v2346 = vunpack.c.h.b16 %v1923
      %v2347 = vunpack.c.l.b16 %v1924
      %v2348 = vunpack.c.h.b16 %v1924
      %v2349 = vunpack.c.l.b16 %v1925
      %v2350 = vunpack.c.h.b16 %v1925
      %v2351 = vunpack.c.l.b16 %v1926
      %v2352 = vunpack.c.h.b16 %v1926
      %v2353 = vunpack.c.l.b16 %v1927
      %v2354 = vunpack.c.l.b16 %v1928
      %v2355 = vunpack.c.h.b16 %v1928
      %v2356 = vunpack.c.l.b16 %v1929
      %v2357 = vunpack.c.h.b16 %v1929
      %v2358 = vunpack.c.l.b16 %v1930
      %v2359 = vunpack.c.h.b16 %v1930
      %v2360 = vunpack.c.l.b16 %v1931
      %v2361 = vunpack.c.h.b16 %v1931
      %v2362 = vunpack.c.l.b16 %v1932
      %v2363 = vunpack.c.l.b16 %v1933
      %v2364 = vunpack.c.h.b16 %v1933
      %v2365 = vunpack.c.l.b16 %v1934
      %v2366 = vunpack.c.h.b16 %v1934
      %v2367 = vunpack.c.l.b16 %v1935
      %v2368 = vunpack.c.h.b16 %v1935
      %v2369 = vunpack.c.l.b16 %v1936
      %v2370 = vunpack.c.h.b16 %v1936
      %v2371 = vunpack.c.l.b16 %v1937
      %v2372 = vunpack.c.l.b16 %v1938
      %v2373 = vunpack.c.h.b16 %v1938
      %v2374 = vunpack.c.l.b16 %v1939
      %v2375 = vunpack.c.h.b16 %v1939
      %v2376 = vunpack.c.l.b16 %v1940
      %v2377 = vunpack.c.h.b16 %v1940
      %v2378 = vunpack.c.l.b16 %v1941
      %v2379 = vunpack.c.h.b16 %v1941
      %v2380 = vunpack.c.l.b16 %v1942
      %v2381 = vunpack.c.l.b16 %v1943
      %v2382 = vunpack.c.h.b16 %v1943
      %v2383 = vunpack.c.l.b16 %v1944
      %v2384 = vunpack.c.h.b16 %v1944
      %v2385 = vunpack.c.l.b16 %v1945
      %v2386 = vunpack.c.h.b16 %v1945
      %v2387 = vunpack.c.l.b16 %v1946
      %v2388 = vunpack.c.h.b16 %v1946
      %v2389 = vunpack.c.l.b16 %v1947
      %v2390 = vunpack.c.l.b16 %v1948
      %v2391 = vunpack.c.h.b16 %v1948
      %v2392 = vunpack.c.l.b16 %v1949
      %v2393 = vunpack.c.h.b16 %v1949
      %v2394 = vunpack.c.l.b16 %v1950
      %v2395 = vunpack.c.h.b16 %v1950
      %v2396 = vunpack.c.l.b16 %v1951
      %v2397 = vunpack.c.h.b16 %v1951
      %v2398 = vunpack.c.l.b16 %v1952
      %v2399 = vunpack.c.l.b16 %v1953
      %v2400 = vunpack.c.h.b16 %v1953
      %v2401 = vunpack.c.l.b16 %v1954
      %v2402 = vunpack.c.h.b16 %v1954
      %v2403 = vunpack.c.l.b16 %v1955
      %v2404 = vunpack.c.h.b16 %v1955
      %v2405 = vunpack.c.l.b16 %v1956
      %v2406 = vunpack.c.h.b16 %v1956
      %v2407 = vunpack.c.l.b16 %v1957
      %v2408 = vunpack.c.l.b16 %v1958
      %v2409 = vunpack.c.h.b16 %v1958
      %v2410 = vunpack.c.l.b16 %v1959
      %v2411 = vunpack.c.h.b16 %v1959
      %v2412 = vunpack.c.l.b16 %v1960
      %v2413 = vunpack.c.h.b16 %v1960
      %v2414 = vunpack.c.l.b16 %v1961
      %v2415 = vunpack.c.h.b16 %v1961
      %v2416 = vunpack.c.l.b16 %v1962
      %v2417 = vpack.c.b16 %v2138, %v2129
      %v2418 = vpack.c.b16 %v2139, %v2130
      %v2419 = vpack.c.b16 %v2140, %v2131
      %v2420 = vpack.c.b16 %v2141, %v2132
      %v2421 = vpack.c.b16 %v2142, %v2133
      %v2422 = vpack.c.b16 %v2143, %v2134
      %v2423 = vpack.c.b16 %v2144, %v2135
      %v2424 = vpack.c.b16 %v2145, %v2136
      %v2425 = vpack.c.b16 %v2146, %v2137
      %v2426 = vpack.c.b16 %v2156, %v2147
      %v2427 = vpack.c.b16 %v2157, %v2148
      %v2428 = vpack.c.b16 %v2158, %v2149
      %v2429 = vpack.c.b16 %v2159, %v2150
      %v2430 = vpack.c.b16 %v2160, %v2151
      %v2431 = vpack.c.b16 %v2161, %v2152
      %v2432 = vpack.c.b16 %v2162, %v2153
      %v2433 = vpack.c.b16 %v2163, %v2154
      %v2434 = vpack.c.b16 %v2164, %v2155
      %v2435 = vpack.c.b16 %v2174, %v2165
      %v2436 = vpack.c.b16 %v2175, %v2166
      %v2437 = vpack.c.b16 %v2176, %v2167
      %v2438 = vpack.c.b16 %v2177, %v2168
      %v2439 = vpack.c.b16 %v2178, %v2169
      %v2440 = vpack.c.b16 %v2179, %v2170
      %v2441 = vpack.c.b16 %v2180, %v2171
      %v2442 = vpack.c.b16 %v2181, %v2172
      %v2443 = vpack.c.b16 %v2182, %v2173
      %v2444 = vpack.c.b16 %v2192, %v2183
      %v2445 = vpack.c.b16 %v2193, %v2184
      %v2446 = vpack.c.b16 %v2194, %v2185
      %v2447 = vpack.c.b16 %v2195, %v2186
      %v2448 = vpack.c.b16 %v2196, %v2187
      %v2449 = vpack.c.b16 %v2197, %v2188
      %v2450 = vpack.c.b16 %v2198, %v2189
      %v2451 = vpack.c.b16 %v2199, %v2190
      %v2452 = vpack.c.b16 %v2200, %v2191
      %v2453 = vpack.c.b16 %v2210, %v2201
      %v2454 = vpack.c.b16 %v2211, %v2202
      %v2455 = vpack.c.b16 %v2212, %v2203
      %v2456 = vpack.c.b16 %v2213, %v2204
      %v2457 = vpack.c.b16 %v2214, %v2205
      %v2458 = vpack.c.b16 %v2215, %v2206
      %v2459 = vpack.c.b16 %v2216, %v2207
      %v2460 = vpack.c.b16 %v2217, %v2208
      %v2461 = vpack.c.b16 %v2218, %v2209
      %v2462 = vpack.c.b16 %v2228, %v2219
      %v2463 = vpack.c.b16 %v2229, %v2220
      %v2464 = vpack.c.b16 %v2230, %v2221
      %v2465 = vpack.c.b16 %v2231, %v2222
      %v2466 = vpack.c.b16 %v2232, %v2223
      %v2467 = vpack.c.b16 %v2233, %v2224
      %v2468 = vpack.c.b16 %v2234, %v2225
      %v2469 = vpack.c.b16 %v2235, %v2226
      %v2470 = vpack.c.b16 %v2236, %v2227
      %v2471 = vpack.c.b16 %v2246, %v2237
      %v2472 = vpack.c.b16 %v2247, %v2238
      %v2473 = vpack.c.b16 %v2248, %v2239
      %v2474 = vpack.c.b16 %v2249, %v2240
      %v2475 = vpack.c.b16 %v2250, %v2241
      %v2476 = vpack.c.b16 %v2251, %v2242
      %v2477 = vpack.c.b16 %v2252, %v2243
      %v2478 = vpack.c.b16 %v2253, %v2244
      %v2479 = vpack.c.b16 %v2254, %v2245
      %v2480 = vpack.c.b16 %v2264, %v2255
      %v2481 = vpack.c.b16 %v2265, %v2256
      %v2482 = vpack.c.b16 %v2266, %v2257
      %v2483 = vpack.c.b16 %v2267, %v2258
      %v2484 = vpack.c.b16 %v2268, %v2259
      %v2485 = vpack.c.b16 %v2269, %v2260
      %v2486 = vpack.c.b16 %v2270, %v2261
      %v2487 = vpack.c.b16 %v2271, %v2262
      %v2488 = vpack.c.b16 %v2272, %v2263
      %v2489 = vpack.c.b16 %v2282, %v2273
      %v2490 = vpack.c.b16 %v2283, %v2274
      %v2491 = vpack.c.b16 %v2284, %v2275
      %v2492 = vpack.c.b16 %v2285, %v2276
      %v2493 = vpack.c.b16 %v2286, %v2277
      %v2494 = vpack.c.b16 %v2287, %v2278
      %v2495 = vpack.c.b16 %v2288, %v2279
      %v2496 = vpack.c.b16 %v2289, %v2280
      %v2497 = vpack.c.b16 %v2290, %v2281
      %v2498 = vpack.c.b16 %v2300, %v2291
      %v2499 = vpack.c.b16 %v2301, %v2292
      %v2500 = vpack.c.b16 %v2302, %v2293
      %v2501 = vpack.c.b16 %v2303, %v2294
      %v2502 = vpack.c.b16 %v2304, %v2295
      %v2503 = vpack.c.b16 %v2305, %v2296
      %v2504 = vpack.c.b16 %v2306, %v2297
      %v2505 = vpack.c.b16 %v2307, %v2298
      %v2506 = vpack.c.b16 %v2308, %v2299
      %v2507 = vpack.c.b16 %v2318, %v2309
      %v2508 = vpack.c.b16 %v2319, %v2310
      %v2509 = vpack.c.b16 %v2320, %v2311
      %v2510 = vpack.c.b16 %v2321, %v2312
      %v2511 = vpack.c.b16 %v2322, %v2313
      %v2512 = vpack.c.b16 %v2323, %v2314
      %v2513 = vpack.c.b16 %v2324, %v2315
      %v2514 = vpack.c.b16 %v2325, %v2316
      %v2515 = vpack.c.b16 %v2326, %v2317
      %v2516 = vpack.c.b16 %v2336, %v2327
      %v2517 = vpack.c.b16 %v2337, %v2328
      %v2518 = vpack.c.b16 %v2338, %v2329
      %v2519 = vpack.c.b16 %v2339, %v2330
      %v2520 = vpack.c.b16 %v2340, %v2331
      %v2521 = vpack.c.b16 %v2341, %v2332
      %v2522 = vpack.c.b16 %v2342, %v2333
      %v2523 = vpack.c.b16 %v2343, %v2334
      %v2524 = vpack.c.b16 %v2344, %v2335
      %v2525 = vpack.c.b16 %v2354, %v2345
      %v2526 = vpack.c.b16 %v2355, %v2346
      %v2527 = vpack.c.b16 %v2356, %v2347
      %v2528 = vpack.c.b16 %v2357, %v2348
      %v2529 = vpack.c.b16 %v2358, %v2349
      %v2530 = vpack.c.b16 %v2359, %v2350
      %v2531 = vpack.c.b16 %v2360, %v2351
      %v2532 = vpack.c.b16 %v2361, %v2352
      %v2533 = vpack.c.b16 %v2362, %v2353
      %v2534 = vpack.c.b16 %v2372, %v2363
      %v2535 = vpack.c.b16 %v2373, %v2364
      %v2536 = vpack.c.b16 %v2374, %v2365
      %v2537 = vpack.c.b16 %v2375, %v2366
      %v2538 = vpack.c.b16 %v2376, %v2367
      %v2539 = vpack.c.b16 %v2377, %v2368
      %v2540 = vpack.c.b16 %v2378, %v2369
      %v2541 = vpack.c.b16 %v2379, %v2370
      %v2542 = vpack.c.b16 %v2380, %v2371
      %v2543 = vpack.c.b16 %v2390, %v2381
      %v2544 = vpack.c.b16 %v2391, %v2382
      %v2545 = vpack.c.b16 %v2392, %v2383
      %v2546 = vpack.c.b16 %v2393, %v2384
      %v2547 = vpack.c.b16 %v2394, %v2385
      %v2548 = vpack.c.b16 %v2395, %v2386
      %v2549 = vpack.c.b16 %v2396, %v2387
      %v2550 = vpack.c.b16 %v2397, %v2388
      %v2551 = vpack.c.b16 %v2398, %v2389
      %v2552 = vpack.c.b16 %v2408, %v2399
      %v2553 = vpack.c.b16 %v2409, %v2400
      %v2554 = vpack.c.b16 %v2410, %v2401
      %v2555 = vpack.c.b16 %v2411, %v2402
      %v2556 = vpack.c.b16 %v2412, %v2403
      %v2557 = vpack.c.b16 %v2413, %v2404
      %v2558 = vpack.c.b16 %v2414, %v2405
      %v2559 = vpack.c.b16 %v2415, %v2406
      %v2560 = vpack.c.b16 %v2416, %v2407
      %2705 = vmatpush.bf16.msra.mxu0 %v2480
      %2706 = vmatpush.bf16.msra.mxu0 %v2471
      %2707 = vmatpush.bf16.msra.mxu0 %v2462
      %2708 = vmatpush.bf16.msra.mxu0 %v2453
      %2709 = vmatpush.bf16.msra.mxu0 %v2444
      %2710 = vmatpush.bf16.msra.mxu0 %v2435
      %2711 = vmatpush.bf16.msra.mxu0 %v2426
      %2712 = vmatpush.bf16.msra.mxu0 %v2417
      %2713 = vmatmul.bf16.gmra.mxu0 %v1801
      %v2714 = vpop.f32.mrf.mxu0
      %v2715 = vadd.f32 %v1967, %v2714
      %v2716 = vpop.f32.mrf.mxu0
      %2717 = vdwg.mxu0
      %2718 = vmatpush.bf16.msra.mxu0 %v2552
      %2719 = vmatpush.bf16.msra.mxu0 %v2543
      %2720 = vmatpush.bf16.msra.mxu0 %v2534
      %2721 = vmatpush.bf16.msra.mxu0 %v2525
      %2722 = vmatpush.bf16.msra.mxu0 %v2516
      %2723 = vmatpush.bf16.msra.mxu0 %v2507
      %2724 = vmatpush.bf16.msra.mxu0 %v2498
      %2725 = vmatpush.bf16.msra.mxu0 %v2489
      %2726 = vmatmul.bf16.gmra.mxu0 %v1802
      %v2727 = vpop.f32.mrf.mxu0
      %v2728 = vadd.f32 %v2715, %v2727
      %v2729 = vpop.f32.mrf.mxu0
      %2730 = vdwg.mxu0
      %2731 = vmatpush.bf16.msra.mxu0 %v2481
      %2732 = vmatpush.bf16.msra.mxu0 %v2472
      %2733 = vmatpush.bf16.msra.mxu0 %v2463
      %2734 = vmatpush.bf16.msra.mxu0 %v2454
      %2735 = vmatpush.bf16.msra.mxu0 %v2445
      %2736 = vmatpush.bf16.msra.mxu0 %v2436
      %2737 = vmatpush.bf16.msra.mxu0 %v2427
      %2738 = vmatpush.bf16.msra.mxu0 %v2418
      %2739 = vmatmul.bf16.gmra.mxu0 %v1801
      %v2740 = vpop.f32.mrf.mxu0
      %v2741 = vadd.f32 %v1967, %v2740
      %v2742 = vpop.f32.mrf.mxu0
      %2743 = vdwg.mxu0
      %2744 = vmatpush.bf16.msra.mxu0 %v2553
      %2745 = vmatpush.bf16.msra.mxu0 %v2544
      %2746 = vmatpush.bf16.msra.mxu0 %v2535
      %2747 = vmatpush.bf16.msra.mxu0 %v2526
      %2748 = vmatpush.bf16.msra.mxu0 %v2517
      %2749 = vmatpush.bf16.msra.mxu0 %v2508
      %2750 = vmatpush.bf16.msra.mxu0 %v2499
      %2751 = vmatpush.bf16.msra.mxu0 %v2490
      %2752 = vmatmul.bf16.gmra.mxu0 %v1802
      %v2753 = vpop.f32.mrf.mxu0
      %v2754 = vadd.f32 %v2741, %v2753
      %v2755 = vpop.f32.mrf.mxu0
      %2756 = vdwg.mxu0
      %2757 = vmatpush.bf16.msra.mxu0 %v2482
      %2758 = vmatpush.bf16.msra.mxu0 %v2473
      %2759 = vmatpush.bf16.msra.mxu0 %v2464
      %2760 = vmatpush.bf16.msra.mxu0 %v2455
      %2761 = vmatpush.bf16.msra.mxu0 %v2446
      %2762 = vmatpush.bf16.msra.mxu0 %v2437
      %2763 = vmatpush.bf16.msra.mxu0 %v2428
      %2764 = vmatpush.bf16.msra.mxu0 %v2419
      %2765 = vmatmul.bf16.gmra.mxu0 %v1801
      %v2766 = vpop.f32.mrf.mxu0
      %v2767 = vadd.f32 %v1967, %v2766
      %v2768 = vpop.f32.mrf.mxu0
      %2769 = vdwg.mxu0
      %2770 = vmatpush.bf16.msra.mxu0 %v2554
      %2771 = vmatpush.bf16.msra.mxu0 %v2545
      %2772 = vmatpush.bf16.msra.mxu0 %v2536
      %2773 = vmatpush.bf16.msra.mxu0 %v2527
      %2774 = vmatpush.bf16.msra.mxu0 %v2518
      %2775 = vmatpush.bf16.msra.mxu0 %v2509
      %2776 = vmatpush.bf16.msra.mxu0 %v2500
      %2777 = vmatpush.bf16.msra.mxu0 %v2491
      %2778 = vmatmul.bf16.gmra.mxu0 %v1802
      %v2779 = vpop.f32.mrf.mxu0
      %v2780 = vadd.f32 %v2767, %v2779
      %v2781 = vpop.f32.mrf.mxu0
      %2782 = vdwg.mxu0
      %2783 = vmatpush.bf16.msra.mxu0 %v2483
      %2784 = vmatpush.bf16.msra.mxu0 %v2474
      %2785 = vmatpush.bf16.msra.mxu0 %v2465
      %2786 = vmatpush.bf16.msra.mxu0 %v2456
      %2787 = vmatpush.bf16.msra.mxu0 %v2447
      %2788 = vmatpush.bf16.msra.mxu0 %v2438
      %2789 = vmatpush.bf16.msra.mxu0 %v2429
      %2790 = vmatpush.bf16.msra.mxu0 %v2420
      %2791 = vmatmul.bf16.gmra.mxu0 %v1801
      %v2792 = vpop.f32.mrf.mxu0
      %v2793 = vadd.f32 %v1967, %v2792
      %v2794 = vpop.f32.mrf.mxu0
      %2795 = vdwg.mxu0
      %2796 = vmatpush.bf16.msra.mxu0 %v2555
      %2797 = vmatpush.bf16.msra.mxu0 %v2546
      %2798 = vmatpush.bf16.msra.mxu0 %v2537
      %2799 = vmatpush.bf16.msra.mxu0 %v2528
      %2800 = vmatpush.bf16.msra.mxu0 %v2519
      %2801 = vmatpush.bf16.msra.mxu0 %v2510
      %2802 = vmatpush.bf16.msra.mxu0 %v2501
      %2803 = vmatpush.bf16.msra.mxu0 %v2492
      %2804 = vmatmul.bf16.gmra.mxu0 %v1802
      %v2805 = vpop.f32.mrf.mxu0
      %v2806 = vadd.f32 %v2793, %v2805
      %v2807 = vpop.f32.mrf.mxu0
      %2808 = vdwg.mxu0
      %2809 = vmatpush.bf16.msra.mxu0 %v2484
      %2810 = vmatpush.bf16.msra.mxu0 %v2475
      %2811 = vmatpush.bf16.msra.mxu0 %v2466
      %2812 = vmatpush.bf16.msra.mxu0 %v2457
      %2813 = vmatpush.bf16.msra.mxu0 %v2448
      %2814 = vmatpush.bf16.msra.mxu0 %v2439
      %2815 = vmatpush.bf16.msra.mxu0 %v2430
      %2816 = vmatpush.bf16.msra.mxu0 %v2421
      %2817 = vmatmul.bf16.gmra.mxu0 %v1801
      %v2818 = vpop.f32.mrf.mxu0
      %v2819 = vadd.f32 %v1967, %v2818
      %v2820 = vpop.f32.mrf.mxu0
      %2821 = vdwg.mxu0
      %2822 = vmatpush.bf16.msra.mxu0 %v2556
      %2823 = vmatpush.bf16.msra.mxu0 %v2547
      %2824 = vmatpush.bf16.msra.mxu0 %v2538
      %2825 = vmatpush.bf16.msra.mxu0 %v2529
      %2826 = vmatpush.bf16.msra.mxu0 %v2520
      %2827 = vmatpush.bf16.msra.mxu0 %v2511
      %2828 = vmatpush.bf16.msra.mxu0 %v2502
      %2829 = vmatpush.bf16.msra.mxu0 %v2493
      %2830 = vmatmul.bf16.gmra.mxu0 %v1802
      %v2831 = vpop.f32.mrf.mxu0
      %v2832 = vadd.f32 %v2819, %v2831
      %v2833 = vpop.f32.mrf.mxu0
      %2834 = vdwg.mxu0
      %2835 = vmatpush.bf16.msra.mxu0 %v2485
      %2836 = vmatpush.bf16.msra.mxu0 %v2476
      %2837 = vmatpush.bf16.msra.mxu0 %v2467
      %2838 = vmatpush.bf16.msra.mxu0 %v2458
      %2839 = vmatpush.bf16.msra.mxu0 %v2449
      %2840 = vmatpush.bf16.msra.mxu0 %v2440
      %2841 = vmatpush.bf16.msra.mxu0 %v2431
      %2842 = vmatpush.bf16.msra.mxu0 %v2422
      %2843 = vmatmul.bf16.gmra.mxu0 %v1801
      %v2844 = vpop.f32.mrf.mxu0
      %v2845 = vadd.f32 %v1967, %v2844
      %v2846 = vpop.f32.mrf.mxu0
      %2847 = vdwg.mxu0
      %2848 = vmatpush.bf16.msra.mxu0 %v2557
      %2849 = vmatpush.bf16.msra.mxu0 %v2548
      %2850 = vmatpush.bf16.msra.mxu0 %v2539
      %2851 = vmatpush.bf16.msra.mxu0 %v2530
      %2852 = vmatpush.bf16.msra.mxu0 %v2521
      %2853 = vmatpush.bf16.msra.mxu0 %v2512
      %2854 = vmatpush.bf16.msra.mxu0 %v2503
      %2855 = vmatpush.bf16.msra.mxu0 %v2494
      %2856 = vmatmul.bf16.gmra.mxu0 %v1802
      %v2857 = vpop.f32.mrf.mxu0
      %v2858 = vadd.f32 %v2845, %v2857
      %v2859 = vpop.f32.mrf.mxu0
      %2860 = vdwg.mxu0
      %2861 = vmatpush.bf16.msra.mxu0 %v2486
      %2862 = vmatpush.bf16.msra.mxu0 %v2477
      %2863 = vmatpush.bf16.msra.mxu0 %v2468
      %2864 = vmatpush.bf16.msra.mxu0 %v2459
      %2865 = vmatpush.bf16.msra.mxu0 %v2450
      %2866 = vmatpush.bf16.msra.mxu0 %v2441
      %2867 = vmatpush.bf16.msra.mxu0 %v2432
      %2868 = vmatpush.bf16.msra.mxu0 %v2423
      %2869 = vmatmul.bf16.gmra.mxu0 %v1801
      %v2870 = vpop.f32.mrf.mxu0
      %v2871 = vadd.f32 %v1967, %v2870
      %v2872 = vpop.f32.mrf.mxu0
      %2873 = vdwg.mxu0
      %2874 = vmatpush.bf16.msra.mxu0 %v2558
      %2875 = vmatpush.bf16.msra.mxu0 %v2549
      %2876 = vmatpush.bf16.msra.mxu0 %v2540
      %2877 = vmatpush.bf16.msra.mxu0 %v2531
      %2878 = vmatpush.bf16.msra.mxu0 %v2522
      %2879 = vmatpush.bf16.msra.mxu0 %v2513
      %2880 = vmatpush.bf16.msra.mxu0 %v2504
      %2881 = vmatpush.bf16.msra.mxu0 %v2495
      %2882 = vmatmul.bf16.gmra.mxu0 %v1802
      %v2883 = vpop.f32.mrf.mxu0
      %v2884 = vadd.f32 %v2871, %v2883
      %v2885 = vpop.f32.mrf.mxu0
      %2886 = vdwg.mxu0
      %2887 = vmatpush.bf16.msra.mxu0 %v2487
      %2888 = vmatpush.bf16.msra.mxu0 %v2478
      %2889 = vmatpush.bf16.msra.mxu0 %v2469
      %2890 = vmatpush.bf16.msra.mxu0 %v2460
      %2891 = vmatpush.bf16.msra.mxu0 %v2451
      %2892 = vmatpush.bf16.msra.mxu0 %v2442
      %2893 = vmatpush.bf16.msra.mxu0 %v2433
      %2894 = vmatpush.bf16.msra.mxu0 %v2424
      %2895 = vmatmul.bf16.gmra.mxu0 %v1801
      %v2896 = vpop.f32.mrf.mxu0
      %v2897 = vadd.f32 %v1967, %v2896
      %v2898 = vpop.f32.mrf.mxu0
      %2899 = vdwg.mxu0
      %2900 = vmatpush.bf16.msra.mxu0 %v2559
      %2901 = vmatpush.bf16.msra.mxu0 %v2550
      %2902 = vmatpush.bf16.msra.mxu0 %v2541
      %2903 = vmatpush.bf16.msra.mxu0 %v2532
      %2904 = vmatpush.bf16.msra.mxu0 %v2523
      %2905 = vmatpush.bf16.msra.mxu0 %v2514
      %2906 = vmatpush.bf16.msra.mxu0 %v2505
      %2907 = vmatpush.bf16.msra.mxu0 %v2496
      %2908 = vmatmul.bf16.gmra.mxu0 %v1802
      %v2909 = vpop.f32.mrf.mxu0
      %v2910 = vadd.f32 %v2897, %v2909
      %v2911 = vpop.f32.mrf.mxu0
      %2912 = vdwg.mxu0
      %2913 = vmatpush.bf16.msra.mxu0 %v2488
      %2914 = vmatpush.bf16.msra.mxu0 %v2479
      %2915 = vmatpush.bf16.msra.mxu0 %v2470
      %2916 = vmatpush.bf16.msra.mxu0 %v2461
      %2917 = vmatpush.bf16.msra.mxu0 %v2452
      %2918 = vmatpush.bf16.msra.mxu0 %v2443
      %2919 = vmatpush.bf16.msra.mxu0 %v2434
      %2920 = vmatpush.bf16.msra.mxu0 %v2425
      %2921 = vmatmul.bf16.gmra.mxu0 %v1801
      %v2922 = vpop.f32.mrf.mxu0
      %v2923 = vadd.f32 %v1967, %v2922
      %v2924 = vpop.f32.mrf.mxu0
      %2925 = vdwg.mxu0
      %2926 = vmatpush.bf16.msra.mxu0 %v2560
      %2927 = vmatpush.bf16.msra.mxu0 %v2551
      %2928 = vmatpush.bf16.msra.mxu0 %v2542
      %2929 = vmatpush.bf16.msra.mxu0 %v2533
      %2930 = vmatpush.bf16.msra.mxu0 %v2524
      %2931 = vmatpush.bf16.msra.mxu0 %v2515
      %2932 = vmatpush.bf16.msra.mxu0 %v2506
      %2933 = vmatpush.bf16.msra.mxu0 %v2497
      %2934 = vmatmul.bf16.gmra.mxu0 %v1802
      %v2935 = vpop.f32.mrf.mxu0
      %v2936 = vadd.f32 %v2923, %v2935
      %v2937 = vpop.f32.mrf.mxu0
      %2938 = vdwg.mxu0
      %2957 = vrot.lane.b32.xlu0 %v1515, 127
      %v2958 = vpop.permute.xlu0 %2957
      %2959 = vrot.lane.b32.xlu0 %v1543, 127
      %v2960 = vpop.permute.xlu0 %2959
      %2961 = vrot.lane.b32.xlu0 %v1571, 127
      %v2962 = vpop.permute.xlu0 %2961
      %2963 = vrot.lane.b32.xlu0 %v1599, 127
      %v2964 = vpop.permute.xlu0 %2963
      %2965 = vrot.lane.b32.xlu0 %v1627, 127
      %v2966 = vpop.permute.xlu0 %2965
      %2967 = vrot.lane.b32.xlu0 %v1655, 127
      %v2968 = vpop.permute.xlu0 %2967
      %2969 = vrot.lane.b32.xlu0 %v1683, 127
      %v2970 = vpop.permute.xlu0 %2969
      %2971 = vrot.lane.b32.xlu0 %v1711, 127
      %v2972 = vpop.permute.xlu0 %2971
      %2973 = vrot.lane.b32.xlu0 %v1739, 127
      %v2974 = vpop.permute.xlu0 %2973
      %2975 = vrot.lane.b32.xlu0 %v1517, 127
      %v2976 = vpop.permute.xlu0 %2975
      %2977 = vrot.lane.b32.xlu0 %v1545, 127
      %v2978 = vpop.permute.xlu0 %2977
      %2979 = vrot.lane.b32.xlu0 %v1573, 127
      %v2980 = vpop.permute.xlu0 %2979
      %2981 = vrot.lane.b32.xlu0 %v1601, 127
      %v2982 = vpop.permute.xlu0 %2981
      %2983 = vrot.lane.b32.xlu0 %v1629, 127
      %v2984 = vpop.permute.xlu0 %2983
      %2985 = vrot.lane.b32.xlu0 %v1657, 127
      %v2986 = vpop.permute.xlu0 %2985
      %2987 = vrot.lane.b32.xlu0 %v1685, 127
      %v2988 = vpop.permute.xlu0 %2987
      %2989 = vrot.lane.b32.xlu0 %v1713, 127
      %v2990 = vpop.permute.xlu0 %2989
      %2991 = vrot.lane.b32.xlu0 %v1741, 127
      %v2992 = vpop.permute.xlu0 %2991
      %vm2993 = vcmask 1039360
      %v2994 = vsel %vm2993, %v2958, %v2960
      %v2995 = vsel %vm2993, %v2960, %v2962
      %v2996 = vsel %vm2993, %v2962, %v2964
      %v2997 = vsel %vm2993, %v2964, %v2966
      %v2998 = vsel %vm2993, %v2966, %v2968
      %v2999 = vsel %vm2993, %v2968, %v2970
      %v3000 = vsel %vm2993, %v2970, %v2972
      %v3001 = vsel %vm2993, %v2972, %v2974
      %v3002 = vsel %vm2993, %v2976, %v2978
      %v3003 = vsel %vm2993, %v2978, %v2980
      %v3004 = vsel %vm2993, %v2980, %v2982
      %v3005 = vsel %vm2993, %v2982, %v2984
      %v3006 = vsel %vm2993, %v2984, %v2986
      %v3007 = vsel %vm2993, %v2986, %v2988
      %v3008 = vsel %vm2993, %v2988, %v2990
      %v3009 = vsel %vm2993, %v2990, %v2992
      %3028 = vrot.lane.b32.xlu0 %v1515, 126
      %v3029 = vpop.permute.xlu0 %3028
      %3030 = vrot.lane.b32.xlu0 %v1543, 126
      %v3031 = vpop.permute.xlu0 %3030
      %3032 = vrot.lane.b32.xlu0 %v1571, 126
      %v3033 = vpop.permute.xlu0 %3032
      %3034 = vrot.lane.b32.xlu0 %v1599, 126
      %v3035 = vpop.permute.xlu0 %3034
      %3036 = vrot.lane.b32.xlu0 %v1627, 126
      %v3037 = vpop.permute.xlu0 %3036
      %3038 = vrot.lane.b32.xlu0 %v1655, 126
      %v3039 = vpop.permute.xlu0 %3038
      %3040 = vrot.lane.b32.xlu0 %v1683, 126
      %v3041 = vpop.permute.xlu0 %3040
      %3042 = vrot.lane.b32.xlu0 %v1711, 126
      %v3043 = vpop.permute.xlu0 %3042
      %3044 = vrot.lane.b32.xlu0 %v1739, 126
      %v3045 = vpop.permute.xlu0 %3044
      %3046 = vrot.lane.b32.xlu0 %v1517, 126
      %v3047 = vpop.permute.xlu0 %3046
      %3048 = vrot.lane.b32.xlu0 %v1545, 126
      %v3049 = vpop.permute.xlu0 %3048
      %3050 = vrot.lane.b32.xlu0 %v1573, 126
      %v3051 = vpop.permute.xlu0 %3050
      %3052 = vrot.lane.b32.xlu0 %v1601, 126
      %v3053 = vpop.permute.xlu0 %3052
      %3054 = vrot.lane.b32.xlu0 %v1629, 126
      %v3055 = vpop.permute.xlu0 %3054
      %3056 = vrot.lane.b32.xlu0 %v1657, 126
      %v3057 = vpop.permute.xlu0 %3056
      %3058 = vrot.lane.b32.xlu0 %v1685, 126
      %v3059 = vpop.permute.xlu0 %3058
      %3060 = vrot.lane.b32.xlu0 %v1713, 126
      %v3061 = vpop.permute.xlu0 %3060
      %3062 = vrot.lane.b32.xlu0 %v1741, 126
      %v3063 = vpop.permute.xlu0 %3062
      %vm3064 = vcmask 1031168
      %v3065 = vsel %vm3064, %v3029, %v3031
      %v3066 = vsel %vm3064, %v3031, %v3033
      %v3067 = vsel %vm3064, %v3033, %v3035
      %v3068 = vsel %vm3064, %v3035, %v3037
      %v3069 = vsel %vm3064, %v3037, %v3039
      %v3070 = vsel %vm3064, %v3039, %v3041
      %v3071 = vsel %vm3064, %v3041, %v3043
      %v3072 = vsel %vm3064, %v3043, %v3045
      %v3073 = vsel %vm3064, %v3047, %v3049
      %v3074 = vsel %vm3064, %v3049, %v3051
      %v3075 = vsel %vm3064, %v3051, %v3053
      %v3076 = vsel %vm3064, %v3053, %v3055
      %v3077 = vsel %vm3064, %v3055, %v3057
      %v3078 = vsel %vm3064, %v3057, %v3059
      %v3079 = vsel %vm3064, %v3059, %v3061
      %v3080 = vsel %vm3064, %v3061, %v3063
      %3099 = vrot.lane.b32.xlu0 %v1515, 94
      %v3100 = vpop.permute.xlu0 %3099
      %3101 = vrot.lane.b32.xlu0 %v1543, 94
      %v3102 = vpop.permute.xlu0 %3101
      %3103 = vrot.lane.b32.xlu0 %v1571, 94
      %v3104 = vpop.permute.xlu0 %3103
      %3105 = vrot.lane.b32.xlu0 %v1599, 94
      %v3106 = vpop.permute.xlu0 %3105
      %3107 = vrot.lane.b32.xlu0 %v1627, 94
      %v3108 = vpop.permute.xlu0 %3107
      %3109 = vrot.lane.b32.xlu0 %v1655, 94
      %v3110 = vpop.permute.xlu0 %3109
      %3111 = vrot.lane.b32.xlu0 %v1683, 94
      %v3112 = vpop.permute.xlu0 %3111
      %3113 = vrot.lane.b32.xlu0 %v1711, 94
      %v3114 = vpop.permute.xlu0 %3113
      %3115 = vrot.lane.b32.xlu0 %v1739, 94
      %v3116 = vpop.permute.xlu0 %3115
      %3117 = vrot.lane.b32.xlu0 %v1517, 94
      %v3118 = vpop.permute.xlu0 %3117
      %3119 = vrot.lane.b32.xlu0 %v1545, 94
      %v3120 = vpop.permute.xlu0 %3119
      %3121 = vrot.lane.b32.xlu0 %v1573, 94
      %v3122 = vpop.permute.xlu0 %3121
      %3123 = vrot.lane.b32.xlu0 %v1601, 94
      %v3124 = vpop.permute.xlu0 %3123
      %3125 = vrot.lane.b32.xlu0 %v1629, 94
      %v3126 = vpop.permute.xlu0 %3125
      %3127 = vrot.lane.b32.xlu0 %v1657, 94
      %v3128 = vpop.permute.xlu0 %3127
      %3129 = vrot.lane.b32.xlu0 %v1685, 94
      %v3130 = vpop.permute.xlu0 %3129
      %3131 = vrot.lane.b32.xlu0 %v1713, 94
      %v3132 = vpop.permute.xlu0 %3131
      %3133 = vrot.lane.b32.xlu0 %v1741, 94
      %v3134 = vpop.permute.xlu0 %3133
      %vm3135 = vcmask 769024
      %v3136 = vsel %vm3135, %v3100, %v3102
      %v3137 = vsel %vm3135, %v3102, %v3104
      %v3138 = vsel %vm3135, %v3104, %v3106
      %v3139 = vsel %vm3135, %v3106, %v3108
      %v3140 = vsel %vm3135, %v3108, %v3110
      %v3141 = vsel %vm3135, %v3110, %v3112
      %v3142 = vsel %vm3135, %v3112, %v3114
      %v3143 = vsel %vm3135, %v3114, %v3116
      %v3144 = vsel %vm3135, %v3118, %v3120
      %v3145 = vsel %vm3135, %v3120, %v3122
      %v3146 = vsel %vm3135, %v3122, %v3124
      %v3147 = vsel %vm3135, %v3124, %v3126
      %v3148 = vsel %vm3135, %v3126, %v3128
      %v3149 = vsel %vm3135, %v3128, %v3130
      %v3150 = vsel %vm3135, %v3130, %v3132
      %v3151 = vsel %vm3135, %v3132, %v3134
      %3170 = vrot.lane.b32.xlu0 %v1515, 93
      %v3171 = vpop.permute.xlu0 %3170
      %3172 = vrot.lane.b32.xlu0 %v1543, 93
      %v3173 = vpop.permute.xlu0 %3172
      %3174 = vrot.lane.b32.xlu0 %v1571, 93
      %v3175 = vpop.permute.xlu0 %3174
      %3176 = vrot.lane.b32.xlu0 %v1599, 93
      %v3177 = vpop.permute.xlu0 %3176
      %3178 = vrot.lane.b32.xlu0 %v1627, 93
      %v3179 = vpop.permute.xlu0 %3178
      %3180 = vrot.lane.b32.xlu0 %v1655, 93
      %v3181 = vpop.permute.xlu0 %3180
      %3182 = vrot.lane.b32.xlu0 %v1683, 93
      %v3183 = vpop.permute.xlu0 %3182
      %3184 = vrot.lane.b32.xlu0 %v1711, 93
      %v3185 = vpop.permute.xlu0 %3184
      %3186 = vrot.lane.b32.xlu0 %v1739, 93
      %v3187 = vpop.permute.xlu0 %3186
      %3188 = vrot.lane.b32.xlu0 %v1517, 93
      %v3189 = vpop.permute.xlu0 %3188
      %3190 = vrot.lane.b32.xlu0 %v1545, 93
      %v3191 = vpop.permute.xlu0 %3190
      %3192 = vrot.lane.b32.xlu0 %v1573, 93
      %v3193 = vpop.permute.xlu0 %3192
      %3194 = vrot.lane.b32.xlu0 %v1601, 93
      %v3195 = vpop.permute.xlu0 %3194
      %3196 = vrot.lane.b32.xlu0 %v1629, 93
      %v3197 = vpop.permute.xlu0 %3196
      %3198 = vrot.lane.b32.xlu0 %v1657, 93
      %v3199 = vpop.permute.xlu0 %3198
      %3200 = vrot.lane.b32.xlu0 %v1685, 93
      %v3201 = vpop.permute.xlu0 %3200
      %3202 = vrot.lane.b32.xlu0 %v1713, 93
      %v3203 = vpop.permute.xlu0 %3202
      %3204 = vrot.lane.b32.xlu0 %v1741, 93
      %v3205 = vpop.permute.xlu0 %3204
      %vm3206 = vcmask 760832
      %v3207 = vsel %vm3206, %v3171, %v3173
      %v3208 = vsel %vm3206, %v3173, %v3175
      %v3209 = vsel %vm3206, %v3175, %v3177
      %v3210 = vsel %vm3206, %v3177, %v3179
      %v3211 = vsel %vm3206, %v3179, %v3181
      %v3212 = vsel %vm3206, %v3181, %v3183
      %v3213 = vsel %vm3206, %v3183, %v3185
      %v3214 = vsel %vm3206, %v3185, %v3187
      %v3215 = vsel %vm3206, %v3189, %v3191
      %v3216 = vsel %vm3206, %v3191, %v3193
      %v3217 = vsel %vm3206, %v3193, %v3195
      %v3218 = vsel %vm3206, %v3195, %v3197
      %v3219 = vsel %vm3206, %v3197, %v3199
      %v3220 = vsel %vm3206, %v3199, %v3201
      %v3221 = vsel %vm3206, %v3201, %v3203
      %v3222 = vsel %vm3206, %v3203, %v3205
      %3241 = vrot.lane.b32.xlu0 %v1515, 92
      %v3242 = vpop.permute.xlu0 %3241
      %3243 = vrot.lane.b32.xlu0 %v1543, 92
      %v3244 = vpop.permute.xlu0 %3243
      %3245 = vrot.lane.b32.xlu0 %v1571, 92
      %v3246 = vpop.permute.xlu0 %3245
      %3247 = vrot.lane.b32.xlu0 %v1599, 92
      %v3248 = vpop.permute.xlu0 %3247
      %3249 = vrot.lane.b32.xlu0 %v1627, 92
      %v3250 = vpop.permute.xlu0 %3249
      %3251 = vrot.lane.b32.xlu0 %v1655, 92
      %v3252 = vpop.permute.xlu0 %3251
      %3253 = vrot.lane.b32.xlu0 %v1683, 92
      %v3254 = vpop.permute.xlu0 %3253
      %3255 = vrot.lane.b32.xlu0 %v1711, 92
      %v3256 = vpop.permute.xlu0 %3255
      %3257 = vrot.lane.b32.xlu0 %v1739, 92
      %v3258 = vpop.permute.xlu0 %3257
      %3259 = vrot.lane.b32.xlu0 %v1517, 92
      %v3260 = vpop.permute.xlu0 %3259
      %3261 = vrot.lane.b32.xlu0 %v1545, 92
      %v3262 = vpop.permute.xlu0 %3261
      %3263 = vrot.lane.b32.xlu0 %v1573, 92
      %v3264 = vpop.permute.xlu0 %3263
      %3265 = vrot.lane.b32.xlu0 %v1601, 92
      %v3266 = vpop.permute.xlu0 %3265
      %3267 = vrot.lane.b32.xlu0 %v1629, 92
      %v3268 = vpop.permute.xlu0 %3267
      %3269 = vrot.lane.b32.xlu0 %v1657, 92
      %v3270 = vpop.permute.xlu0 %3269
      %3271 = vrot.lane.b32.xlu0 %v1685, 92
      %v3272 = vpop.permute.xlu0 %3271
      %3273 = vrot.lane.b32.xlu0 %v1713, 92
      %v3274 = vpop.permute.xlu0 %3273
      %3275 = vrot.lane.b32.xlu0 %v1741, 92
      %v3276 = vpop.permute.xlu0 %3275
      %vm3277 = vcmask 752640
      %v3278 = vsel %vm3277, %v3242, %v3244
      %v3279 = vsel %vm3277, %v3244, %v3246
      %v3280 = vsel %vm3277, %v3246, %v3248
      %v3281 = vsel %vm3277, %v3248, %v3250
      %v3282 = vsel %vm3277, %v3250, %v3252
      %v3283 = vsel %vm3277, %v3252, %v3254
      %v3284 = vsel %vm3277, %v3254, %v3256
      %v3285 = vsel %vm3277, %v3256, %v3258
      %v3286 = vsel %vm3277, %v3260, %v3262
      %v3287 = vsel %vm3277, %v3262, %v3264
      %v3288 = vsel %vm3277, %v3264, %v3266
      %v3289 = vsel %vm3277, %v3266, %v3268
      %v3290 = vsel %vm3277, %v3268, %v3270
      %v3291 = vsel %vm3277, %v3270, %v3272
      %v3292 = vsel %vm3277, %v3272, %v3274
      %v3293 = vsel %vm3277, %v3274, %v3276
      %3314 = vrot.lane.b32.xlu0 %v1515, 60
      %v3315 = vpop.permute.xlu0 %3314
      %3316 = vrot.lane.b32.xlu0 %v1543, 60
      %v3317 = vpop.permute.xlu0 %3316
      %3318 = vrot.lane.b32.xlu0 %v1571, 60
      %v3319 = vpop.permute.xlu0 %3318
      %3320 = vrot.lane.b32.xlu0 %v1599, 60
      %v3321 = vpop.permute.xlu0 %3320
      %3322 = vrot.lane.b32.xlu0 %v1627, 60
      %v3323 = vpop.permute.xlu0 %3322
      %3324 = vrot.lane.b32.xlu0 %v1655, 60
      %v3325 = vpop.permute.xlu0 %3324
      %3326 = vrot.lane.b32.xlu0 %v1683, 60
      %v3327 = vpop.permute.xlu0 %3326
      %3328 = vrot.lane.b32.xlu0 %v1711, 60
      %v3329 = vpop.permute.xlu0 %3328
      %3330 = vrot.lane.b32.xlu0 %v1739, 60
      %v3331 = vpop.permute.xlu0 %3330
      %3332 = vrot.lane.b32.xlu0 %v1767, 60
      %v3333 = vpop.permute.xlu0 %3332
      %3334 = vrot.lane.b32.xlu0 %v1517, 60
      %v3335 = vpop.permute.xlu0 %3334
      %3336 = vrot.lane.b32.xlu0 %v1545, 60
      %v3337 = vpop.permute.xlu0 %3336
      %3338 = vrot.lane.b32.xlu0 %v1573, 60
      %v3339 = vpop.permute.xlu0 %3338
      %3340 = vrot.lane.b32.xlu0 %v1601, 60
      %v3341 = vpop.permute.xlu0 %3340
      %3342 = vrot.lane.b32.xlu0 %v1629, 60
      %v3343 = vpop.permute.xlu0 %3342
      %3344 = vrot.lane.b32.xlu0 %v1657, 60
      %v3345 = vpop.permute.xlu0 %3344
      %3346 = vrot.lane.b32.xlu0 %v1685, 60
      %v3347 = vpop.permute.xlu0 %3346
      %3348 = vrot.lane.b32.xlu0 %v1713, 60
      %v3349 = vpop.permute.xlu0 %3348
      %3350 = vrot.lane.b32.xlu0 %v1741, 60
      %v3351 = vpop.permute.xlu0 %3350
      %3352 = vrot.lane.b32.xlu0 %v1769, 60
      %v3353 = vpop.permute.xlu0 %3352
      %vm3354 = vcmask 490496
      %v3355 = vsel %vm3354, %v3315, %v3317
      %v3356 = vsel %vm3354, %v3317, %v3319
      %v3357 = vsel %vm3354, %v3319, %v3321
      %v3358 = vsel %vm3354, %v3321, %v3323
      %v3359 = vsel %vm3354, %v3323, %v3325
      %v3360 = vsel %vm3354, %v3325, %v3327
      %v3361 = vsel %vm3354, %v3327, %v3329
      %v3362 = vsel %vm3354, %v3329, %v3331
      %v3363 = vsel %vm3354, %v3331, %v3333
      %v3364 = vsel %vm3354, %v3335, %v3337
      %v3365 = vsel %vm3354, %v3337, %v3339
      %v3366 = vsel %vm3354, %v3339, %v3341
      %v3367 = vsel %vm3354, %v3341, %v3343
      %v3368 = vsel %vm3354, %v3343, %v3345
      %v3369 = vsel %vm3354, %v3345, %v3347
      %v3370 = vsel %vm3354, %v3347, %v3349
      %v3371 = vsel %vm3354, %v3349, %v3351
      %v3372 = vsel %vm3354, %v3351, %v3353
      %3391 = vrot.lane.b32.xlu0 %v1515, 59
      %v3392 = vpop.permute.xlu0 %3391
      %3393 = vrot.lane.b32.xlu0 %v1543, 59
      %v3394 = vpop.permute.xlu0 %3393
      %3395 = vrot.lane.b32.xlu0 %v1571, 59
      %v3396 = vpop.permute.xlu0 %3395
      %3397 = vrot.lane.b32.xlu0 %v1599, 59
      %v3398 = vpop.permute.xlu0 %3397
      %3399 = vrot.lane.b32.xlu0 %v1627, 59
      %v3400 = vpop.permute.xlu0 %3399
      %3401 = vrot.lane.b32.xlu0 %v1655, 59
      %v3402 = vpop.permute.xlu0 %3401
      %3403 = vrot.lane.b32.xlu0 %v1683, 59
      %v3404 = vpop.permute.xlu0 %3403
      %3405 = vrot.lane.b32.xlu0 %v1711, 59
      %v3406 = vpop.permute.xlu0 %3405
      %3407 = vrot.lane.b32.xlu0 %v1739, 59
      %v3408 = vpop.permute.xlu0 %3407
      %3409 = vrot.lane.b32.xlu0 %v1767, 59
      %v3410 = vpop.permute.xlu0 %3409
      %3411 = vrot.lane.b32.xlu0 %v1517, 59
      %v3412 = vpop.permute.xlu0 %3411
      %3413 = vrot.lane.b32.xlu0 %v1545, 59
      %v3414 = vpop.permute.xlu0 %3413
      %3415 = vrot.lane.b32.xlu0 %v1573, 59
      %v3416 = vpop.permute.xlu0 %3415
      %3417 = vrot.lane.b32.xlu0 %v1601, 59
      %v3418 = vpop.permute.xlu0 %3417
      %3419 = vrot.lane.b32.xlu0 %v1629, 59
      %v3420 = vpop.permute.xlu0 %3419
      %3421 = vrot.lane.b32.xlu0 %v1657, 59
      %v3422 = vpop.permute.xlu0 %3421
      %3423 = vrot.lane.b32.xlu0 %v1685, 59
      %v3424 = vpop.permute.xlu0 %3423
      %3425 = vrot.lane.b32.xlu0 %v1713, 59
      %v3426 = vpop.permute.xlu0 %3425
      %3427 = vrot.lane.b32.xlu0 %v1741, 59
      %v3428 = vpop.permute.xlu0 %3427
      %3429 = vrot.lane.b32.xlu0 %v1769, 59
      %v3430 = vpop.permute.xlu0 %3429
      %vm3431 = vcmask 482304
      %v3432 = vsel %vm3431, %v3392, %v3394
      %v3433 = vsel %vm3431, %v3394, %v3396
      %v3434 = vsel %vm3431, %v3396, %v3398
      %v3435 = vsel %vm3431, %v3398, %v3400
      %v3436 = vsel %vm3431, %v3400, %v3402
      %v3437 = vsel %vm3431, %v3402, %v3404
      %v3438 = vsel %vm3431, %v3404, %v3406
      %v3439 = vsel %vm3431, %v3406, %v3408
      %v3440 = vsel %vm3431, %v3408, %v3410
      %v3441 = vsel %vm3431, %v3412, %v3414
      %v3442 = vsel %vm3431, %v3414, %v3416
      %v3443 = vsel %vm3431, %v3416, %v3418
      %v3444 = vsel %vm3431, %v3418, %v3420
      %v3445 = vsel %vm3431, %v3420, %v3422
      %v3446 = vsel %vm3431, %v3422, %v3424
      %v3447 = vsel %vm3431, %v3424, %v3426
      %v3448 = vsel %vm3431, %v3426, %v3428
      %v3449 = vsel %vm3431, %v3428, %v3430
      %3468 = vrot.lane.b32.xlu0 %v1515, 58
      %v3469 = vpop.permute.xlu0 %3468
      %3470 = vrot.lane.b32.xlu0 %v1543, 58
      %v3471 = vpop.permute.xlu0 %3470
      %3472 = vrot.lane.b32.xlu0 %v1571, 58
      %v3473 = vpop.permute.xlu0 %3472
      %3474 = vrot.lane.b32.xlu0 %v1599, 58
      %v3475 = vpop.permute.xlu0 %3474
      %3476 = vrot.lane.b32.xlu0 %v1627, 58
      %v3477 = vpop.permute.xlu0 %3476
      %3478 = vrot.lane.b32.xlu0 %v1655, 58
      %v3479 = vpop.permute.xlu0 %3478
      %3480 = vrot.lane.b32.xlu0 %v1683, 58
      %v3481 = vpop.permute.xlu0 %3480
      %3482 = vrot.lane.b32.xlu0 %v1711, 58
      %v3483 = vpop.permute.xlu0 %3482
      %3484 = vrot.lane.b32.xlu0 %v1739, 58
      %v3485 = vpop.permute.xlu0 %3484
      %3486 = vrot.lane.b32.xlu0 %v1767, 58
      %v3487 = vpop.permute.xlu0 %3486
      %3488 = vrot.lane.b32.xlu0 %v1517, 58
      %v3489 = vpop.permute.xlu0 %3488
      %3490 = vrot.lane.b32.xlu0 %v1545, 58
      %v3491 = vpop.permute.xlu0 %3490
      %3492 = vrot.lane.b32.xlu0 %v1573, 58
      %v3493 = vpop.permute.xlu0 %3492
      %3494 = vrot.lane.b32.xlu0 %v1601, 58
      %v3495 = vpop.permute.xlu0 %3494
      %3496 = vrot.lane.b32.xlu0 %v1629, 58
      %v3497 = vpop.permute.xlu0 %3496
      %3498 = vrot.lane.b32.xlu0 %v1657, 58
      %v3499 = vpop.permute.xlu0 %3498
      %3500 = vrot.lane.b32.xlu0 %v1685, 58
      %v3501 = vpop.permute.xlu0 %3500
      %3502 = vrot.lane.b32.xlu0 %v1713, 58
      %v3503 = vpop.permute.xlu0 %3502
      %3504 = vrot.lane.b32.xlu0 %v1741, 58
      %v3505 = vpop.permute.xlu0 %3504
      %3506 = vrot.lane.b32.xlu0 %v1769, 58
      %v3507 = vpop.permute.xlu0 %3506
      %vm3508 = vcmask 474112
      %v3509 = vsel %vm3508, %v3469, %v3471
      %v3510 = vsel %vm3508, %v3471, %v3473
      %v3511 = vsel %vm3508, %v3473, %v3475
      %v3512 = vsel %vm3508, %v3475, %v3477
      %v3513 = vsel %vm3508, %v3477, %v3479
      %v3514 = vsel %vm3508, %v3479, %v3481
      %v3515 = vsel %vm3508, %v3481, %v3483
      %v3516 = vsel %vm3508, %v3483, %v3485
      %v3517 = vsel %vm3508, %v3485, %v3487
      %v3518 = vsel %vm3508, %v3489, %v3491
      %v3519 = vsel %vm3508, %v3491, %v3493
      %v3520 = vsel %vm3508, %v3493, %v3495
      %v3521 = vsel %vm3508, %v3495, %v3497
      %v3522 = vsel %vm3508, %v3497, %v3499
      %v3523 = vsel %vm3508, %v3499, %v3501
      %v3524 = vsel %vm3508, %v3501, %v3503
      %v3525 = vsel %vm3508, %v3503, %v3505
      %v3526 = vsel %vm3508, %v3505, %v3507
      %v3545 = vpack.c.bf16 %v1517, %v1515
      %v3546 = vpack.c.bf16 %v1545, %v1543
      %v3547 = vpack.c.bf16 %v1573, %v1571
      %v3548 = vpack.c.bf16 %v1601, %v1599
      %v3549 = vpack.c.bf16 %v1629, %v1627
      %v3550 = vpack.c.bf16 %v1657, %v1655
      %v3551 = vpack.c.bf16 %v1685, %v1683
      %v3552 = vpack.c.bf16 %v1713, %v1711
      %v3553 = vpack.c.bf16 %v1741, %v1739
      %v3554 = vpack.c.bf16 %v3002, %v2994
      %v3555 = vpack.c.bf16 %v3003, %v2995
      %v3556 = vpack.c.bf16 %v3004, %v2996
      %v3557 = vpack.c.bf16 %v3005, %v2997
      %v3558 = vpack.c.bf16 %v3006, %v2998
      %v3559 = vpack.c.bf16 %v3007, %v2999
      %v3560 = vpack.c.bf16 %v3008, %v3000
      %v3561 = vpack.c.bf16 %v3009, %v3001
      %v3562 = vpack.c.bf16 %v2992, %v2974
      %v3563 = vpack.c.bf16 %v3073, %v3065
      %v3564 = vpack.c.bf16 %v3074, %v3066
      %v3565 = vpack.c.bf16 %v3075, %v3067
      %v3566 = vpack.c.bf16 %v3076, %v3068
      %v3567 = vpack.c.bf16 %v3077, %v3069
      %v3568 = vpack.c.bf16 %v3078, %v3070
      %v3569 = vpack.c.bf16 %v3079, %v3071
      %v3570 = vpack.c.bf16 %v3080, %v3072
      %v3571 = vpack.c.bf16 %v3063, %v3045
      %v3572 = vpack.c.bf16 %v3144, %v3136
      %v3573 = vpack.c.bf16 %v3145, %v3137
      %v3574 = vpack.c.bf16 %v3146, %v3138
      %v3575 = vpack.c.bf16 %v3147, %v3139
      %v3576 = vpack.c.bf16 %v3148, %v3140
      %v3577 = vpack.c.bf16 %v3149, %v3141
      %v3578 = vpack.c.bf16 %v3150, %v3142
      %v3579 = vpack.c.bf16 %v3151, %v3143
      %v3580 = vpack.c.bf16 %v3134, %v3116
      %v3581 = vpack.c.bf16 %v3215, %v3207
      %v3582 = vpack.c.bf16 %v3216, %v3208
      %v3583 = vpack.c.bf16 %v3217, %v3209
      %v3584 = vpack.c.bf16 %v3218, %v3210
      %v3585 = vpack.c.bf16 %v3219, %v3211
      %v3586 = vpack.c.bf16 %v3220, %v3212
      %v3587 = vpack.c.bf16 %v3221, %v3213
      %v3588 = vpack.c.bf16 %v3222, %v3214
      %v3589 = vpack.c.bf16 %v3205, %v3187
      %v3590 = vpack.c.bf16 %v3286, %v3278
      %v3591 = vpack.c.bf16 %v3287, %v3279
      %v3592 = vpack.c.bf16 %v3288, %v3280
      %v3593 = vpack.c.bf16 %v3289, %v3281
      %v3594 = vpack.c.bf16 %v3290, %v3282
      %v3595 = vpack.c.bf16 %v3291, %v3283
      %v3596 = vpack.c.bf16 %v3292, %v3284
      %v3597 = vpack.c.bf16 %v3293, %v3285
      %v3598 = vpack.c.bf16 %v3276, %v3258
      %v3599 = vpack.c.bf16 %v3364, %v3355
      %v3600 = vpack.c.bf16 %v3365, %v3356
      %v3601 = vpack.c.bf16 %v3366, %v3357
      %v3602 = vpack.c.bf16 %v3367, %v3358
      %v3603 = vpack.c.bf16 %v3368, %v3359
      %v3604 = vpack.c.bf16 %v3369, %v3360
      %v3605 = vpack.c.bf16 %v3370, %v3361
      %v3606 = vpack.c.bf16 %v3371, %v3362
      %v3607 = vpack.c.bf16 %v3372, %v3363
      %v3608 = vpack.c.bf16 %v3441, %v3432
      %v3609 = vpack.c.bf16 %v3442, %v3433
      %v3610 = vpack.c.bf16 %v3443, %v3434
      %v3611 = vpack.c.bf16 %v3444, %v3435
      %v3612 = vpack.c.bf16 %v3445, %v3436
      %v3613 = vpack.c.bf16 %v3446, %v3437
      %v3614 = vpack.c.bf16 %v3447, %v3438
      %v3615 = vpack.c.bf16 %v3448, %v3439
      %v3616 = vpack.c.bf16 %v3449, %v3440
      %v3617 = vpack.c.bf16 %v3518, %v3509
      %v3618 = vpack.c.bf16 %v3519, %v3510
      %v3619 = vpack.c.bf16 %v3520, %v3511
      %v3620 = vpack.c.bf16 %v3521, %v3512
      %v3621 = vpack.c.bf16 %v3522, %v3513
      %v3622 = vpack.c.bf16 %v3523, %v3514
      %v3623 = vpack.c.bf16 %v3524, %v3515
      %v3624 = vpack.c.bf16 %v3525, %v3516
      %v3625 = vpack.c.bf16 %v3526, %v3517
      %v3626 = vld [vmem:[%s7] sm:$0xff]
      %v3627 = vld [vmem:[%s8] sm:$0xff]
      %3629 = vset.pattern.permute.xlu0 0
      %3630 = vperm.xlu0 %3629, %v3627
      %v3631 = vpop.permute.xlu0 %3630
      %v3634 = vunpack.c.l.b16 %v3626
      %v3635 = vunpack.c.h.b16 %v3626
      %v3636 = vpack.c.b16 %v3634, %v3634
      %v3637 = vpack.c.b16 %v3635, %v3635
      %v3640 = vsel %vm465, %v3637, 0
      %3642 = vmatpush.bf16.msra.mxu0 %v3608
      %3643 = vmatpush.bf16.msra.mxu0 %v3599
      %3644 = vmatpush.bf16.msra.mxu0 %v3590
      %3645 = vmatpush.bf16.msra.mxu0 %v3581
      %3646 = vmatpush.bf16.msra.mxu0 %v3572
      %3647 = vmatpush.bf16.msra.mxu0 %v3563
      %3648 = vmatpush.bf16.msra.mxu0 %v3554
      %3649 = vmatpush.bf16.msra.mxu0 %v3545
      %3650 = vmatmul.bf16.gmra.mxu0 %v3636
      %v3651 = vpop.f32.mrf.mxu0
      %v3652 = vadd.f32 %v3631, %v3651
      %v3653 = vpop.f32.mrf.mxu0
      %3654 = vdwg.mxu0
      %3655 = vmatpush.bf16.msra.mxu0 0
      %3656 = vmatpush.bf16.msra.mxu0 0
      %3657 = vmatpush.bf16.msra.mxu0 0
      %3658 = vmatpush.bf16.msra.mxu0 0
      %3659 = vmatpush.bf16.msra.mxu0 0
      %3660 = vmatpush.bf16.msra.mxu0 0
      %3661 = vmatpush.bf16.msra.mxu0 0
      %3662 = vmatpush.bf16.msra.mxu0 %v3617
      %3663 = vmatmul.bf16.gmra.mxu0 %v3640
      %v3664 = vpop.f32.mrf.mxu0
      %v3665 = vadd.f32 %v3652, %v3664
      %v3666 = vpop.f32.mrf.mxu0
      %3667 = vdwg.mxu0
      %3668 = vmatpush.bf16.msra.mxu0 %v3609
      %3669 = vmatpush.bf16.msra.mxu0 %v3600
      %3670 = vmatpush.bf16.msra.mxu0 %v3591
      %3671 = vmatpush.bf16.msra.mxu0 %v3582
      %3672 = vmatpush.bf16.msra.mxu0 %v3573
      %3673 = vmatpush.bf16.msra.mxu0 %v3564
      %3674 = vmatpush.bf16.msra.mxu0 %v3555
      %3675 = vmatpush.bf16.msra.mxu0 %v3546
      %3676 = vmatmul.bf16.gmra.mxu0 %v3636
      %v3677 = vpop.f32.mrf.mxu0
      %v3678 = vadd.f32 %v3631, %v3677
      %v3679 = vpop.f32.mrf.mxu0
      %3680 = vdwg.mxu0
      %3681 = vmatpush.bf16.msra.mxu0 0
      %3682 = vmatpush.bf16.msra.mxu0 0
      %3683 = vmatpush.bf16.msra.mxu0 0
      %3684 = vmatpush.bf16.msra.mxu0 0
      %3685 = vmatpush.bf16.msra.mxu0 0
      %3686 = vmatpush.bf16.msra.mxu0 0
      %3687 = vmatpush.bf16.msra.mxu0 0
      %3688 = vmatpush.bf16.msra.mxu0 %v3618
      %3689 = vmatmul.bf16.gmra.mxu0 %v3640
      %v3690 = vpop.f32.mrf.mxu0
      %v3691 = vadd.f32 %v3678, %v3690
      %v3692 = vpop.f32.mrf.mxu0
      %3693 = vdwg.mxu0
      %3694 = vmatpush.bf16.msra.mxu0 %v3610
      %3695 = vmatpush.bf16.msra.mxu0 %v3601
      %3696 = vmatpush.bf16.msra.mxu0 %v3592
      %3697 = vmatpush.bf16.msra.mxu0 %v3583
      %3698 = vmatpush.bf16.msra.mxu0 %v3574
      %3699 = vmatpush.bf16.msra.mxu0 %v3565
      %3700 = vmatpush.bf16.msra.mxu0 %v3556
      %3701 = vmatpush.bf16.msra.mxu0 %v3547
      %3702 = vmatmul.bf16.gmra.mxu0 %v3636
      %v3703 = vpop.f32.mrf.mxu0
      %v3704 = vadd.f32 %v3631, %v3703
      %v3705 = vpop.f32.mrf.mxu0
      %3706 = vdwg.mxu0
      %3707 = vmatpush.bf16.msra.mxu0 0
      %3708 = vmatpush.bf16.msra.mxu0 0
      %3709 = vmatpush.bf16.msra.mxu0 0
      %3710 = vmatpush.bf16.msra.mxu0 0
      %3711 = vmatpush.bf16.msra.mxu0 0
      %3712 = vmatpush.bf16.msra.mxu0 0
      %3713 = vmatpush.bf16.msra.mxu0 0
      %3714 = vmatpush.bf16.msra.mxu0 %v3619
      %3715 = vmatmul.bf16.gmra.mxu0 %v3640
      %v3716 = vpop.f32.mrf.mxu0
      %v3717 = vadd.f32 %v3704, %v3716
      %v3718 = vpop.f32.mrf.mxu0
      %3719 = vdwg.mxu0
      %3720 = vmatpush.bf16.msra.mxu0 %v3611
      %3721 = vmatpush.bf16.msra.mxu0 %v3602
      %3722 = vmatpush.bf16.msra.mxu0 %v3593
      %3723 = vmatpush.bf16.msra.mxu0 %v3584
      %3724 = vmatpush.bf16.msra.mxu0 %v3575
      %3725 = vmatpush.bf16.msra.mxu0 %v3566
      %3726 = vmatpush.bf16.msra.mxu0 %v3557
      %3727 = vmatpush.bf16.msra.mxu0 %v3548
      %3728 = vmatmul.bf16.gmra.mxu0 %v3636
      %v3729 = vpop.f32.mrf.mxu0
      %v3730 = vadd.f32 %v3631, %v3729
      %v3731 = vpop.f32.mrf.mxu0
      %3732 = vdwg.mxu0
      %3733 = vmatpush.bf16.msra.mxu0 0
      %3734 = vmatpush.bf16.msra.mxu0 0
      %3735 = vmatpush.bf16.msra.mxu0 0
      %3736 = vmatpush.bf16.msra.mxu0 0
      %3737 = vmatpush.bf16.msra.mxu0 0
      %3738 = vmatpush.bf16.msra.mxu0 0
      %3739 = vmatpush.bf16.msra.mxu0 0
      %3740 = vmatpush.bf16.msra.mxu0 %v3620
      %3741 = vmatmul.bf16.gmra.mxu0 %v3640
      %v3742 = vpop.f32.mrf.mxu0
      %v3743 = vadd.f32 %v3730, %v3742
      %v3744 = vpop.f32.mrf.mxu0
      %3745 = vdwg.mxu0
      %3746 = vmatpush.bf16.msra.mxu0 %v3612
      %3747 = vmatpush.bf16.msra.mxu0 %v3603
      %3748 = vmatpush.bf16.msra.mxu0 %v3594
      %3749 = vmatpush.bf16.msra.mxu0 %v3585
      %3750 = vmatpush.bf16.msra.mxu0 %v3576
      %3751 = vmatpush.bf16.msra.mxu0 %v3567
      %3752 = vmatpush.bf16.msra.mxu0 %v3558
      %3753 = vmatpush.bf16.msra.mxu0 %v3549
      %3754 = vmatmul.bf16.gmra.mxu0 %v3636
      %v3755 = vpop.f32.mrf.mxu0
      %v3756 = vadd.f32 %v3631, %v3755
      %v3757 = vpop.f32.mrf.mxu0
      %3758 = vdwg.mxu0
      %3759 = vmatpush.bf16.msra.mxu0 0
      %3760 = vmatpush.bf16.msra.mxu0 0
      %3761 = vmatpush.bf16.msra.mxu0 0
      %3762 = vmatpush.bf16.msra.mxu0 0
      %3763 = vmatpush.bf16.msra.mxu0 0
      %3764 = vmatpush.bf16.msra.mxu0 0
      %3765 = vmatpush.bf16.msra.mxu0 0
      %3766 = vmatpush.bf16.msra.mxu0 %v3621
      %3767 = vmatmul.bf16.gmra.mxu0 %v3640
      %v3768 = vpop.f32.mrf.mxu0
      %v3769 = vadd.f32 %v3756, %v3768
      %v3770 = vpop.f32.mrf.mxu0
      %3771 = vdwg.mxu0
      %3772 = vmatpush.bf16.msra.mxu0 %v3613
      %3773 = vmatpush.bf16.msra.mxu0 %v3604
      %3774 = vmatpush.bf16.msra.mxu0 %v3595
      %3775 = vmatpush.bf16.msra.mxu0 %v3586
      %3776 = vmatpush.bf16.msra.mxu0 %v3577
      %3777 = vmatpush.bf16.msra.mxu0 %v3568
      %3778 = vmatpush.bf16.msra.mxu0 %v3559
      %3779 = vmatpush.bf16.msra.mxu0 %v3550
      %3780 = vmatmul.bf16.gmra.mxu0 %v3636
      %v3781 = vpop.f32.mrf.mxu0
      %v3782 = vadd.f32 %v3631, %v3781
      %v3783 = vpop.f32.mrf.mxu0
      %3784 = vdwg.mxu0
      %3785 = vmatpush.bf16.msra.mxu0 0
      %3786 = vmatpush.bf16.msra.mxu0 0
      %3787 = vmatpush.bf16.msra.mxu0 0
      %3788 = vmatpush.bf16.msra.mxu0 0
      %3789 = vmatpush.bf16.msra.mxu0 0
      %3790 = vmatpush.bf16.msra.mxu0 0
      %3791 = vmatpush.bf16.msra.mxu0 0
      %3792 = vmatpush.bf16.msra.mxu0 %v3622
      %3793 = vmatmul.bf16.gmra.mxu0 %v3640
      %v3794 = vpop.f32.mrf.mxu0
      %v3795 = vadd.f32 %v3782, %v3794
      %v3796 = vpop.f32.mrf.mxu0
      %3797 = vdwg.mxu0
      %3798 = vmatpush.bf16.msra.mxu0 %v3614
      %3799 = vmatpush.bf16.msra.mxu0 %v3605
      %3800 = vmatpush.bf16.msra.mxu0 %v3596
      %3801 = vmatpush.bf16.msra.mxu0 %v3587
      %3802 = vmatpush.bf16.msra.mxu0 %v3578
      %3803 = vmatpush.bf16.msra.mxu0 %v3569
      %3804 = vmatpush.bf16.msra.mxu0 %v3560
      %3805 = vmatpush.bf16.msra.mxu0 %v3551
      %3806 = vmatmul.bf16.gmra.mxu0 %v3636
      %v3807 = vpop.f32.mrf.mxu0
      %v3808 = vadd.f32 %v3631, %v3807
      %v3809 = vpop.f32.mrf.mxu0
      %3810 = vdwg.mxu0
      %3811 = vmatpush.bf16.msra.mxu0 0
      %3812 = vmatpush.bf16.msra.mxu0 0
      %3813 = vmatpush.bf16.msra.mxu0 0
      %3814 = vmatpush.bf16.msra.mxu0 0
      %3815 = vmatpush.bf16.msra.mxu0 0
      %3816 = vmatpush.bf16.msra.mxu0 0
      %3817 = vmatpush.bf16.msra.mxu0 0
      %3818 = vmatpush.bf16.msra.mxu0 %v3623
      %3819 = vmatmul.bf16.gmra.mxu0 %v3640
      %v3820 = vpop.f32.mrf.mxu0
      %v3821 = vadd.f32 %v3808, %v3820
      %v3822 = vpop.f32.mrf.mxu0
      %3823 = vdwg.mxu0
      %3824 = vmatpush.bf16.msra.mxu0 %v3615
      %3825 = vmatpush.bf16.msra.mxu0 %v3606
      %3826 = vmatpush.bf16.msra.mxu0 %v3597
      %3827 = vmatpush.bf16.msra.mxu0 %v3588
      %3828 = vmatpush.bf16.msra.mxu0 %v3579
      %3829 = vmatpush.bf16.msra.mxu0 %v3570
      %3830 = vmatpush.bf16.msra.mxu0 %v3561
      %3831 = vmatpush.bf16.msra.mxu0 %v3552
      %3832 = vmatmul.bf16.gmra.mxu0 %v3636
      %v3833 = vpop.f32.mrf.mxu0
      %v3834 = vadd.f32 %v3631, %v3833
      %v3835 = vpop.f32.mrf.mxu0
      %3836 = vdwg.mxu0
      %3837 = vmatpush.bf16.msra.mxu0 0
      %3838 = vmatpush.bf16.msra.mxu0 0
      %3839 = vmatpush.bf16.msra.mxu0 0
      %3840 = vmatpush.bf16.msra.mxu0 0
      %3841 = vmatpush.bf16.msra.mxu0 0
      %3842 = vmatpush.bf16.msra.mxu0 0
      %3843 = vmatpush.bf16.msra.mxu0 0
      %3844 = vmatpush.bf16.msra.mxu0 %v3624
      %3845 = vmatmul.bf16.gmra.mxu0 %v3640
      %v3846 = vpop.f32.mrf.mxu0
      %v3847 = vadd.f32 %v3834, %v3846
      %v3848 = vpop.f32.mrf.mxu0
      %3849 = vdwg.mxu0
      %3850 = vmatpush.bf16.msra.mxu0 %v3616
      %3851 = vmatpush.bf16.msra.mxu0 %v3607
      %3852 = vmatpush.bf16.msra.mxu0 %v3598
      %3853 = vmatpush.bf16.msra.mxu0 %v3589
      %3854 = vmatpush.bf16.msra.mxu0 %v3580
      %3855 = vmatpush.bf16.msra.mxu0 %v3571
      %3856 = vmatpush.bf16.msra.mxu0 %v3562
      %3857 = vmatpush.bf16.msra.mxu0 %v3553
      %3858 = vmatmul.bf16.gmra.mxu0 %v3636
      %v3859 = vpop.f32.mrf.mxu0
      %v3860 = vadd.f32 %v3631, %v3859
      %v3861 = vpop.f32.mrf.mxu0
      %3862 = vdwg.mxu0
      %3863 = vmatpush.bf16.msra.mxu0 0
      %3864 = vmatpush.bf16.msra.mxu0 0
      %3865 = vmatpush.bf16.msra.mxu0 0
      %3866 = vmatpush.bf16.msra.mxu0 0
      %3867 = vmatpush.bf16.msra.mxu0 0
      %3868 = vmatpush.bf16.msra.mxu0 0
      %3869 = vmatpush.bf16.msra.mxu0 0
      %3870 = vmatpush.bf16.msra.mxu0 %v3625
      %3871 = vmatmul.bf16.gmra.mxu0 %v3640
      %v3872 = vpop.f32.mrf.mxu0
      %v3873 = vadd.f32 %v3860, %v3872
      %v3874 = vpop.f32.mrf.mxu0
      %3875 = vdwg.mxu0
      %v3876 = vadd.f32 %v3665, %v2728
      %v3877 = vadd.f32 %v3691, %v2754
      %v3878 = vadd.f32 %v3717, %v2780
      %v3879 = vadd.f32 %v3743, %v2806
      %v3880 = vadd.f32 %v3769, %v2832
      %v3881 = vadd.f32 %v3795, %v2858
      %v3882 = vadd.f32 %v3821, %v2884
      %v3883 = vadd.f32 %v3847, %v2910
      %v3884 = vadd.f32 %v3873, %v2936
      %v3885 = vmax.f32 %v3876, 0.0
      %v3886 = vmax.f32 %v3877, 0.0
      %v3887 = vmax.f32 %v3878, 0.0
      %v3888 = vmax.f32 %v3879, 0.0
      %v3889 = vmax.f32 %v3880, 0.0
      %v3890 = vmax.f32 %v3881, 0.0
      %v3891 = vmax.f32 %v3882, 0.0
      %v3892 = vmax.f32 %v3883, 0.0
      %v3893 = vmax.f32 %v3884, 0.0
      %3894 = vst [vmem:[%s332] sm:$0xff] %v3885
      %3895 = vst [vmem:[%s332 + $0x8] sm:$0xff] %v3886
      %3896 = vst [vmem:[%s332 + $0x10] sm:$0xff] %v3887
      %3897 = vst [vmem:[%s332 + $0x18] sm:$0xff] %v3888
      %3898 = vst [vmem:[%s332 + $0x20] sm:$0xff] %v3889
      %3899 = vst [vmem:[%s332 + $0x28] sm:$0xff] %v3890
      %3900 = vst [vmem:[%s332 + $0x30] sm:$0xff] %v3891
      %3901 = vst [vmem:[%s332 + $0x38] sm:$0xff] %v3892
      %vm3902 = vcmask 523264
      %3903 = vst.msk [vmem:[%s332 + $0x40] sm:$0xff] %vm3902, %v3893
      %p3904 = scmp.lt.s32.totalorder %s20, 1
      %s3905 = scalar_select %p3904, %s20, 1
      %s3906 = smul.addr %s3905, 9
      %s3907 = smul.addr %s3906, 8
      %s3908 = scalar_lea.vmem %s9, %s3907
      // Predicated region
      $region57: #{_lambda_.1} parent=55 // pred_check
        %p3909 = pneg %p232
      $region58: #{_lambda_.1} parent=55 // pred_check_branch
        %3911 = sbr.rel (%p3909) target = $region60
      $region59: #{_lambda_.1} parent=55 // pred_region
        _
      $region60: #{_lambda_.1} parent=55 // pred_fallthru
        _
    $region56: #{_lambda_.1} parent=5 // pred_fallthru
      _
    %p3912 = scmp.le.s32.totalorder 2, %s15
    // Predicated region
    $region61: #{_lambda_.1} parent=5 // pred_check
      %p3913 = pneg %p3912
    $region62: #{_lambda_.1} parent=5 // pred_check_branch
      %3915 = sbr.rel (%p3913) target = $region64
    $region63: #{_lambda_.1} parent=5 // pred_region
      %s3916 = ssub.s32 %s15, 2
      // Predicated region
      $region65: #{_lambda_.1} parent=63 // pred_check
        %p3917 = pneg %p238
      $region66: #{_lambda_.1} parent=63 // pred_check_branch
        %3919 = sbr.rel (%p3917) target = $region68
      $region67: #{_lambda_.1} parent=63 // pred_region
        %p3920 = scmp.lt.s32.totalorder %s21, 1
        %s3921 = scalar_select %p3920, %s21, 1
        %s3922 = smul.addr %s3921, 9
        %s3923 = smul.addr %s3922, 8
        %s3924 = scalar_lea.vmem %s9, %s3923
      $region68: #{_lambda_.1} parent=63 // pred_fallthru
        _
    $region64: #{_lambda_.1} parent=5 // pred_fallthru
      _
  $region6: #{_lambda_.1} parent=0 // loop_footer
    %s19 = sadd.s32 1, %s15
  $region7: #{_lambda_.1} parent=0 // loop_footer_branch
    %14 = sbr.rel target = $region3
  $region8: #{_lambda_.1} parent=0 // loop_exit
    _

</llo_original>
